<compile_context>
chip_gen: v6e
topology: v6e:2x2x1
jax: 0.10.0
libtpu: 0.0.40
codegen_flags: <defaults>
</compile_context>

<pallas_src>
import jax
import jax.numpy as jnp
from jax.experimental import pallas as pl
from jax.experimental.pallas import tpu as pltpu

# ----- model hyper-parameters (small, consistent with the module) -----
DIM = 32        # embedding dim
DEPTH = 2       # number of (attn, ff) layers
HEADS = 4
DIM_HEAD = 8
MLP_DIM = 64
INNER = HEADS * DIM_HEAD          # 32
EPS = 1e-5                        # nn.LayerNorm default eps
SCALE = DIM_HEAD ** -0.5
INV_SQRT2 = 0.7071067811865475

B, N = 2, 8                       # example batch / sequence length
TOKENS = B * N

_HP = jax.lax.Precision.HIGHEST   # reference-only: torch-style f32 matmuls


# ---------------------------------------------------------------------------
# In-kernel helpers
# ---------------------------------------------------------------------------
def _layernorm(x, w, b):
    # Single-pass LN: mean and mean-of-squares are independent reductions
    # (var = E[x^2] - E[x]^2), halving the XLU cross-lane reduction count.
    m = jnp.mean(x, axis=-1, keepdims=True)
    m2 = jnp.mean(x * x, axis=-1, keepdims=True)
    var = m2 - m * m
    return (x - m) * jax.lax.rsqrt(var + EPS) * w + b


def _erf(x):
    # Abramowitz & Stegun 7.1.26 rational approximation (|err| <= 1.5e-7).
    # The divide is an EUP approx reciprocal (off the VPU critical path).
    a1, a2, a3, a4, a5 = (0.254829592, -0.284496736, 1.421413741,
                          -1.453152027, 1.061405429)
    p = 0.3275911
    s = jnp.where(x >= 0.0, 1.0, -1.0)
    ax = jnp.abs(x)
    t = pl.reciprocal(1.0 + p * ax, approx=True)
    poly = ((((a5 * t + a4) * t + a3) * t + a2) * t + a1) * t
    return s * (1.0 - poly * jnp.exp(-ax * ax))


def _gelu(h):
    # exact (erf-form) GELU, matching torch nn.GELU() default
    return 0.5 * h * (1.0 + _erf(h * INV_SQRT2))


def _split_heads(t):
    # (B*N, INNER) -> (B*HEADS, N, DIM_HEAD).  Columns are head-major (h d),
    # matching torch's rearrange 'b n (h d) -> b h n d'.  Uses only static
    # slices + a leading-axis stack: no last-dim reshapes.
    return jnp.stack(
        [t[b * N:(b + 1) * N, h * DIM_HEAD:(h + 1) * DIM_HEAD]
         for b in range(B) for h in range(HEADS)], axis=0)


def _merge_heads(t):
    # (B*HEADS, N, DIM_HEAD) -> (B*N, INNER), columns in (h d) order.
    return jnp.concatenate(
        [jnp.concatenate([t[b * HEADS + h] for h in range(HEADS)], axis=-1)
         for b in range(B)], axis=0)


# ---------------------------------------------------------------------------
# Fused Pallas kernel: one invocation = full DEPTH-layer stack for all tokens
# ---------------------------------------------------------------------------
def fused_transformer_kernel(x_ref,
                             a_ln_w_ref, a_ln_b_ref,
                             w_qkv_ref, w_o_ref, b_o_ref,
                             f_ln_w_ref, f_ln_b_ref,
                             w1_ref, b1_ref, w2_ref, b2_ref,
                             n_w_ref, n_b_ref,
                             o_ref):
    x = x_ref[...]                                              # (B*N, DIM)

    for l in range(DEPTH):                                      # static unroll
        # ---------------- attention block (pre-norm + residual) -----------
        xn = _layernorm(x, a_ln_w_ref[l], a_ln_b_ref[l])        # (B*N, DIM)
        qkv = jnp.dot(xn, w_qkv_ref[l],
                      preferred_element_type=jnp.float32)       # (B*N, 3*INNER)

        qh = _split_heads(qkv[:, 0 * INNER:1 * INNER])          # (B*H, N, dh)
        kh = _split_heads(qkv[:, 1 * INNER:2 * INNER])
        vh = _split_heads(qkv[:, 2 * INNER:3 * INNER])

        dots = jnp.einsum('znd,zmd->znm', qh, kh,
                          preferred_element_type=jnp.float32) * SCALE
        dots = dots - jnp.max(dots, axis=-1, keepdims=True)
        e = jnp.exp(dots)
        attn = e * pl.reciprocal(jnp.sum(e, axis=-1, keepdims=True),
                                 approx=True)                   # softmax
        heads_out = jnp.einsum('znm,zmd->znd', attn, vh,
                               preferred_element_type=jnp.float32)

        out_tok = _merge_heads(heads_out)                       # (B*N, INNER)
        # single full-width projection; bias + residual in the epilogue
        x = jnp.dot(out_tok, w_o_ref[l],
                    preferred_element_type=jnp.float32) + b_o_ref[l] + x

        # ---------------- feed-forward block -------------------------------
        xn = _layernorm(x, f_ln_w_ref[l], f_ln_b_ref[l])
        h = jnp.dot(xn, w1_ref[l],
                    preferred_element_type=jnp.float32) + b1_ref[l]
        g = _gelu(h)
        x = jnp.dot(g, w2_ref[l],
                    preferred_element_type=jnp.float32) + b2_ref[l] + x

    # final LayerNorm
    o_ref[...] = _layernorm(x, n_w_ref[...], n_b_ref[...])


# ---------------------------------------------------------------------------
# pallas_call wrapper
# ---------------------------------------------------------------------------
def transformer_forward(x, packed):
    Bx, Nx, Dx = x.shape
    x2d = x.reshape(Bx * Nx, Dx)          # free HBM-level reshape

    weight_names = ("a_ln_w", "a_ln_b", "w_qkv", "w_o", "b_o",
                    "f_ln_w", "f_ln_b", "w1", "b1", "w2", "b2",
                    "n_w", "n_b")
    weights = [packed[k] for k in weight_names]

    def vmem_spec():
        # untiled, single-buffered, VMEM-resident for the whole invocation
        return pl.BlockSpec(memory_space=pltpu.MemorySpace.VMEM)

    out2d = pl.pallas_call(
        fused_transformer_kernel,
        out_shape=jax.ShapeDtypeStruct((Bx * Nx, Dx), x.dtype),
        in_specs=[vmem_spec() for _ in range(1 + len(weights))],
        out_specs=vmem_spec(),
    )(x2d, *weights)
    return out2d.reshape(Bx, Nx, Dx)


# ---------------------------------------------------------------------------
# canonical parameter init (mirrors module __init__ shapes)
# ---------------------------------------------------------------------------
def init_params(key):
    layers = []
    for _ in range(DEPTH):
        key, k1, k2, k3, k4, k5, k6, k7 = jax.random.split(key, 8)
        attn = {
            "ln_w": jnp.ones((1, DIM), jnp.float32),    # LayerNorm init
            "ln_b": jnp.zeros((1, DIM), jnp.float32),
            # to_qkv: Linear(dim, 3*inner, bias=False); stored transposed
            "w_qkv": 0.1 * jax.random.normal(k1, (DIM, 3 * INNER), jnp.float32),
            # to_out: Linear(inner, dim); stored transposed (inner, D)
            "w_out": 0.1 * jax.random.normal(k2, (INNER, DIM), jnp.float32),
            "b_out": 0.1 * jax.random.normal(k3, (1, DIM), jnp.float32),
        }
        ff = {
            "ln_w": jnp.ones((1, DIM), jnp.float32),
            "ln_b": jnp.zeros((1, DIM), jnp.float32),
            "w1": 0.1 * jax.random.normal(k4, (DIM, MLP_DIM), jnp.float32),
            "b1": 0.1 * jax.random.normal(k5, (1, MLP_DIM), jnp.float32),
            # NOTE: the torch module zero-inits this weight
            # (torch.nn.init.zeros_(self.e.weight)); a non-zero value is used
            # here so the second FF matmul path is numerically exercised.
            "w2": 0.1 * jax.random.normal(k6, (MLP_DIM, DIM), jnp.float32),
            "b2": 0.1 * jax.random.normal(k7, (1, DIM), jnp.float32),
        }
        layers.append({"attn": attn, "ff": ff})
    return {
        "layers": layers,
        "norm": {"ln_w": jnp.ones((1, DIM), jnp.float32),
                 "ln_b": jnp.zeros((1, DIM), jnp.float32)},
    }


def pack_params(params):
    """DEPTH-stack canonical params; q/k/v and out-proj weights stay merged."""
    a = [l["attn"] for l in params["layers"]]
    f = [l["ff"] for l in params["layers"]]
    return {
        "a_ln_w": jnp.stack([p["ln_w"] for p in a]),      # (DEPTH, 1, D)
        "a_ln_b": jnp.stack([p["ln_b"] for p in a]),
        "w_qkv": jnp.stack([p["w_qkv"] for p in a]),      # (DEPTH, D, 3*INNER)
        "w_o": jnp.stack([p["w_out"] for p in a]),        # (DEPTH, INNER, D)
        "b_o": jnp.stack([p["b_out"] for p in a]),        # (DEPTH, 1, D)
        "f_ln_w": jnp.stack([p["ln_w"] for p in f]),
        "f_ln_b": jnp.stack([p["ln_b"] for p in f]),
        "w1": jnp.stack([p["w1"] for p in f]),            # (DEPTH, D, MLP)
        "b1": jnp.stack([p["b1"] for p in f]),            # (DEPTH, 1, MLP)
        "w2": jnp.stack([p["w2"] for p in f]),            # (DEPTH, MLP, D)
        "b2": jnp.stack([p["b2"] for p in f]),            # (DEPTH, 1, D)
        "n_w": params["norm"]["ln_w"],                    # (1, D)
        "n_b": params["norm"]["ln_b"],
    }


# ---------------------------------------------------------------------------
# pure-JAX reference (torch-f32-like matmuls; sanity check of semantics)
# ---------------------------------------------------------------------------
def ref_forward(x, params):
    def ln(t, w, b):
        m = t.mean(-1, keepdims=True)
        v = ((t - m) ** 2).mean(-1, keepdims=True)
        return (t - m) / jnp.sqrt(v + EPS) * w + b

    Bx, Nx, _ = x.shape
    for layer in params["layers"]:
        a = layer["attn"]
        xn = ln(x, a["ln_w"], a["ln_b"])
        qkv = jnp.einsum("bnd,de->bne", xn, a["w_qkv"], precision=_HP)
        q, k, v = jnp.split(qkv, 3, axis=-1)

        def to_heads(t):
            return t.reshape(Bx, Nx, HEADS, DIM_HEAD).transpose(0, 2, 1, 3)

        q, k, v = to_heads(q), to_heads(k), to_heads(v)
        dots = jnp.einsum("bhnd,bhmd->bhnm", q, k, precision=_HP) * SCALE
        attn = jax.nn.softmax(dots, axis=-1)
        out = jnp.einsum("bhnm,bhmd->bhnd", attn, v, precision=_HP)
        out = out.transpose(0, 2, 1, 3).reshape(Bx, Nx, INNER)
        x = jnp.einsum("bni,id->bnd", out, a["w_out"], precision=_HP) \
            + a["b_out"] + x

        f = layer["ff"]
        xn = ln(x, f["ln_w"], f["ln_b"])
        h = jnp.einsum("bnd,dm->bnm", xn, f["w1"], precision=_HP) + f["b1"]
        g = 0.5 * h * (1.0 + jax.lax.erf(h * INV_SQRT2))
        x = jnp.einsum("bnm,md->bnd", g, f["w2"], precision=_HP) + f["b2"] + x

    n = params["norm"]
    return ln(x, n["ln_w"], n["ln_b"])


# ---------------------------------------------------------------------------
if __name__ == "__main__":
    key = jax.random.PRNGKey(0)
    k_x, k_p = jax.random.split(key)
    x = jax.random.normal(k_x, (B, N, DIM), jnp.float32)
    params = init_params(k_p)
    packed = pack_params(params)

    out = transformer_forward(x, packed)
    out = jax.block_until_ready(out)

    ref = ref_forward(x, params)
    assert out.shape == (B, N, DIM)
    # Kernel matmuls run at DEFAULT precision (single bf16 MXU pass) and the
    # softmax / erf denominators use EUP approx reciprocals, while the
    # reference uses HIGHEST-precision f32 matmuls -> allow ~1e-2 parity.
    assert bool(jnp.allclose(out, ref, atol=1e-2, rtol=1e-2)), \
        "Pallas output does not match reference"

    print("KERNEL_OK")
</pallas_src>

<mosaic_0001>
module attributes {stable_mosaic.version = 11 : i64} {
  func.func @fused_transformer_kernel(%arg0: memref<16x32xf32, #tpu.memory_space<vmem>>, %arg1: memref<2x1x32xf32, #tpu.memory_space<vmem>>, %arg2: memref<2x1x32xf32, #tpu.memory_space<vmem>>, %arg3: memref<2x32x96xf32, #tpu.memory_space<vmem>>, %arg4: memref<2x32x32xf32, #tpu.memory_space<vmem>>, %arg5: memref<2x1x32xf32, #tpu.memory_space<vmem>>, %arg6: memref<2x1x32xf32, #tpu.memory_space<vmem>>, %arg7: memref<2x1x32xf32, #tpu.memory_space<vmem>>, %arg8: memref<2x32x64xf32, #tpu.memory_space<vmem>>, %arg9: memref<2x1x64xf32, #tpu.memory_space<vmem>>, %arg10: memref<2x64x32xf32, #tpu.memory_space<vmem>>, %arg11: memref<2x1x32xf32, #tpu.memory_space<vmem>>, %arg12: memref<1x32xf32, #tpu.memory_space<vmem>>, %arg13: memref<1x32xf32, #tpu.memory_space<vmem>>, %arg14: memref<16x32xf32, #tpu.memory_space<vmem>>) attributes {dimension_semantics = [], scalar_prefetch = 0 : i64, scratch_operands = 0 : i64, tpu.core_type = #tpu.core_type<tc>} {
    %c0 = arith.constant 0 : index
    %c0_0 = arith.constant 0 : index
    %0 = vector.load %arg0[%c0, %c0_0] : memref<16x32xf32, #tpu.memory_space<vmem>>, vector<16x32xf32>
    %c0_1 = arith.constant 0 : index
    %c0_2 = arith.constant 0 : index
    %c0_3 = arith.constant 0 : index
    %1 = vector.load %arg1[%c0_1, %c0_2, %c0_3] : memref<2x1x32xf32, #tpu.memory_space<vmem>>, vector<1x1x32xf32>
    %2 = vector.shape_cast %1 : vector<1x1x32xf32> to vector<1x32xf32>
    %c0_4 = arith.constant 0 : index
    %c0_5 = arith.constant 0 : index
    %c0_6 = arith.constant 0 : index
    %3 = vector.load %arg2[%c0_4, %c0_5, %c0_6] : memref<2x1x32xf32, #tpu.memory_space<vmem>>, vector<1x1x32xf32>
    %4 = vector.shape_cast %3 : vector<1x1x32xf32> to vector<1x32xf32>
    %cst = arith.constant dense<0.000000e+00> : vector<16xf32>
    %5 = vector.multi_reduction <add>, %0, %cst [1] : vector<16x32xf32> to vector<16xf32>
    %6 = vector.shape_cast %5 : vector<16xf32> to vector<16x1xf32>
    %cst_7 = arith.constant 3.200000e+01 : f32
    %7 = vector.broadcast %cst_7 : f32 to vector<16x1xf32>
    %8 = arith.divf %6, %7 : vector<16x1xf32>
    %9 = arith.mulf %0, %0 : vector<16x32xf32>
    %cst_8 = arith.constant dense<0.000000e+00> : vector<16xf32>
    %10 = vector.multi_reduction <add>, %9, %cst_8 [1] : vector<16x32xf32> to vector<16xf32>
    %11 = vector.shape_cast %10 : vector<16xf32> to vector<16x1xf32>
    %cst_9 = arith.constant 3.200000e+01 : f32
    %12 = vector.broadcast %cst_9 : f32 to vector<16x1xf32>
    %13 = arith.divf %11, %12 : vector<16x1xf32>
    %14 = arith.mulf %8, %8 : vector<16x1xf32>
    %15 = arith.subf %13, %14 : vector<16x1xf32>
    %16 = vector.broadcast %8 : vector<16x1xf32> to vector<16x32xf32>
    %17 = arith.subf %0, %16 : vector<16x32xf32>
    %cst_10 = arith.constant 9.99999974E-6 : f32
    %18 = vector.broadcast %cst_10 : f32 to vector<16x1xf32>
    %19 = arith.addf %15, %18 : vector<16x1xf32>
    %20 = math.rsqrt %19 : vector<16x1xf32>
    %21 = vector.broadcast %20 : vector<16x1xf32> to vector<16x32xf32>
    %22 = arith.mulf %17, %21 : vector<16x32xf32>
    %23 = vector.broadcast %2 : vector<1x32xf32> to vector<16x32xf32>
    %24 = arith.mulf %22, %23 : vector<16x32xf32>
    %25 = vector.broadcast %4 : vector<1x32xf32> to vector<16x32xf32>
    %26 = arith.addf %24, %25 : vector<16x32xf32>
    %c0_11 = arith.constant 0 : index
    %c0_12 = arith.constant 0 : index
    %c0_13 = arith.constant 0 : index
    %27 = vector.load %arg3[%c0_11, %c0_12, %c0_13] : memref<2x32x96xf32, #tpu.memory_space<vmem>>, vector<1x32x96xf32>
    %28 = vector.shape_cast %27 : vector<1x32x96xf32> to vector<32x96xf32>
    %cst_14 = arith.constant dense<0.000000e+00> : vector<16x96xf32>
    %29 = tpu.matmul %26, %28, %cst_14 {dimension_numbers = #tpu.dot_dimension_numbers<[1], [0], [0], [1], [0, 0, 1, 1], [], []>} : vector<16x32xf32>, vector<32x96xf32>, vector<16x96xf32> -> vector<16x96xf32>
    %30 = vector.extract_strided_slice %29 {offsets = [0, 0], sizes = [16, 32], strides = [1, 1]} : vector<16x96xf32> to vector<16x32xf32>
    %31 = vector.extract_strided_slice %30 {offsets = [0, 0], sizes = [8, 8], strides = [1, 1]} : vector<16x32xf32> to vector<8x8xf32>
    %32 = vector.extract_strided_slice %30 {offsets = [0, 8], sizes = [8, 8], strides = [1, 1]} : vector<16x32xf32> to vector<8x8xf32>
    %33 = vector.extract_strided_slice %30 {offsets = [0, 16], sizes = [8, 8], strides = [1, 1]} : vector<16x32xf32> to vector<8x8xf32>
    %34 = vector.extract_strided_slice %30 {offsets = [0, 24], sizes = [8, 8], strides = [1, 1]} : vector<16x32xf32> to vector<8x8xf32>
    %35 = vector.extract_strided_slice %30 {offsets = [8, 0], sizes = [8, 8], strides = [1, 1]} : vector<16x32xf32> to vector<8x8xf32>
    %36 = vector.extract_strided_slice %30 {offsets = [8, 8], sizes = [8, 8], strides = [1, 1]} : vector<16x32xf32> to vector<8x8xf32>
    %37 = vector.extract_strided_slice %30 {offsets = [8, 16], sizes = [8, 8], strides = [1, 1]} : vector<16x32xf32> to vector<8x8xf32>
    %38 = vector.extract_strided_slice %30 {offsets = [8, 24], sizes = [8, 8], strides = [1, 1]} : vector<16x32xf32> to vector<8x8xf32>
    %39 = vector.shape_cast %31 : vector<8x8xf32> to vector<1x8x8xf32>
    %40 = vector.shape_cast %32 : vector<8x8xf32> to vector<1x8x8xf32>
    %41 = vector.shape_cast %33 : vector<8x8xf32> to vector<1x8x8xf32>
    %42 = vector.shape_cast %34 : vector<8x8xf32> to vector<1x8x8xf32>
    %43 = vector.shape_cast %35 : vector<8x8xf32> to vector<1x8x8xf32>
    %44 = vector.shape_cast %36 : vector<8x8xf32> to vector<1x8x8xf32>
    %45 = vector.shape_cast %37 : vector<8x8xf32> to vector<1x8x8xf32>
    %46 = vector.shape_cast %38 : vector<8x8xf32> to vector<1x8x8xf32>
    %47 = tpu.concatenate %39, %40, %41, %42, %43, %44, %45, %46 in 0 : vector<1x8x8xf32>, vector<1x8x8xf32>, vector<1x8x8xf32>, vector<1x8x8xf32>, vector<1x8x8xf32>, vector<1x8x8xf32>, vector<1x8x8xf32>, vector<1x8x8xf32> -> vector<8x8x8xf32>
    %48 = vector.extract_strided_slice %29 {offsets = [0, 32], sizes = [16, 32], strides = [1, 1]} : vector<16x96xf32> to vector<16x32xf32>
    %49 = vector.extract_strided_slice %48 {offsets = [0, 0], sizes = [8, 8], strides = [1, 1]} : vector<16x32xf32> to vector<8x8xf32>
    %50 = vector.extract_strided_slice %48 {offsets = [0, 8], sizes = [8, 8], strides = [1, 1]} : vector<16x32xf32> to vector<8x8xf32>
    %51 = vector.extract_strided_slice %48 {offsets = [0, 16], sizes = [8, 8], strides = [1, 1]} : vector<16x32xf32> to vector<8x8xf32>
    %52 = vector.extract_strided_slice %48 {offsets = [0, 24], sizes = [8, 8], strides = [1, 1]} : vector<16x32xf32> to vector<8x8xf32>
    %53 = vector.extract_strided_slice %48 {offsets = [8, 0], sizes = [8, 8], strides = [1, 1]} : vector<16x32xf32> to vector<8x8xf32>
    %54 = vector.extract_strided_slice %48 {offsets = [8, 8], sizes = [8, 8], strides = [1, 1]} : vector<16x32xf32> to vector<8x8xf32>
    %55 = vector.extract_strided_slice %48 {offsets = [8, 16], sizes = [8, 8], strides = [1, 1]} : vector<16x32xf32> to vector<8x8xf32>
    %56 = vector.extract_strided_slice %48 {offsets = [8, 24], sizes = [8, 8], strides = [1, 1]} : vector<16x32xf32> to vector<8x8xf32>
    %57 = vector.shape_cast %49 : vector<8x8xf32> to vector<1x8x8xf32>
    %58 = vector.shape_cast %50 : vector<8x8xf32> to vector<1x8x8xf32>
    %59 = vector.shape_cast %51 : vector<8x8xf32> to vector<1x8x8xf32>
    %60 = vector.shape_cast %52 : vector<8x8xf32> to vector<1x8x8xf32>
    %61 = vector.shape_cast %53 : vector<8x8xf32> to vector<1x8x8xf32>
    %62 = vector.shape_cast %54 : vector<8x8xf32> to vector<1x8x8xf32>
    %63 = vector.shape_cast %55 : vector<8x8xf32> to vector<1x8x8xf32>
    %64 = vector.shape_cast %56 : vector<8x8xf32> to vector<1x8x8xf32>
    %65 = tpu.concatenate %57, %58, %59, %60, %61, %62, %63, %64 in 0 : vector<1x8x8xf32>, vector<1x8x8xf32>, vector<1x8x8xf32>, vector<1x8x8xf32>, vector<1x8x8xf32>, vector<1x8x8xf32>, vector<1x8x8xf32>, vector<1x8x8xf32> -> vector<8x8x8xf32>
    %66 = vector.extract_strided_slice %29 {offsets = [0, 64], sizes = [16, 32], strides = [1, 1]} : vector<16x96xf32> to vector<16x32xf32>
    %67 = vector.extract_strided_slice %66 {offsets = [0, 0], sizes = [8, 8], strides = [1, 1]} : vector<16x32xf32> to vector<8x8xf32>
    %68 = vector.extract_strided_slice %66 {offsets = [0, 8], sizes = [8, 8], strides = [1, 1]} : vector<16x32xf32> to vector<8x8xf32>
    %69 = vector.extract_strided_slice %66 {offsets = [0, 16], sizes = [8, 8], strides = [1, 1]} : vector<16x32xf32> to vector<8x8xf32>
    %70 = vector.extract_strided_slice %66 {offsets = [0, 24], sizes = [8, 8], strides = [1, 1]} : vector<16x32xf32> to vector<8x8xf32>
    %71 = vector.extract_strided_slice %66 {offsets = [8, 0], sizes = [8, 8], strides = [1, 1]} : vector<16x32xf32> to vector<8x8xf32>
    %72 = vector.extract_strided_slice %66 {offsets = [8, 8], sizes = [8, 8], strides = [1, 1]} : vector<16x32xf32> to vector<8x8xf32>
    %73 = vector.extract_strided_slice %66 {offsets = [8, 16], sizes = [8, 8], strides = [1, 1]} : vector<16x32xf32> to vector<8x8xf32>
    %74 = vector.extract_strided_slice %66 {offsets = [8, 24], sizes = [8, 8], strides = [1, 1]} : vector<16x32xf32> to vector<8x8xf32>
    %75 = vector.shape_cast %67 : vector<8x8xf32> to vector<1x8x8xf32>
    %76 = vector.shape_cast %68 : vector<8x8xf32> to vector<1x8x8xf32>
    %77 = vector.shape_cast %69 : vector<8x8xf32> to vector<1x8x8xf32>
    %78 = vector.shape_cast %70 : vector<8x8xf32> to vector<1x8x8xf32>
    %79 = vector.shape_cast %71 : vector<8x8xf32> to vector<1x8x8xf32>
    %80 = vector.shape_cast %72 : vector<8x8xf32> to vector<1x8x8xf32>
    %81 = vector.shape_cast %73 : vector<8x8xf32> to vector<1x8x8xf32>
    %82 = vector.shape_cast %74 : vector<8x8xf32> to vector<1x8x8xf32>
    %83 = tpu.concatenate %75, %76, %77, %78, %79, %80, %81, %82 in 0 : vector<1x8x8xf32>, vector<1x8x8xf32>, vector<1x8x8xf32>, vector<1x8x8xf32>, vector<1x8x8xf32>, vector<1x8x8xf32>, vector<1x8x8xf32>, vector<1x8x8xf32> -> vector<8x8x8xf32>
    "tpu.trace_start"() <{level = 10 : i32, message = "znd,zmd->znm"}> : () -> ()
    %cst_15 = arith.constant dense<0.000000e+00> : vector<8x8x8xf32>
    %84 = tpu.matmul %47, %65, %cst_15 {dimension_numbers = #tpu.dot_dimension_numbers<[2], [2], [1], [1], [0, 0, 0, 1, 1, 1], [0], [0]>} : vector<8x8x8xf32>, vector<8x8x8xf32>, vector<8x8x8xf32> -> vector<8x8x8xf32>
    "tpu.trace_stop"() : () -> ()
    %cst_16 = arith.constant 0.353553385 : f32
    %85 = vector.broadcast %cst_16 : f32 to vector<8x8x8xf32>
    %86 = arith.mulf %84, %85 : vector<8x8x8xf32>
    %cst_17 = arith.constant dense<0xFF800000> : vector<8x8xf32>
    %87 = vector.multi_reduction <maximumf>, %86, %cst_17 [2] : vector<8x8x8xf32> to vector<8x8xf32>
    %88 = vector.shape_cast %87 : vector<8x8xf32> to vector<8x8x1xf32>
    %89 = vector.broadcast %88 : vector<8x8x1xf32> to vector<8x8x8xf32>
    %90 = arith.subf %86, %89 : vector<8x8x8xf32>
    %91 = math.exp %90 : vector<8x8x8xf32>
    %cst_18 = arith.constant dense<0.000000e+00> : vector<8x8xf32>
    %92 = vector.multi_reduction <add>, %91, %cst_18 [2] : vector<8x8x8xf32> to vector<8x8xf32>
    %93 = vector.shape_cast %92 : vector<8x8xf32> to vector<8x8x1xf32>
    %94 = tpu.reciprocal %93 {approx = true} : vector<8x8x1xf32> -> vector<8x8x1xf32>
    %95 = vector.broadcast %94 : vector<8x8x1xf32> to vector<8x8x8xf32>
    %96 = arith.mulf %91, %95 : vector<8x8x8xf32>
    "tpu.trace_start"() <{level = 10 : i32, message = "znm,zmd->znd"}> : () -> ()
    %cst_19 = arith.constant dense<0.000000e+00> : vector<8x8x8xf32>
    %97 = tpu.matmul %96, %83, %cst_19 {dimension_numbers = #tpu.dot_dimension_numbers<[2], [1], [1], [2], [0, 0, 0, 1, 1, 2], [0], [0]>} : vector<8x8x8xf32>, vector<8x8x8xf32>, vector<8x8x8xf32> -> vector<8x8x8xf32>
    "tpu.trace_stop"() : () -> ()
    %98 = vector.extract_strided_slice %97 {offsets = [0, 0, 0], sizes = [1, 8, 8], strides = [1, 1, 1]} : vector<8x8x8xf32> to vector<1x8x8xf32>
    %99 = vector.shape_cast %98 : vector<1x8x8xf32> to vector<8x8xf32>
    %100 = vector.extract_strided_slice %97 {offsets = [1, 0, 0], sizes = [1, 8, 8], strides = [1, 1, 1]} : vector<8x8x8xf32> to vector<1x8x8xf32>
    %101 = vector.shape_cast %100 : vector<1x8x8xf32> to vector<8x8xf32>
    %102 = vector.extract_strided_slice %97 {offsets = [2, 0, 0], sizes = [1, 8, 8], strides = [1, 1, 1]} : vector<8x8x8xf32> to vector<1x8x8xf32>
    %103 = vector.shape_cast %102 : vector<1x8x8xf32> to vector<8x8xf32>
    %104 = vector.extract_strided_slice %97 {offsets = [3, 0, 0], sizes = [1, 8, 8], strides = [1, 1, 1]} : vector<8x8x8xf32> to vector<1x8x8xf32>
    %105 = vector.shape_cast %104 : vector<1x8x8xf32> to vector<8x8xf32>
    %106 = tpu.concatenate %99, %101, %103, %105 in 1 : vector<8x8xf32>, vector<8x8xf32>, vector<8x8xf32>, vector<8x8xf32> -> vector<8x32xf32>
    %107 = vector.extract_strided_slice %97 {offsets = [4, 0, 0], sizes = [1, 8, 8], strides = [1, 1, 1]} : vector<8x8x8xf32> to vector<1x8x8xf32>
    %108 = vector.shape_cast %107 : vector<1x8x8xf32> to vector<8x8xf32>
    %109 = vector.extract_strided_slice %97 {offsets = [5, 0, 0], sizes = [1, 8, 8], strides = [1, 1, 1]} : vector<8x8x8xf32> to vector<1x8x8xf32>
    %110 = vector.shape_cast %109 : vector<1x8x8xf32> to vector<8x8xf32>
    %111 = vector.extract_strided_slice %97 {offsets = [6, 0, 0], sizes = [1, 8, 8], strides = [1, 1, 1]} : vector<8x8x8xf32> to vector<1x8x8xf32>
    %112 = vector.shape_cast %111 : vector<1x8x8xf32> to vector<8x8xf32>
    %113 = vector.extract_strided_slice %97 {offsets = [7, 0, 0], sizes = [1, 8, 8], strides = [1, 1, 1]} : vector<8x8x8xf32> to vector<1x8x8xf32>
    %114 = vector.shape_cast %113 : vector<1x8x8xf32> to vector<8x8xf32>
    %115 = tpu.concatenate %108, %110, %112, %114 in 1 : vector<8x8xf32>, vector<8x8xf32>, vector<8x8xf32>, vector<8x8xf32> -> vector<8x32xf32>
    %116 = tpu.concatenate %106, %115 in 0 : vector<8x32xf32>, vector<8x32xf32> -> vector<16x32xf32>
    %c0_20 = arith.constant 0 : index
    %c0_21 = arith.constant 0 : index
    %c0_22 = arith.constant 0 : index
    %117 = vector.load %arg4[%c0_20, %c0_21, %c0_22] : memref<2x32x32xf32, #tpu.memory_space<vmem>>, vector<1x32x32xf32>
    %118 = vector.shape_cast %117 : vector<1x32x32xf32> to vector<32x32xf32>
    %cst_23 = arith.constant dense<0.000000e+00> : vector<16x32xf32>
    %119 = tpu.matmul %116, %118, %cst_23 {dimension_numbers = #tpu.dot_dimension_numbers<[1], [0], [0], [1], [0, 0, 1, 1], [], []>} : vector<16x32xf32>, vector<32x32xf32>, vector<16x32xf32> -> vector<16x32xf32>
    %c0_24 = arith.constant 0 : index
    %c0_25 = arith.constant 0 : index
    %c0_26 = arith.constant 0 : index
    %120 = vector.load %arg5[%c0_24, %c0_25, %c0_26] : memref<2x1x32xf32, #tpu.memory_space<vmem>>, vector<1x1x32xf32>
    %121 = vector.shape_cast %120 : vector<1x1x32xf32> to vector<1x32xf32>
    %122 = vector.broadcast %121 : vector<1x32xf32> to vector<16x32xf32>
    %123 = arith.addf %119, %122 : vector<16x32xf32>
    %124 = arith.addf %123, %0 : vector<16x32xf32>
    %c0_27 = arith.constant 0 : index
    %c0_28 = arith.constant 0 : index
    %c0_29 = arith.constant 0 : index
    %125 = vector.load %arg6[%c0_27, %c0_28, %c0_29] : memref<2x1x32xf32, #tpu.memory_space<vmem>>, vector<1x1x32xf32>
    %126 = vector.shape_cast %125 : vector<1x1x32xf32> to vector<1x32xf32>
    %c0_30 = arith.constant 0 : index
    %c0_31 = arith.constant 0 : index
    %c0_32 = arith.constant 0 : index
    %127 = vector.load %arg7[%c0_30, %c0_31, %c0_32] : memref<2x1x32xf32, #tpu.memory_space<vmem>>, vector<1x1x32xf32>
    %128 = vector.shape_cast %127 : vector<1x1x32xf32> to vector<1x32xf32>
    %cst_33 = arith.constant dense<0.000000e+00> : vector<16xf32>
    %129 = vector.multi_reduction <add>, %124, %cst_33 [1] : vector<16x32xf32> to vector<16xf32>
    %130 = vector.shape_cast %129 : vector<16xf32> to vector<16x1xf32>
    %cst_34 = arith.constant 3.200000e+01 : f32
    %131 = vector.broadcast %cst_34 : f32 to vector<16x1xf32>
    %132 = arith.divf %130, %131 : vector<16x1xf32>
    %133 = arith.mulf %124, %124 : vector<16x32xf32>
    %cst_35 = arith.constant dense<0.000000e+00> : vector<16xf32>
    %134 = vector.multi_reduction <add>, %133, %cst_35 [1] : vector<16x32xf32> to vector<16xf32>
    %135 = vector.shape_cast %134 : vector<16xf32> to vector<16x1xf32>
    %cst_36 = arith.constant 3.200000e+01 : f32
    %136 = vector.broadcast %cst_36 : f32 to vector<16x1xf32>
    %137 = arith.divf %135, %136 : vector<16x1xf32>
    %138 = arith.mulf %132, %132 : vector<16x1xf32>
    %139 = arith.subf %137, %138 : vector<16x1xf32>
    %140 = vector.broadcast %132 : vector<16x1xf32> to vector<16x32xf32>
    %141 = arith.subf %124, %140 : vector<16x32xf32>
    %cst_37 = arith.constant 9.99999974E-6 : f32
    %142 = vector.broadcast %cst_37 : f32 to vector<16x1xf32>
    %143 = arith.addf %139, %142 : vector<16x1xf32>
    %144 = math.rsqrt %143 : vector<16x1xf32>
    %145 = vector.broadcast %144 : vector<16x1xf32> to vector<16x32xf32>
    %146 = arith.mulf %141, %145 : vector<16x32xf32>
    %147 = vector.broadcast %126 : vector<1x32xf32> to vector<16x32xf32>
    %148 = arith.mulf %146, %147 : vector<16x32xf32>
    %149 = vector.broadcast %128 : vector<1x32xf32> to vector<16x32xf32>
    %150 = arith.addf %148, %149 : vector<16x32xf32>
    %c0_38 = arith.constant 0 : index
    %c0_39 = arith.constant 0 : index
    %c0_40 = arith.constant 0 : index
    %151 = vector.load %arg8[%c0_38, %c0_39, %c0_40] : memref<2x32x64xf32, #tpu.memory_space<vmem>>, vector<1x32x64xf32>
    %152 = vector.shape_cast %151 : vector<1x32x64xf32> to vector<32x64xf32>
    %cst_41 = arith.constant dense<0.000000e+00> : vector<16x64xf32>
    %153 = tpu.matmul %150, %152, %cst_41 {dimension_numbers = #tpu.dot_dimension_numbers<[1], [0], [0], [1], [0, 0, 1, 1], [], []>} : vector<16x32xf32>, vector<32x64xf32>, vector<16x64xf32> -> vector<16x64xf32>
    %c0_42 = arith.constant 0 : index
    %c0_43 = arith.constant 0 : index
    %c0_44 = arith.constant 0 : index
    %154 = vector.load %arg9[%c0_42, %c0_43, %c0_44] : memref<2x1x64xf32, #tpu.memory_space<vmem>>, vector<1x1x64xf32>
    %155 = vector.shape_cast %154 : vector<1x1x64xf32> to vector<1x64xf32>
    %156 = vector.broadcast %155 : vector<1x64xf32> to vector<16x64xf32>
    %157 = arith.addf %153, %156 : vector<16x64xf32>
    %cst_45 = arith.constant 5.000000e-01 : f32
    %158 = vector.broadcast %cst_45 : f32 to vector<16x64xf32>
    %159 = arith.mulf %158, %157 : vector<16x64xf32>
    %cst_46 = arith.constant 0.707106769 : f32
    %160 = vector.broadcast %cst_46 : f32 to vector<16x64xf32>
    %161 = arith.mulf %157, %160 : vector<16x64xf32>
    %cst_47 = arith.constant 0.000000e+00 : f32
    %162 = vector.broadcast %cst_47 : f32 to vector<16x64xf32>
    %163 = arith.cmpf oge, %161, %162 : vector<16x64xf32>
    %cst_48 = arith.constant 1.000000e+00 : f32
    %cst_49 = arith.constant -1.000000e+00 : f32
    %164 = vector.broadcast %cst_48 : f32 to vector<16x64xf32>
    %165 = vector.broadcast %cst_49 : f32 to vector<16x64xf32>
    %166 = arith.select %163, %164, %165 : vector<16x64xi1>, vector<16x64xf32>
    %167 = math.absf %161 : vector<16x64xf32>
    %cst_50 = arith.constant 0.327591091 : f32
    %168 = vector.broadcast %cst_50 : f32 to vector<16x64xf32>
    %169 = arith.mulf %168, %167 : vector<16x64xf32>
    %cst_51 = arith.constant 1.000000e+00 : f32
    %170 = vector.broadcast %cst_51 : f32 to vector<16x64xf32>
    %171 = arith.addf %170, %169 : vector<16x64xf32>
    %172 = tpu.reciprocal %171 {approx = true} : vector<16x64xf32> -> vector<16x64xf32>
    %cst_52 = arith.constant 1.06140542 : f32
    %173 = vector.broadcast %cst_52 : f32 to vector<16x64xf32>
    %174 = arith.mulf %173, %172 : vector<16x64xf32>
    %cst_53 = arith.constant -1.45315206 : f32
    %175 = vector.broadcast %cst_53 : f32 to vector<16x64xf32>
    %176 = arith.addf %174, %175 : vector<16x64xf32>
    %177 = arith.mulf %176, %172 : vector<16x64xf32>
    %cst_54 = arith.constant 1.42141378 : f32
    %178 = vector.broadcast %cst_54 : f32 to vector<16x64xf32>
    %179 = arith.addf %177, %178 : vector<16x64xf32>
    %180 = arith.mulf %179, %172 : vector<16x64xf32>
    %cst_55 = arith.constant -0.284496725 : f32
    %181 = vector.broadcast %cst_55 : f32 to vector<16x64xf32>
    %182 = arith.addf %180, %181 : vector<16x64xf32>
    %183 = arith.mulf %182, %172 : vector<16x64xf32>
    %cst_56 = arith.constant 0.254829586 : f32
    %184 = vector.broadcast %cst_56 : f32 to vector<16x64xf32>
    %185 = arith.addf %183, %184 : vector<16x64xf32>
    %186 = arith.mulf %185, %172 : vector<16x64xf32>
    %cst_57 = arith.constant 0.000000e+00 : f32
    %187 = vector.broadcast %cst_57 : f32 to vector<16x64xf32>
    %188 = arith.subf %187, %167 : vector<16x64xf32>
    %189 = arith.mulf %188, %167 : vector<16x64xf32>
    %190 = math.exp %189 : vector<16x64xf32>
    %191 = arith.mulf %186, %190 : vector<16x64xf32>
    %cst_58 = arith.constant 1.000000e+00 : f32
    %192 = vector.broadcast %cst_58 : f32 to vector<16x64xf32>
    %193 = arith.subf %192, %191 : vector<16x64xf32>
    %194 = arith.mulf %166, %193 : vector<16x64xf32>
    %cst_59 = arith.constant 1.000000e+00 : f32
    %195 = vector.broadcast %cst_59 : f32 to vector<16x64xf32>
    %196 = arith.addf %195, %194 : vector<16x64xf32>
    %197 = arith.mulf %159, %196 : vector<16x64xf32>
    %c0_60 = arith.constant 0 : index
    %c0_61 = arith.constant 0 : index
    %c0_62 = arith.constant 0 : index
    %198 = vector.load %arg10[%c0_60, %c0_61, %c0_62] : memref<2x64x32xf32, #tpu.memory_space<vmem>>, vector<1x64x32xf32>
    %199 = vector.shape_cast %198 : vector<1x64x32xf32> to vector<64x32xf32>
    %cst_63 = arith.constant dense<0.000000e+00> : vector<16x32xf32>
    %200 = tpu.matmul %197, %199, %cst_63 {dimension_numbers = #tpu.dot_dimension_numbers<[1], [0], [0], [1], [0, 0, 1, 1], [], []>} : vector<16x64xf32>, vector<64x32xf32>, vector<16x32xf32> -> vector<16x32xf32>
    %c0_64 = arith.constant 0 : index
    %c0_65 = arith.constant 0 : index
    %c0_66 = arith.constant 0 : index
    %201 = vector.load %arg11[%c0_64, %c0_65, %c0_66] : memref<2x1x32xf32, #tpu.memory_space<vmem>>, vector<1x1x32xf32>
    %202 = vector.shape_cast %201 : vector<1x1x32xf32> to vector<1x32xf32>
    %203 = vector.broadcast %202 : vector<1x32xf32> to vector<16x32xf32>
    %204 = arith.addf %200, %203 : vector<16x32xf32>
    %205 = arith.addf %204, %124 : vector<16x32xf32>
    %c1 = arith.constant 1 : index
    %c0_67 = arith.constant 0 : index
    %c0_68 = arith.constant 0 : index
    %206 = vector.load %arg1[%c1, %c0_67, %c0_68] : memref<2x1x32xf32, #tpu.memory_space<vmem>>, vector<1x1x32xf32>
    %207 = vector.shape_cast %206 : vector<1x1x32xf32> to vector<1x32xf32>
    %c1_69 = arith.constant 1 : index
    %c0_70 = arith.constant 0 : index
    %c0_71 = arith.constant 0 : index
    %208 = vector.load %arg2[%c1_69, %c0_70, %c0_71] : memref<2x1x32xf32, #tpu.memory_space<vmem>>, vector<1x1x32xf32>
    %209 = vector.shape_cast %208 : vector<1x1x32xf32> to vector<1x32xf32>
    %cst_72 = arith.constant dense<0.000000e+00> : vector<16xf32>
    %210 = vector.multi_reduction <add>, %205, %cst_72 [1] : vector<16x32xf32> to vector<16xf32>
    %211 = vector.shape_cast %210 : vector<16xf32> to vector<16x1xf32>
    %cst_73 = arith.constant 3.200000e+01 : f32
    %212 = vector.broadcast %cst_73 : f32 to vector<16x1xf32>
    %213 = arith.divf %211, %212 : vector<16x1xf32>
    %214 = arith.mulf %205, %205 : vector<16x32xf32>
    %cst_74 = arith.constant dense<0.000000e+00> : vector<16xf32>
    %215 = vector.multi_reduction <add>, %214, %cst_74 [1] : vector<16x32xf32> to vector<16xf32>
    %216 = vector.shape_cast %215 : vector<16xf32> to vector<16x1xf32>
    %cst_75 = arith.constant 3.200000e+01 : f32
    %217 = vector.broadcast %cst_75 : f32 to vector<16x1xf32>
    %218 = arith.divf %216, %217 : vector<16x1xf32>
    %219 = arith.mulf %213, %213 : vector<16x1xf32>
    %220 = arith.subf %218, %219 : vector<16x1xf32>
    %221 = vector.broadcast %213 : vector<16x1xf32> to vector<16x32xf32>
    %222 = arith.subf %205, %221 : vector<16x32xf32>
    %cst_76 = arith.constant 9.99999974E-6 : f32
    %223 = vector.broadcast %cst_76 : f32 to vector<16x1xf32>
    %224 = arith.addf %220, %223 : vector<16x1xf32>
    %225 = math.rsqrt %224 : vector<16x1xf32>
    %226 = vector.broadcast %225 : vector<16x1xf32> to vector<16x32xf32>
    %227 = arith.mulf %222, %226 : vector<16x32xf32>
    %228 = vector.broadcast %207 : vector<1x32xf32> to vector<16x32xf32>
    %229 = arith.mulf %227, %228 : vector<16x32xf32>
    %230 = vector.broadcast %209 : vector<1x32xf32> to vector<16x32xf32>
    %231 = arith.addf %229, %230 : vector<16x32xf32>
    %c1_77 = arith.constant 1 : index
    %c0_78 = arith.constant 0 : index
    %c0_79 = arith.constant 0 : index
    %232 = vector.load %arg3[%c1_77, %c0_78, %c0_79] : memref<2x32x96xf32, #tpu.memory_space<vmem>>, vector<1x32x96xf32>
    %233 = vector.shape_cast %232 : vector<1x32x96xf32> to vector<32x96xf32>
    %cst_80 = arith.constant dense<0.000000e+00> : vector<16x96xf32>
    %234 = tpu.matmul %231, %233, %cst_80 {dimension_numbers = #tpu.dot_dimension_numbers<[1], [0], [0], [1], [0, 0, 1, 1], [], []>} : vector<16x32xf32>, vector<32x96xf32>, vector<16x96xf32> -> vector<16x96xf32>
    %235 = vector.extract_strided_slice %234 {offsets = [0, 0], sizes = [16, 32], strides = [1, 1]} : vector<16x96xf32> to vector<16x32xf32>
    %236 = vector.extract_strided_slice %235 {offsets = [0, 0], sizes = [8, 8], strides = [1, 1]} : vector<16x32xf32> to vector<8x8xf32>
    %237 = vector.extract_strided_slice %235 {offsets = [0, 8], sizes = [8, 8], strides = [1, 1]} : vector<16x32xf32> to vector<8x8xf32>
    %238 = vector.extract_strided_slice %235 {offsets = [0, 16], sizes = [8, 8], strides = [1, 1]} : vector<16x32xf32> to vector<8x8xf32>
    %239 = vector.extract_strided_slice %235 {offsets = [0, 24], sizes = [8, 8], strides = [1, 1]} : vector<16x32xf32> to vector<8x8xf32>
    %240 = vector.extract_strided_slice %235 {offsets = [8, 0], sizes = [8, 8], strides = [1, 1]} : vector<16x32xf32> to vector<8x8xf32>
    %241 = vector.extract_strided_slice %235 {offsets = [8, 8], sizes = [8, 8], strides = [1, 1]} : vector<16x32xf32> to vector<8x8xf32>
    %242 = vector.extract_strided_slice %235 {offsets = [8, 16], sizes = [8, 8], strides = [1, 1]} : vector<16x32xf32> to vector<8x8xf32>
    %243 = vector.extract_strided_slice %235 {offsets = [8, 24], sizes = [8, 8], strides = [1, 1]} : vector<16x32xf32> to vector<8x8xf32>
    %244 = vector.shape_cast %236 : vector<8x8xf32> to vector<1x8x8xf32>
    %245 = vector.shape_cast %237 : vector<8x8xf32> to vector<1x8x8xf32>
    %246 = vector.shape_cast %238 : vector<8x8xf32> to vector<1x8x8xf32>
    %247 = vector.shape_cast %239 : vector<8x8xf32> to vector<1x8x8xf32>
    %248 = vector.shape_cast %240 : vector<8x8xf32> to vector<1x8x8xf32>
    %249 = vector.shape_cast %241 : vector<8x8xf32> to vector<1x8x8xf32>
    %250 = vector.shape_cast %242 : vector<8x8xf32> to vector<1x8x8xf32>
    %251 = vector.shape_cast %243 : vector<8x8xf32> to vector<1x8x8xf32>
    %252 = tpu.concatenate %244, %245, %246, %247, %248, %249, %250, %251 in 0 : vector<1x8x8xf32>, vector<1x8x8xf32>, vector<1x8x8xf32>, vector<1x8x8xf32>, vector<1x8x8xf32>, vector<1x8x8xf32>, vector<1x8x8xf32>, vector<1x8x8xf32> -> vector<8x8x8xf32>
    %253 = vector.extract_strided_slice %234 {offsets = [0, 32], sizes = [16, 32], strides = [1, 1]} : vector<16x96xf32> to vector<16x32xf32>
    %254 = vector.extract_strided_slice %253 {offsets = [0, 0], sizes = [8, 8], strides = [1, 1]} : vector<16x32xf32> to vector<8x8xf32>
    %255 = vector.extract_strided_slice %253 {offsets = [0, 8], sizes = [8, 8], strides = [1, 1]} : vector<16x32xf32> to vector<8x8xf32>
    %256 = vector.extract_strided_slice %253 {offsets = [0, 16], sizes = [8, 8], strides = [1, 1]} : vector<16x32xf32> to vector<8x8xf32>
    %257 = vector.extract_strided_slice %253 {offsets = [0, 24], sizes = [8, 8], strides = [1, 1]} : vector<16x32xf32> to vector<8x8xf32>
    %258 = vector.extract_strided_slice %253 {offsets = [8, 0], sizes = [8, 8], strides = [1, 1]} : vector<16x32xf32> to vector<8x8xf32>
    %259 = vector.extract_strided_slice %253 {offsets = [8, 8], sizes = [8, 8], strides = [1, 1]} : vector<16x32xf32> to vector<8x8xf32>
    %260 = vector.extract_strided_slice %253 {offsets = [8, 16], sizes = [8, 8], strides = [1, 1]} : vector<16x32xf32> to vector<8x8xf32>
    %261 = vector.extract_strided_slice %253 {offsets = [8, 24], sizes = [8, 8], strides = [1, 1]} : vector<16x32xf32> to vector<8x8xf32>
    %262 = vector.shape_cast %254 : vector<8x8xf32> to vector<1x8x8xf32>
    %263 = vector.shape_cast %255 : vector<8x8xf32> to vector<1x8x8xf32>
    %264 = vector.shape_cast %256 : vector<8x8xf32> to vector<1x8x8xf32>
    %265 = vector.shape_cast %257 : vector<8x8xf32> to vector<1x8x8xf32>
    %266 = vector.shape_cast %258 : vector<8x8xf32> to vector<1x8x8xf32>
    %267 = vector.shape_cast %259 : vector<8x8xf32> to vector<1x8x8xf32>
    %268 = vector.shape_cast %260 : vector<8x8xf32> to vector<1x8x8xf32>
    %269 = vector.shape_cast %261 : vector<8x8xf32> to vector<1x8x8xf32>
    %270 = tpu.concatenate %262, %263, %264, %265, %266, %267, %268, %269 in 0 : vector<1x8x8xf32>, vector<1x8x8xf32>, vector<1x8x8xf32>, vector<1x8x8xf32>, vector<1x8x8xf32>, vector<1x8x8xf32>, vector<1x8x8xf32>, vector<1x8x8xf32> -> vector<8x8x8xf32>
    %271 = vector.extract_strided_slice %234 {offsets = [0, 64], sizes = [16, 32], strides = [1, 1]} : vector<16x96xf32> to vector<16x32xf32>
    %272 = vector.extract_strided_slice %271 {offsets = [0, 0], sizes = [8, 8], strides = [1, 1]} : vector<16x32xf32> to vector<8x8xf32>
    %273 = vector.extract_strided_slice %271 {offsets = [0, 8], sizes = [8, 8], strides = [1, 1]} : vector<16x32xf32> to vector<8x8xf32>
    %274 = vector.extract_strided_slice %271 {offsets = [0, 16], sizes = [8, 8], strides = [1, 1]} : vector<16x32xf32> to vector<8x8xf32>
    %275 = vector.extract_strided_slice %271 {offsets = [0, 24], sizes = [8, 8], strides = [1, 1]} : vector<16x32xf32> to vector<8x8xf32>
    %276 = vector.extract_strided_slice %271 {offsets = [8, 0], sizes = [8, 8], strides = [1, 1]} : vector<16x32xf32> to vector<8x8xf32>
    %277 = vector.extract_strided_slice %271 {offsets = [8, 8], sizes = [8, 8], strides = [1, 1]} : vector<16x32xf32> to vector<8x8xf32>
    %278 = vector.extract_strided_slice %271 {offsets = [8, 16], sizes = [8, 8], strides = [1, 1]} : vector<16x32xf32> to vector<8x8xf32>
    %279 = vector.extract_strided_slice %271 {offsets = [8, 24], sizes = [8, 8], strides = [1, 1]} : vector<16x32xf32> to vector<8x8xf32>
    %280 = vector.shape_cast %272 : vector<8x8xf32> to vector<1x8x8xf32>
    %281 = vector.shape_cast %273 : vector<8x8xf32> to vector<1x8x8xf32>
    %282 = vector.shape_cast %274 : vector<8x8xf32> to vector<1x8x8xf32>
    %283 = vector.shape_cast %275 : vector<8x8xf32> to vector<1x8x8xf32>
    %284 = vector.shape_cast %276 : vector<8x8xf32> to vector<1x8x8xf32>
    %285 = vector.shape_cast %277 : vector<8x8xf32> to vector<1x8x8xf32>
    %286 = vector.shape_cast %278 : vector<8x8xf32> to vector<1x8x8xf32>
    %287 = vector.shape_cast %279 : vector<8x8xf32> to vector<1x8x8xf32>
    %288 = tpu.concatenate %280, %281, %282, %283, %284, %285, %286, %287 in 0 : vector<1x8x8xf32>, vector<1x8x8xf32>, vector<1x8x8xf32>, vector<1x8x8xf32>, vector<1x8x8xf32>, vector<1x8x8xf32>, vector<1x8x8xf32>, vector<1x8x8xf32> -> vector<8x8x8xf32>
    "tpu.trace_start"() <{level = 10 : i32, message = "znd,zmd->znm"}> : () -> ()
    %cst_81 = arith.constant dense<0.000000e+00> : vector<8x8x8xf32>
    %289 = tpu.matmul %252, %270, %cst_81 {dimension_numbers = #tpu.dot_dimension_numbers<[2], [2], [1], [1], [0, 0, 0, 1, 1, 1], [0], [0]>} : vector<8x8x8xf32>, vector<8x8x8xf32>, vector<8x8x8xf32> -> vector<8x8x8xf32>
    "tpu.trace_stop"() : () -> ()
    %cst_82 = arith.constant 0.353553385 : f32
    %290 = vector.broadcast %cst_82 : f32 to vector<8x8x8xf32>
    %291 = arith.mulf %289, %290 : vector<8x8x8xf32>
    %cst_83 = arith.constant dense<0xFF800000> : vector<8x8xf32>
    %292 = vector.multi_reduction <maximumf>, %291, %cst_83 [2] : vector<8x8x8xf32> to vector<8x8xf32>
    %293 = vector.shape_cast %292 : vector<8x8xf32> to vector<8x8x1xf32>
    %294 = vector.broadcast %293 : vector<8x8x1xf32> to vector<8x8x8xf32>
    %295 = arith.subf %291, %294 : vector<8x8x8xf32>
    %296 = math.exp %295 : vector<8x8x8xf32>
    %cst_84 = arith.constant dense<0.000000e+00> : vector<8x8xf32>
    %297 = vector.multi_reduction <add>, %296, %cst_84 [2] : vector<8x8x8xf32> to vector<8x8xf32>
    %298 = vector.shape_cast %297 : vector<8x8xf32> to vector<8x8x1xf32>
    %299 = tpu.reciprocal %298 {approx = true} : vector<8x8x1xf32> -> vector<8x8x1xf32>
    %300 = vector.broadcast %299 : vector<8x8x1xf32> to vector<8x8x8xf32>
    %301 = arith.mulf %296, %300 : vector<8x8x8xf32>
    "tpu.trace_start"() <{level = 10 : i32, message = "znm,zmd->znd"}> : () -> ()
    %cst_85 = arith.constant dense<0.000000e+00> : vector<8x8x8xf32>
    %302 = tpu.matmul %301, %288, %cst_85 {dimension_numbers = #tpu.dot_dimension_numbers<[2], [1], [1], [2], [0, 0, 0, 1, 1, 2], [0], [0]>} : vector<8x8x8xf32>, vector<8x8x8xf32>, vector<8x8x8xf32> -> vector<8x8x8xf32>
    "tpu.trace_stop"() : () -> ()
    %303 = vector.extract_strided_slice %302 {offsets = [0, 0, 0], sizes = [1, 8, 8], strides = [1, 1, 1]} : vector<8x8x8xf32> to vector<1x8x8xf32>
    %304 = vector.shape_cast %303 : vector<1x8x8xf32> to vector<8x8xf32>
    %305 = vector.extract_strided_slice %302 {offsets = [1, 0, 0], sizes = [1, 8, 8], strides = [1, 1, 1]} : vector<8x8x8xf32> to vector<1x8x8xf32>
    %306 = vector.shape_cast %305 : vector<1x8x8xf32> to vector<8x8xf32>
    %307 = vector.extract_strided_slice %302 {offsets = [2, 0, 0], sizes = [1, 8, 8], strides = [1, 1, 1]} : vector<8x8x8xf32> to vector<1x8x8xf32>
    %308 = vector.shape_cast %307 : vector<1x8x8xf32> to vector<8x8xf32>
    %309 = vector.extract_strided_slice %302 {offsets = [3, 0, 0], sizes = [1, 8, 8], strides = [1, 1, 1]} : vector<8x8x8xf32> to vector<1x8x8xf32>
    %310 = vector.shape_cast %309 : vector<1x8x8xf32> to vector<8x8xf32>
    %311 = tpu.concatenate %304, %306, %308, %310 in 1 : vector<8x8xf32>, vector<8x8xf32>, vector<8x8xf32>, vector<8x8xf32> -> vector<8x32xf32>
    %312 = vector.extract_strided_slice %302 {offsets = [4, 0, 0], sizes = [1, 8, 8], strides = [1, 1, 1]} : vector<8x8x8xf32> to vector<1x8x8xf32>
    %313 = vector.shape_cast %312 : vector<1x8x8xf32> to vector<8x8xf32>
    %314 = vector.extract_strided_slice %302 {offsets = [5, 0, 0], sizes = [1, 8, 8], strides = [1, 1, 1]} : vector<8x8x8xf32> to vector<1x8x8xf32>
    %315 = vector.shape_cast %314 : vector<1x8x8xf32> to vector<8x8xf32>
    %316 = vector.extract_strided_slice %302 {offsets = [6, 0, 0], sizes = [1, 8, 8], strides = [1, 1, 1]} : vector<8x8x8xf32> to vector<1x8x8xf32>
    %317 = vector.shape_cast %316 : vector<1x8x8xf32> to vector<8x8xf32>
    %318 = vector.extract_strided_slice %302 {offsets = [7, 0, 0], sizes = [1, 8, 8], strides = [1, 1, 1]} : vector<8x8x8xf32> to vector<1x8x8xf32>
    %319 = vector.shape_cast %318 : vector<1x8x8xf32> to vector<8x8xf32>
    %320 = tpu.concatenate %313, %315, %317, %319 in 1 : vector<8x8xf32>, vector<8x8xf32>, vector<8x8xf32>, vector<8x8xf32> -> vector<8x32xf32>
    %321 = tpu.concatenate %311, %320 in 0 : vector<8x32xf32>, vector<8x32xf32> -> vector<16x32xf32>
    %c1_86 = arith.constant 1 : index
    %c0_87 = arith.constant 0 : index
    %c0_88 = arith.constant 0 : index
    %322 = vector.load %arg4[%c1_86, %c0_87, %c0_88] : memref<2x32x32xf32, #tpu.memory_space<vmem>>, vector<1x32x32xf32>
    %323 = vector.shape_cast %322 : vector<1x32x32xf32> to vector<32x32xf32>
    %cst_89 = arith.constant dense<0.000000e+00> : vector<16x32xf32>
    %324 = tpu.matmul %321, %323, %cst_89 {dimension_numbers = #tpu.dot_dimension_numbers<[1], [0], [0], [1], [0, 0, 1, 1], [], []>} : vector<16x32xf32>, vector<32x32xf32>, vector<16x32xf32> -> vector<16x32xf32>
    %c1_90 = arith.constant 1 : index
    %c0_91 = arith.constant 0 : index
    %c0_92 = arith.constant 0 : index
    %325 = vector.load %arg5[%c1_90, %c0_91, %c0_92] : memref<2x1x32xf32, #tpu.memory_space<vmem>>, vector<1x1x32xf32>
    %326 = vector.shape_cast %325 : vector<1x1x32xf32> to vector<1x32xf32>
    %327 = vector.broadcast %326 : vector<1x32xf32> to vector<16x32xf32>
    %328 = arith.addf %324, %327 : vector<16x32xf32>
    %329 = arith.addf %328, %205 : vector<16x32xf32>
    %c1_93 = arith.constant 1 : index
    %c0_94 = arith.constant 0 : index
    %c0_95 = arith.constant 0 : index
    %330 = vector.load %arg6[%c1_93, %c0_94, %c0_95] : memref<2x1x32xf32, #tpu.memory_space<vmem>>, vector<1x1x32xf32>
    %331 = vector.shape_cast %330 : vector<1x1x32xf32> to vector<1x32xf32>
    %c1_96 = arith.constant 1 : index
    %c0_97 = arith.constant 0 : index
    %c0_98 = arith.constant 0 : index
    %332 = vector.load %arg7[%c1_96, %c0_97, %c0_98] : memref<2x1x32xf32, #tpu.memory_space<vmem>>, vector<1x1x32xf32>
    %333 = vector.shape_cast %332 : vector<1x1x32xf32> to vector<1x32xf32>
    %cst_99 = arith.constant dense<0.000000e+00> : vector<16xf32>
    %334 = vector.multi_reduction <add>, %329, %cst_99 [1] : vector<16x32xf32> to vector<16xf32>
    %335 = vector.shape_cast %334 : vector<16xf32> to vector<16x1xf32>
    %cst_100 = arith.constant 3.200000e+01 : f32
    %336 = vector.broadcast %cst_100 : f32 to vector<16x1xf32>
    %337 = arith.divf %335, %336 : vector<16x1xf32>
    %338 = arith.mulf %329, %329 : vector<16x32xf32>
    %cst_101 = arith.constant dense<0.000000e+00> : vector<16xf32>
    %339 = vector.multi_reduction <add>, %338, %cst_101 [1] : vector<16x32xf32> to vector<16xf32>
    %340 = vector.shape_cast %339 : vector<16xf32> to vector<16x1xf32>
    %cst_102 = arith.constant 3.200000e+01 : f32
    %341 = vector.broadcast %cst_102 : f32 to vector<16x1xf32>
    %342 = arith.divf %340, %341 : vector<16x1xf32>
    %343 = arith.mulf %337, %337 : vector<16x1xf32>
    %344 = arith.subf %342, %343 : vector<16x1xf32>
    %345 = vector.broadcast %337 : vector<16x1xf32> to vector<16x32xf32>
    %346 = arith.subf %329, %345 : vector<16x32xf32>
    %cst_103 = arith.constant 9.99999974E-6 : f32
    %347 = vector.broadcast %cst_103 : f32 to vector<16x1xf32>
    %348 = arith.addf %344, %347 : vector<16x1xf32>
    %349 = math.rsqrt %348 : vector<16x1xf32>
    %350 = vector.broadcast %349 : vector<16x1xf32> to vector<16x32xf32>
    %351 = arith.mulf %346, %350 : vector<16x32xf32>
    %352 = vector.broadcast %331 : vector<1x32xf32> to vector<16x32xf32>
    %353 = arith.mulf %351, %352 : vector<16x32xf32>
    %354 = vector.broadcast %333 : vector<1x32xf32> to vector<16x32xf32>
    %355 = arith.addf %353, %354 : vector<16x32xf32>
    %c1_104 = arith.constant 1 : index
    %c0_105 = arith.constant 0 : index
    %c0_106 = arith.constant 0 : index
    %356 = vector.load %arg8[%c1_104, %c0_105, %c0_106] : memref<2x32x64xf32, #tpu.memory_space<vmem>>, vector<1x32x64xf32>
    %357 = vector.shape_cast %356 : vector<1x32x64xf32> to vector<32x64xf32>
    %cst_107 = arith.constant dense<0.000000e+00> : vector<16x64xf32>
    %358 = tpu.matmul %355, %357, %cst_107 {dimension_numbers = #tpu.dot_dimension_numbers<[1], [0], [0], [1], [0, 0, 1, 1], [], []>} : vector<16x32xf32>, vector<32x64xf32>, vector<16x64xf32> -> vector<16x64xf32>
    %c1_108 = arith.constant 1 : index
    %c0_109 = arith.constant 0 : index
    %c0_110 = arith.constant 0 : index
    %359 = vector.load %arg9[%c1_108, %c0_109, %c0_110] : memref<2x1x64xf32, #tpu.memory_space<vmem>>, vector<1x1x64xf32>
    %360 = vector.shape_cast %359 : vector<1x1x64xf32> to vector<1x64xf32>
    %361 = vector.broadcast %360 : vector<1x64xf32> to vector<16x64xf32>
    %362 = arith.addf %358, %361 : vector<16x64xf32>
    %cst_111 = arith.constant 5.000000e-01 : f32
    %363 = vector.broadcast %cst_111 : f32 to vector<16x64xf32>
    %364 = arith.mulf %363, %362 : vector<16x64xf32>
    %cst_112 = arith.constant 0.707106769 : f32
    %365 = vector.broadcast %cst_112 : f32 to vector<16x64xf32>
    %366 = arith.mulf %362, %365 : vector<16x64xf32>
    %cst_113 = arith.constant 0.000000e+00 : f32
    %367 = vector.broadcast %cst_113 : f32 to vector<16x64xf32>
    %368 = arith.cmpf oge, %366, %367 : vector<16x64xf32>
    %cst_114 = arith.constant 1.000000e+00 : f32
    %cst_115 = arith.constant -1.000000e+00 : f32
    %369 = vector.broadcast %cst_114 : f32 to vector<16x64xf32>
    %370 = vector.broadcast %cst_115 : f32 to vector<16x64xf32>
    %371 = arith.select %368, %369, %370 : vector<16x64xi1>, vector<16x64xf32>
    %372 = math.absf %366 : vector<16x64xf32>
    %cst_116 = arith.constant 0.327591091 : f32
    %373 = vector.broadcast %cst_116 : f32 to vector<16x64xf32>
    %374 = arith.mulf %373, %372 : vector<16x64xf32>
    %cst_117 = arith.constant 1.000000e+00 : f32
    %375 = vector.broadcast %cst_117 : f32 to vector<16x64xf32>
    %376 = arith.addf %375, %374 : vector<16x64xf32>
    %377 = tpu.reciprocal %376 {approx = true} : vector<16x64xf32> -> vector<16x64xf32>
    %cst_118 = arith.constant 1.06140542 : f32
    %378 = vector.broadcast %cst_118 : f32 to vector<16x64xf32>
    %379 = arith.mulf %378, %377 : vector<16x64xf32>
    %cst_119 = arith.constant -1.45315206 : f32
    %380 = vector.broadcast %cst_119 : f32 to vector<16x64xf32>
    %381 = arith.addf %379, %380 : vector<16x64xf32>
    %382 = arith.mulf %381, %377 : vector<16x64xf32>
    %cst_120 = arith.constant 1.42141378 : f32
    %383 = vector.broadcast %cst_120 : f32 to vector<16x64xf32>
    %384 = arith.addf %382, %383 : vector<16x64xf32>
    %385 = arith.mulf %384, %377 : vector<16x64xf32>
    %cst_121 = arith.constant -0.284496725 : f32
    %386 = vector.broadcast %cst_121 : f32 to vector<16x64xf32>
    %387 = arith.addf %385, %386 : vector<16x64xf32>
    %388 = arith.mulf %387, %377 : vector<16x64xf32>
    %cst_122 = arith.constant 0.254829586 : f32
    %389 = vector.broadcast %cst_122 : f32 to vector<16x64xf32>
    %390 = arith.addf %388, %389 : vector<16x64xf32>
    %391 = arith.mulf %390, %377 : vector<16x64xf32>
    %cst_123 = arith.constant 0.000000e+00 : f32
    %392 = vector.broadcast %cst_123 : f32 to vector<16x64xf32>
    %393 = arith.subf %392, %372 : vector<16x64xf32>
    %394 = arith.mulf %393, %372 : vector<16x64xf32>
    %395 = math.exp %394 : vector<16x64xf32>
    %396 = arith.mulf %391, %395 : vector<16x64xf32>
    %cst_124 = arith.constant 1.000000e+00 : f32
    %397 = vector.broadcast %cst_124 : f32 to vector<16x64xf32>
    %398 = arith.subf %397, %396 : vector<16x64xf32>
    %399 = arith.mulf %371, %398 : vector<16x64xf32>
    %cst_125 = arith.constant 1.000000e+00 : f32
    %400 = vector.broadcast %cst_125 : f32 to vector<16x64xf32>
    %401 = arith.addf %400, %399 : vector<16x64xf32>
    %402 = arith.mulf %364, %401 : vector<16x64xf32>
    %c1_126 = arith.constant 1 : index
    %c0_127 = arith.constant 0 : index
    %c0_128 = arith.constant 0 : index
    %403 = vector.load %arg10[%c1_126, %c0_127, %c0_128] : memref<2x64x32xf32, #tpu.memory_space<vmem>>, vector<1x64x32xf32>
    %404 = vector.shape_cast %403 : vector<1x64x32xf32> to vector<64x32xf32>
    %cst_129 = arith.constant dense<0.000000e+00> : vector<16x32xf32>
    %405 = tpu.matmul %402, %404, %cst_129 {dimension_numbers = #tpu.dot_dimension_numbers<[1], [0], [0], [1], [0, 0, 1, 1], [], []>} : vector<16x64xf32>, vector<64x32xf32>, vector<16x32xf32> -> vector<16x32xf32>
    %c1_130 = arith.constant 1 : index
    %c0_131 = arith.constant 0 : index
    %c0_132 = arith.constant 0 : index
    %406 = vector.load %arg11[%c1_130, %c0_131, %c0_132] : memref<2x1x32xf32, #tpu.memory_space<vmem>>, vector<1x1x32xf32>
    %407 = vector.shape_cast %406 : vector<1x1x32xf32> to vector<1x32xf32>
    %408 = vector.broadcast %407 : vector<1x32xf32> to vector<16x32xf32>
    %409 = arith.addf %405, %408 : vector<16x32xf32>
    %410 = arith.addf %409, %329 : vector<16x32xf32>
    %c0_133 = arith.constant 0 : index
    %c0_134 = arith.constant 0 : index
    %411 = vector.load %arg12[%c0_133, %c0_134] : memref<1x32xf32, #tpu.memory_space<vmem>>, vector<1x32xf32>
    %c0_135 = arith.constant 0 : index
    %c0_136 = arith.constant 0 : index
    %412 = vector.load %arg13[%c0_135, %c0_136] : memref<1x32xf32, #tpu.memory_space<vmem>>, vector<1x32xf32>
    %cst_137 = arith.constant dense<0.000000e+00> : vector<16xf32>
    %413 = vector.multi_reduction <add>, %410, %cst_137 [1] : vector<16x32xf32> to vector<16xf32>
    %414 = vector.shape_cast %413 : vector<16xf32> to vector<16x1xf32>
    %cst_138 = arith.constant 3.200000e+01 : f32
    %415 = vector.broadcast %cst_138 : f32 to vector<16x1xf32>
    %416 = arith.divf %414, %415 : vector<16x1xf32>
    %417 = arith.mulf %410, %410 : vector<16x32xf32>
    %cst_139 = arith.constant dense<0.000000e+00> : vector<16xf32>
    %418 = vector.multi_reduction <add>, %417, %cst_139 [1] : vector<16x32xf32> to vector<16xf32>
    %419 = vector.shape_cast %418 : vector<16xf32> to vector<16x1xf32>
    %cst_140 = arith.constant 3.200000e+01 : f32
    %420 = vector.broadcast %cst_140 : f32 to vector<16x1xf32>
    %421 = arith.divf %419, %420 : vector<16x1xf32>
    %422 = arith.mulf %416, %416 : vector<16x1xf32>
    %423 = arith.subf %421, %422 : vector<16x1xf32>
    %424 = vector.broadcast %416 : vector<16x1xf32> to vector<16x32xf32>
    %425 = arith.subf %410, %424 : vector<16x32xf32>
    %cst_141 = arith.constant 9.99999974E-6 : f32
    %426 = vector.broadcast %cst_141 : f32 to vector<16x1xf32>
    %427 = arith.addf %423, %426 : vector<16x1xf32>
    %428 = math.rsqrt %427 : vector<16x1xf32>
    %429 = vector.broadcast %428 : vector<16x1xf32> to vector<16x32xf32>
    %430 = arith.mulf %425, %429 : vector<16x32xf32>
    %431 = vector.broadcast %411 : vector<1x32xf32> to vector<16x32xf32>
    %432 = arith.mulf %430, %431 : vector<16x32xf32>
    %433 = vector.broadcast %412 : vector<1x32xf32> to vector<16x32xf32>
    %434 = arith.addf %432, %433 : vector<16x32xf32>
    %c0_142 = arith.constant 0 : index
    %c0_143 = arith.constant 0 : index
    %435 = vector.load %arg14[%c0_142, %c0_143] : memref<16x32xf32, #tpu.memory_space<vmem>>, vector<16x32xf32>
    tpu.vector_store %arg14[%c0_142, %c0_143], %434 {strides = array<i32>} : memref<16x32xf32, #tpu.memory_space<vmem>>, vector<16x32xf32>,
    return
  }
}

</mosaic_0001>

<llo_original>
// kernel: tpu_custom_call.1
$region0: #{tpu_custom_call.1}
  #allocation0 [shape = 'u32[]', space=smem, size = 0x4, offset = 0x4, fixed_abs, tag = 'smem constant byte address 0x4 - core index']
  #allocation1 [shape = 'u32[144,128]{1,0:T(1,128)}', space=vmem, size = 0x12000, scoped, tag = 'internal scratch']
  %s0 = inlined_call_operand.hbm [shape: f32[16,32], index: 0, kind: input, shape index: {}]
  %s1 = inlined_call_operand.hbm [shape: f32[2,1,32], index: 1, kind: input, shape index: {}]
  %s2 = inlined_call_operand.vmem [shape: f32[2,1,32], index: 2, kind: input, shape index: {}]
  %s3 = inlined_call_operand.vmem [shape: f32[2,32,96], index: 3, kind: input, shape index: {}]
  %s4 = inlined_call_operand.vmem [shape: f32[2,32,32], index: 4, kind: input, shape index: {}]
  %s5 = inlined_call_operand.vmem [shape: f32[2,1,32], index: 5, kind: input, shape index: {}]
  %s6 = inlined_call_operand.vmem [shape: f32[2,1,32], index: 6, kind: input, shape index: {}]
  %s7 = inlined_call_operand.vmem [shape: f32[2,1,32], index: 7, kind: input, shape index: {}]
  %s8 = inlined_call_operand.vmem [shape: f32[2,32,64], index: 8, kind: input, shape index: {}]
  %s9 = inlined_call_operand.vmem [shape: f32[2,1,64], index: 9, kind: input, shape index: {}]
  %s10 = inlined_call_operand.vmem [shape: f32[2,64,32], index: 10, kind: input, shape index: {}]
  %s11 = inlined_call_operand.vmem [shape: f32[2,1,32], index: 11, kind: input, shape index: {}]
  %s12 = inlined_call_operand.vmem [shape: f32[1,32], index: 12, kind: input, shape index: {}]
  %s13 = inlined_call_operand.vmem [shape: f32[1,32], index: 13, kind: input, shape index: {}]
  %s14 = inlined_call_operand.hbm [shape: f32[16,32], index: 14, kind: output, shape index: {}]
  %s15 = sld [smem:[#allocation0]]
  $region74: #{tpu_custom_call.1} parent=0
    _
  %s17 = ssub.s32 1, %s15
  %s18 = scalar_select 0, %s17, %s15
  $region1: #{tpu_custom_call.1} parent=0
    #allocation2 [shape = 'u8[8192]{0}', space=vmem, size = 0x2000, scoped, tag = 'input window, operand 0, single buffered']
    #allocation3 [shape = 's32[1]{0}', space=sflag, size = 0x4, scoped, tag = 'scoped memory for tpu_custom_call.1']
    #allocation4 [shape = 's32[1]{0}', space=sflag, size = 0x4, scoped, tag = 'scoped memory for tpu_custom_call.1']
    #allocation5 [shape = 'u8[1024]{0}', space=vmem, size = 0x400, scoped, tag = 'input window, operand 1, single buffered']
    #allocation6 [shape = 's32[1]{0}', space=sflag, size = 0x4, scoped, tag = 'scoped memory for tpu_custom_call.1']
    #allocation7 [shape = 'u8[8192]{0}', space=vmem, size = 0x2000, scoped, tag = 'output window, operand 0, single buffered']
    %19 = vsyncpa [#allocation3], 0
    %20 = vsyncpa [#allocation6], 0
    %21 = vsyncpa [#allocation4], 0
    // Predicated region
    $region2: #{tpu_custom_call.1} parent=1 // pred_check
      _
    $region3: #{tpu_custom_call.1} parent=1 // pred_check_branch
      %23 = sbr.rel (0) target = $region5
    $region4: #{tpu_custom_call.1} parent=1 // pred_region
      %s25 = ssub.s32 256, 256
      %26 = vsyncadd [#allocation3], %s25
      %s27 = sshll.u32 [#allocation2], 4
      %s28 = int_to_ptr.vmem [resolvable:$true] %s27
      %33 = dma.hbm_to_vmem [thread:$0]  %s0, 256, %s28, [#allocation3], 128, 128, 8
    $region5: #{tpu_custom_call.1} parent=1 // pred_fallthru
      _
    // Predicated region
    $region6: #{tpu_custom_call.1} parent=1 // pred_check
      _
    $region7: #{tpu_custom_call.1} parent=1 // pred_check_branch
      %35 = sbr.rel (0) target = $region9
    $region8: #{tpu_custom_call.1} parent=1 // pred_region
      %s37 = ssub.s32 32, 32
      %38 = vsyncadd [#allocation6], %s37
      %s39 = sshll.u32 [#allocation5], 4
      %s40 = int_to_ptr.vmem [resolvable:$true] %s39
      %45 = dma.hbm_to_vmem [thread:$0]  %s1, 32, %s40, [#allocation6], 16, 16, 1
    $region9: #{tpu_custom_call.1} parent=1 // pred_fallthru
      _
    // Predicated region
    $region10: #{tpu_custom_call.1} parent=1 // pred_check
      _
    $region11: #{tpu_custom_call.1} parent=1 // pred_check_branch
      %47 = sbr.rel (0) target = $region13
    $region12: #{tpu_custom_call.1} parent=1 // pred_region
      _
    $region13: #{tpu_custom_call.1} parent=1 // pred_fallthru
      _
    // Predicated region
    $region14: #{tpu_custom_call.1} parent=1 // pred_check
      _
    $region15: #{tpu_custom_call.1} parent=1 // pred_check_branch
      %49 = sbr.rel (0) target = $region17
    $region16: #{tpu_custom_call.1} parent=1 // pred_region
      _
    $region17: #{tpu_custom_call.1} parent=1 // pred_fallthru
      _
    // Predicated region
    $region18: #{tpu_custom_call.1} parent=1 // pred_check
      _
    $region19: #{tpu_custom_call.1} parent=1 // pred_check_branch
      %51 = sbr.rel (0) target = $region21
    $region20: #{tpu_custom_call.1} parent=1 // pred_region
      _
    $region21: #{tpu_custom_call.1} parent=1 // pred_fallthru
      _
    // Predicated region
    $region22: #{tpu_custom_call.1} parent=1 // pred_check
      _
    $region23: #{tpu_custom_call.1} parent=1 // pred_check_branch
      %53 = sbr.rel (0) target = $region25
    $region24: #{tpu_custom_call.1} parent=1 // pred_region
      _
    $region25: #{tpu_custom_call.1} parent=1 // pred_fallthru
      _
    // Predicated region
    $region26: #{tpu_custom_call.1} parent=1 // pred_check
      _
    $region27: #{tpu_custom_call.1} parent=1 // pred_check_branch
      %55 = sbr.rel (0) target = $region29
    $region28: #{tpu_custom_call.1} parent=1 // pred_region
      _
    $region29: #{tpu_custom_call.1} parent=1 // pred_fallthru
      _
    // Predicated region
    $region30: #{tpu_custom_call.1} parent=1 // pred_check
      _
    $region31: #{tpu_custom_call.1} parent=1 // pred_check_branch
      %57 = sbr.rel (0) target = $region33
    $region32: #{tpu_custom_call.1} parent=1 // pred_region
      _
    $region33: #{tpu_custom_call.1} parent=1 // pred_fallthru
      _
    // Predicated region
    $region34: #{tpu_custom_call.1} parent=1 // pred_check
      _
    $region35: #{tpu_custom_call.1} parent=1 // pred_check_branch
      %59 = sbr.rel (0) target = $region37
    $region36: #{tpu_custom_call.1} parent=1 // pred_region
      _
    $region37: #{tpu_custom_call.1} parent=1 // pred_fallthru
      _
    // Predicated region
    $region38: #{tpu_custom_call.1} parent=1 // pred_check
      _
    $region39: #{tpu_custom_call.1} parent=1 // pred_check_branch
      %61 = sbr.rel (0) target = $region41
    $region40: #{tpu_custom_call.1} parent=1 // pred_region
      _
    $region41: #{tpu_custom_call.1} parent=1 // pred_fallthru
      _
    // Predicated region
    $region42: #{tpu_custom_call.1} parent=1 // pred_check
      _
    $region43: #{tpu_custom_call.1} parent=1 // pred_check_branch
      %63 = sbr.rel (0) target = $region45
    $region44: #{tpu_custom_call.1} parent=1 // pred_region
      _
    $region45: #{tpu_custom_call.1} parent=1 // pred_fallthru
      _
    // Predicated region
    $region46: #{tpu_custom_call.1} parent=1 // pred_check
      _
    $region47: #{tpu_custom_call.1} parent=1 // pred_check_branch
      %65 = sbr.rel (0) target = $region49
    $region48: #{tpu_custom_call.1} parent=1 // pred_region
      _
    $region49: #{tpu_custom_call.1} parent=1 // pred_fallthru
      _
    // Predicated region
    $region50: #{tpu_custom_call.1} parent=1 // pred_check
      _
    $region51: #{tpu_custom_call.1} parent=1 // pred_check_branch
      %67 = sbr.rel (0) target = $region53
    $region52: #{tpu_custom_call.1} parent=1 // pred_region
      _
    $region53: #{tpu_custom_call.1} parent=1 // pred_fallthru
      _
    // Predicated region
    $region54: #{tpu_custom_call.1} parent=1 // pred_check
      _
    $region55: #{tpu_custom_call.1} parent=1 // pred_check_branch
      %69 = sbr.rel (0) target = $region57
    $region56: #{tpu_custom_call.1} parent=1 // pred_region
      _
    $region57: #{tpu_custom_call.1} parent=1 // pred_fallthru
      _
    // Predicated region
    $region58: #{tpu_custom_call.1} parent=1 // pred_check
      _
    $region59: #{tpu_custom_call.1} parent=1 // pred_check_branch
      %71 = sbr.rel (0) target = $region61
    $region60: #{tpu_custom_call.1} parent=1 // pred_region
      %72 = dma.done [#allocation3], 256
    $region61: #{tpu_custom_call.1} parent=1 // pred_fallthru
      _
    // Predicated region
    $region62: #{tpu_custom_call.1} parent=1 // pred_check
      _
    $region63: #{tpu_custom_call.1} parent=1 // pred_check_branch
      %74 = sbr.rel (0) target = $region65
    $region64: #{tpu_custom_call.1} parent=1 // pred_region
      %75 = dma.done [#allocation6], 32
    $region65: #{tpu_custom_call.1} parent=1 // pred_fallthru
      _
    %v76 = vld [vmem:[#allocation2] sm:$0xff]
    %v77 = vld [vmem:[#allocation2 + $0x8] sm:$0xff]
    %v78 = vld [vmem:[#allocation5] sm:$0x1]
    %v79 = vld [vmem:[%s2] sm:$0x1]
    %vm80 = vcmask 261120
    %v81 = vsel %vm80, %v76, 0.0
    %82 = vadd.xlane.f32.xlu0 %v81
    %v83 = vpop.xlane.xlu0 %82
    %v84 = vsel %vm80, %v77, 0.0
    %85 = vadd.xlane.f32.xlu0 %v84
    %v86 = vpop.xlane.xlu0 %85
    %v87 = vrcp.pop 32.0
    %v88 = vmul.f32 %v83, %v87
    %v89 = vmul.f32 %v86, %v87
    %v90 = vmul.f32 %v76, %v76
    %v91 = vmul.f32 %v77, %v77
    %v92 = vsel %vm80, %v90, 0.0
    %93 = vadd.xlane.f32.xlu0 %v92
    %v94 = vpop.xlane.xlu0 %93
    %v95 = vsel %vm80, %v91, 0.0
    %96 = vadd.xlane.f32.xlu0 %v95
    %v97 = vpop.xlane.xlu0 %96
    %v98 = vmul.f32 %v94, %v87
    %v99 = vmul.f32 %v97, %v87
    %v100 = vmul.f32 %v88, %v88
    %v101 = vmul.f32 %v89, %v89
    %v102 = vsub.f32 %v98, %v100
    %v103 = vsub.f32 %v99, %v101
    %v104 = vsub.f32 %v76, %v88
    %v105 = vsub.f32 %v77, %v89
    %v106 = vadd.f32 %v102, 1e-05
    %v107 = vadd.f32 %v103, 1e-05
    %v108 = vrsqrt.pop %v106
    %v109 = vrsqrt.pop %v107
    %v110 = vmul.f32 %v104, %v108
    %v111 = vmul.f32 %v105, %v109
    %v113 = vlaneseq
    %v114 = vshrl.u32 %v113, 7
    %v115 = vsub.s32 0, %v114
    %v116 = vrot.slane %v78, %v115
    %v118 = vmul.f32 %v110, %v116
    %v119 = vmul.f32 %v111, %v116
    %v121 = vlaneseq
    %v122 = vshrl.u32 %v121, 7
    %v123 = vsub.s32 0, %v122
    %v124 = vrot.slane %v79, %v123
    %v126 = vadd.f32 %v118, %v124
    %v127 = vadd.f32 %v119, %v124
    %v128 = vld [vmem:[%s3] sm:$0xff]
    %v129 = vld [vmem:[%s3 + $0x8] sm:$0xff]
    %v130 = vld [vmem:[%s3 + $0x10] sm:$0xff]
    %v131 = vld [vmem:[%s3 + $0x18] sm:$0xff]
    %v133 = vsel %vm80, %v126, 0
    %v136 = vsel %vm80, %v127, 0
    %138 = vmatprep.subr.mxu0 0.0
    %139 = vmatpush1.msra.mxu0 0.0
    %140 = vmatprep.subr.mxu0 0.0
    %141 = vmatpush1.msra.mxu0 0.0
    %142 = vmatprep.subr.mxu0 0.0
    %143 = vmatpush1.msra.mxu0 0.0
    %144 = vmatprep.subr.mxu0 0.0
    %145 = vmatpush1.msra.mxu0 0.0
    %146 = vmatprep.subr.mxu0 0.0
    %147 = vmatpush1.msra.mxu0 0.0
    %148 = vmatprep.subr.mxu0 0.0
    %149 = vmatpush1.msra.mxu0 0.0
    %150 = vmatprep.subr.mxu0 0.0
    %151 = vmatpush1.msra.mxu0 0.0
    %152 = vmatprep.subr.mxu0 0.0
    %153 = vmatpush1.msra.mxu0 0.0
    %154 = vmatprep.subr.mxu0 0.0
    %155 = vmatpush1.msra.mxu0 0.0
    %156 = vmatprep.subr.mxu0 0.0
    %157 = vmatpush1.msra.mxu0 0.0
    %158 = vmatprep.subr.mxu0 0.0
    %159 = vmatpush1.msra.mxu0 0.0
    %160 = vmatprep.subr.mxu0 0.0
    %161 = vmatpush1.msra.mxu0 0.0
    %162 = vmatprep.subr.mxu0 0.0
    %163 = vmatpush1.msra.mxu0 %v131
    %164 = vmatprep.subr.mxu0 0.0
    %165 = vmatpush1.msra.mxu0 %v130
    %166 = vmatprep.subr.mxu0 0.0
    %167 = vmatpush1.msra.mxu0 %v129
    %168 = vmatprep.subr.mxu0 0.0
    %169 = vmatpush1.msra.mxu0 %v128
    %170 = vmatprep.subr.mxu0 0.0
    %171 = vmatpush2.msra.mxu0 0.0
    %172 = vmatprep.subr.mxu0 0.0
    %173 = vmatpush2.msra.mxu0 0.0
    %174 = vmatprep.subr.mxu0 0.0
    %175 = vmatpush2.msra.mxu0 0.0
    %176 = vmatprep.subr.mxu0 0.0
    %177 = vmatpush2.msra.mxu0 0.0
    %178 = vmatprep.subr.mxu0 0.0
    %179 = vmatpush2.msra.mxu0 0.0
    %180 = vmatprep.subr.mxu0 0.0
    %181 = vmatpush2.msra.mxu0 0.0
    %182 = vmatprep.subr.mxu0 0.0
    %183 = vmatpush2.msra.mxu0 0.0
    %184 = vmatprep.subr.mxu0 0.0
    %185 = vmatpush2.msra.mxu0 0.0
    %186 = vmatprep.subr.mxu0 0.0
    %187 = vmatpush2.msra.mxu0 0.0
    %188 = vmatprep.subr.mxu0 0.0
    %189 = vmatpush2.msra.mxu0 0.0
    %190 = vmatprep.subr.mxu0 0.0
    %191 = vmatpush2.msra.mxu0 0.0
    %192 = vmatprep.subr.mxu0 0.0
    %193 = vmatpush2.msra.mxu0 0.0
    %194 = vmatprep.subr.mxu0 0.0
    %195 = vmatpush2.msra.mxu0 0.0
    %196 = vmatprep.subr.mxu0 0.0
    %197 = vmatpush2.msra.mxu0 0.0
    %198 = vmatprep.subr.mxu0 0.0
    %199 = vmatpush2.msra.mxu0 0.0
    %200 = vmatprep.subr.mxu0 0.0
    %201 = vmatpush2.msra.mxu0 0.0
    %202 = vmatprep.mubr.f32.mxu0 0.0
    %203 = vmatmul.mubr.f32.gmra.mxu0 %v133
    %v204 = vpop.f32.mrf.mxu0
    %v205 = vadd.f32 0.0, %v204
    %v206 = vpop.f32.mrf.mxu0
    %207 = vmatprep.mubr.f32.mxu0 0.0
    %208 = vmatmul.mubr.f32.gmra.mxu0 %v136
    %v209 = vpop.f32.mrf.mxu0
    %v210 = vadd.f32 0.0, %v209
    %v211 = vpop.f32.mrf.mxu0
    %212 = vdwg.mxu0
    %214 = vrot.lane.b32.xlu0 %v205, 120
    %v215 = vpop.permute.xlu0 %214
    %216 = vrot.lane.b32.xlu0 %v205, 112
    %v217 = vpop.permute.xlu0 %216
    %218 = vrot.lane.b32.xlu0 %v205, 104
    %v219 = vpop.permute.xlu0 %218
    %221 = vrot.lane.b32.xlu0 %v210, 120
    %v222 = vpop.permute.xlu0 %221
    %223 = vrot.lane.b32.xlu0 %v210, 112
    %v224 = vpop.permute.xlu0 %223
    %225 = vrot.lane.b32.xlu0 %v210, 104
    %v226 = vpop.permute.xlu0 %225
    %227 = vrot.lane.b32.xlu0 %v205, 96
    %v228 = vpop.permute.xlu0 %227
    %vm229 = vcmask 64512
    %v230 = vsel %vm229, %v205, 0
    %v232 = vsel %vm229, %v228, 0
    %234 = vmatprep.subr.mxu0 0.0
    %235 = vmatpush1.xpose.msra.mxu0 0.0
    %236 = vmatprep.subr.mxu0 0.0
    %237 = vmatpush1.xpose.msra.mxu0 0.0
    %238 = vmatprep.subr.mxu0 0.0
    %239 = vmatpush1.xpose.msra.mxu0 0.0
    %240 = vmatprep.subr.mxu0 0.0
    %241 = vmatpush1.xpose.msra.mxu0 0.0
    %242 = vmatprep.subr.mxu0 0.0
    %243 = vmatpush1.xpose.msra.mxu0 0.0
    %244 = vmatprep.subr.mxu0 0.0
    %245 = vmatpush1.xpose.msra.mxu0 0.0
    %246 = vmatprep.subr.mxu0 0.0
    %247 = vmatpush1.xpose.msra.mxu0 0.0
    %248 = vmatprep.subr.mxu0 0.0
    %249 = vmatpush1.xpose.msra.mxu0 0.0
    %250 = vmatprep.subr.mxu0 0.0
    %251 = vmatpush1.xpose.msra.mxu0 0.0
    %252 = vmatprep.subr.mxu0 0.0
    %253 = vmatpush1.xpose.msra.mxu0 0.0
    %254 = vmatprep.subr.mxu0 0.0
    %255 = vmatpush1.xpose.msra.mxu0 0.0
    %256 = vmatprep.subr.mxu0 0.0
    %257 = vmatpush1.xpose.msra.mxu0 0.0
    %258 = vmatprep.subr.mxu0 0.0
    %259 = vmatpush1.xpose.msra.mxu0 0.0
    %260 = vmatprep.subr.mxu0 0.0
    %261 = vmatpush1.xpose.msra.mxu0 0.0
    %262 = vmatprep.subr.mxu0 0.0
    %263 = vmatpush1.xpose.msra.mxu0 0.0
    %264 = vmatprep.subr.mxu0 0.0
    %265 = vmatpush1.xpose.msra.mxu0 %v232
    %266 = vmatprep.subr.mxu0 0.0
    %267 = vmatpush2.xpose.msra.mxu0 0.0
    %268 = vmatprep.subr.mxu0 0.0
    %269 = vmatpush2.xpose.msra.mxu0 0.0
    %270 = vmatprep.subr.mxu0 0.0
    %271 = vmatpush2.xpose.msra.mxu0 0.0
    %272 = vmatprep.subr.mxu0 0.0
    %273 = vmatpush2.xpose.msra.mxu0 0.0
    %274 = vmatprep.subr.mxu0 0.0
    %275 = vmatpush2.xpose.msra.mxu0 0.0
    %276 = vmatprep.subr.mxu0 0.0
    %277 = vmatpush2.xpose.msra.mxu0 0.0
    %278 = vmatprep.subr.mxu0 0.0
    %279 = vmatpush2.xpose.msra.mxu0 0.0
    %280 = vmatprep.subr.mxu0 0.0
    %281 = vmatpush2.xpose.msra.mxu0 0.0
    %282 = vmatprep.subr.mxu0 0.0
    %283 = vmatpush2.xpose.msra.mxu0 0.0
    %284 = vmatprep.subr.mxu0 0.0
    %285 = vmatpush2.xpose.msra.mxu0 0.0
    %286 = vmatprep.subr.mxu0 0.0
    %287 = vmatpush2.xpose.msra.mxu0 0.0
    %288 = vmatprep.subr.mxu0 0.0
    %289 = vmatpush2.xpose.msra.mxu0 0.0
    %290 = vmatprep.subr.mxu0 0.0
    %291 = vmatpush2.xpose.msra.mxu0 0.0
    %292 = vmatprep.subr.mxu0 0.0
    %293 = vmatpush2.xpose.msra.mxu0 0.0
    %294 = vmatprep.subr.mxu0 0.0
    %295 = vmatpush2.xpose.msra.mxu0 0.0
    %296 = vmatprep.subr.mxu0 0.0
    %297 = vmatpush2.xpose.msra.mxu0 0.0
    %298 = vmatprep.mubr.f32.mxu0 0.0
    %299 = vmatmul.mubr.f32.gmra.mxu0 %v230
    %v300 = vpop.f32.mrf.mxu0
    %v301 = vadd.f32 0.0, %v300
    %v302 = vpop.f32.mrf.mxu0
    %303 = vdwg.mxu0
    %304 = vrot.lane.b32.xlu0 %v215, 96
    %v305 = vpop.permute.xlu0 %304
    %v306 = vsel %vm229, %v215, 0
    %v308 = vsel %vm229, %v305, 0
    %310 = vmatprep.subr.mxu0 0.0
    %311 = vmatpush1.xpose.msra.mxu0 0.0
    %312 = vmatprep.subr.mxu0 0.0
    %313 = vmatpush1.xpose.msra.mxu0 0.0
    %314 = vmatprep.subr.mxu0 0.0
    %315 = vmatpush1.xpose.msra.mxu0 0.0
    %316 = vmatprep.subr.mxu0 0.0
    %317 = vmatpush1.xpose.msra.mxu0 0.0
    %318 = vmatprep.subr.mxu0 0.0
    %319 = vmatpush1.xpose.msra.mxu0 0.0
    %320 = vmatprep.subr.mxu0 0.0
    %321 = vmatpush1.xpose.msra.mxu0 0.0
    %322 = vmatprep.subr.mxu0 0.0
    %323 = vmatpush1.xpose.msra.mxu0 0.0
    %324 = vmatprep.subr.mxu0 0.0
    %325 = vmatpush1.xpose.msra.mxu0 0.0
    %326 = vmatprep.subr.mxu0 0.0
    %327 = vmatpush1.xpose.msra.mxu0 0.0
    %328 = vmatprep.subr.mxu0 0.0
    %329 = vmatpush1.xpose.msra.mxu0 0.0
    %330 = vmatprep.subr.mxu0 0.0
    %331 = vmatpush1.xpose.msra.mxu0 0.0
    %332 = vmatprep.subr.mxu0 0.0
    %333 = vmatpush1.xpose.msra.mxu0 0.0
    %334 = vmatprep.subr.mxu0 0.0
    %335 = vmatpush1.xpose.msra.mxu0 0.0
    %336 = vmatprep.subr.mxu0 0.0
    %337 = vmatpush1.xpose.msra.mxu0 0.0
    %338 = vmatprep.subr.mxu0 0.0
    %339 = vmatpush1.xpose.msra.mxu0 0.0
    %340 = vmatprep.subr.mxu0 0.0
    %341 = vmatpush1.xpose.msra.mxu0 %v308
    %342 = vmatprep.subr.mxu0 0.0
    %343 = vmatpush2.xpose.msra.mxu0 0.0
    %344 = vmatprep.subr.mxu0 0.0
    %345 = vmatpush2.xpose.msra.mxu0 0.0
    %346 = vmatprep.subr.mxu0 0.0
    %347 = vmatpush2.xpose.msra.mxu0 0.0
    %348 = vmatprep.subr.mxu0 0.0
    %349 = vmatpush2.xpose.msra.mxu0 0.0
    %350 = vmatprep.subr.mxu0 0.0
    %351 = vmatpush2.xpose.msra.mxu0 0.0
    %352 = vmatprep.subr.mxu0 0.0
    %353 = vmatpush2.xpose.msra.mxu0 0.0
    %354 = vmatprep.subr.mxu0 0.0
    %355 = vmatpush2.xpose.msra.mxu0 0.0
    %356 = vmatprep.subr.mxu0 0.0
    %357 = vmatpush2.xpose.msra.mxu0 0.0
    %358 = vmatprep.subr.mxu0 0.0
    %359 = vmatpush2.xpose.msra.mxu0 0.0
    %360 = vmatprep.subr.mxu0 0.0
    %361 = vmatpush2.xpose.msra.mxu0 0.0
    %362 = vmatprep.subr.mxu0 0.0
    %363 = vmatpush2.xpose.msra.mxu0 0.0
    %364 = vmatprep.subr.mxu0 0.0
    %365 = vmatpush2.xpose.msra.mxu0 0.0
    %366 = vmatprep.subr.mxu0 0.0
    %367 = vmatpush2.xpose.msra.mxu0 0.0
    %368 = vmatprep.subr.mxu0 0.0
    %369 = vmatpush2.xpose.msra.mxu0 0.0
    %370 = vmatprep.subr.mxu0 0.0
    %371 = vmatpush2.xpose.msra.mxu0 0.0
    %372 = vmatprep.subr.mxu0 0.0
    %373 = vmatpush2.xpose.msra.mxu0 0.0
    %374 = vmatprep.mubr.f32.mxu0 0.0
    %375 = vmatmul.mubr.f32.gmra.mxu0 %v306
    %v376 = vpop.f32.mrf.mxu0
    %v377 = vadd.f32 0.0, %v376
    %v378 = vpop.f32.mrf.mxu0
    %379 = vdwg.mxu0
    %380 = vrot.lane.b32.xlu0 %v217, 96
    %v381 = vpop.permute.xlu0 %380
    %v382 = vsel %vm229, %v217, 0
    %v384 = vsel %vm229, %v381, 0
    %386 = vmatprep.subr.mxu0 0.0
    %387 = vmatpush1.xpose.msra.mxu0 0.0
    %388 = vmatprep.subr.mxu0 0.0
    %389 = vmatpush1.xpose.msra.mxu0 0.0
    %390 = vmatprep.subr.mxu0 0.0
    %391 = vmatpush1.xpose.msra.mxu0 0.0
    %392 = vmatprep.subr.mxu0 0.0
    %393 = vmatpush1.xpose.msra.mxu0 0.0
    %394 = vmatprep.subr.mxu0 0.0
    %395 = vmatpush1.xpose.msra.mxu0 0.0
    %396 = vmatprep.subr.mxu0 0.0
    %397 = vmatpush1.xpose.msra.mxu0 0.0
    %398 = vmatprep.subr.mxu0 0.0
    %399 = vmatpush1.xpose.msra.mxu0 0.0
    %400 = vmatprep.subr.mxu0 0.0
    %401 = vmatpush1.xpose.msra.mxu0 0.0
    %402 = vmatprep.subr.mxu0 0.0
    %403 = vmatpush1.xpose.msra.mxu0 0.0
    %404 = vmatprep.subr.mxu0 0.0
    %405 = vmatpush1.xpose.msra.mxu0 0.0
    %406 = vmatprep.subr.mxu0 0.0
    %407 = vmatpush1.xpose.msra.mxu0 0.0
    %408 = vmatprep.subr.mxu0 0.0
    %409 = vmatpush1.xpose.msra.mxu0 0.0
    %410 = vmatprep.subr.mxu0 0.0
    %411 = vmatpush1.xpose.msra.mxu0 0.0
    %412 = vmatprep.subr.mxu0 0.0
    %413 = vmatpush1.xpose.msra.mxu0 0.0
    %414 = vmatprep.subr.mxu0 0.0
    %415 = vmatpush1.xpose.msra.mxu0 0.0
    %416 = vmatprep.subr.mxu0 0.0
    %417 = vmatpush1.xpose.msra.mxu0 %v384
    %418 = vmatprep.subr.mxu0 0.0
    %419 = vmatpush2.xpose.msra.mxu0 0.0
    %420 = vmatprep.subr.mxu0 0.0
    %421 = vmatpush2.xpose.msra.mxu0 0.0
    %422 = vmatprep.subr.mxu0 0.0
    %423 = vmatpush2.xpose.msra.mxu0 0.0
    %424 = vmatprep.subr.mxu0 0.0
    %425 = vmatpush2.xpose.msra.mxu0 0.0
    %426 = vmatprep.subr.mxu0 0.0
    %427 = vmatpush2.xpose.msra.mxu0 0.0
    %428 = vmatprep.subr.mxu0 0.0
    %429 = vmatpush2.xpose.msra.mxu0 0.0
    %430 = vmatprep.subr.mxu0 0.0
    %431 = vmatpush2.xpose.msra.mxu0 0.0
    %432 = vmatprep.subr.mxu0 0.0
    %433 = vmatpush2.xpose.msra.mxu0 0.0
    %434 = vmatprep.subr.mxu0 0.0
    %435 = vmatpush2.xpose.msra.mxu0 0.0
    %436 = vmatprep.subr.mxu0 0.0
    %437 = vmatpush2.xpose.msra.mxu0 0.0
    %438 = vmatprep.subr.mxu0 0.0
    %439 = vmatpush2.xpose.msra.mxu0 0.0
    %440 = vmatprep.subr.mxu0 0.0
    %441 = vmatpush2.xpose.msra.mxu0 0.0
    %442 = vmatprep.subr.mxu0 0.0
    %443 = vmatpush2.xpose.msra.mxu0 0.0
    %444 = vmatprep.subr.mxu0 0.0
    %445 = vmatpush2.xpose.msra.mxu0 0.0
    %446 = vmatprep.subr.mxu0 0.0
    %447 = vmatpush2.xpose.msra.mxu0 0.0
    %448 = vmatprep.subr.mxu0 0.0
    %449 = vmatpush2.xpose.msra.mxu0 0.0
    %450 = vmatprep.mubr.f32.mxu0 0.0
    %451 = vmatmul.mubr.f32.gmra.mxu0 %v382
    %v452 = vpop.f32.mrf.mxu0
    %v453 = vadd.f32 0.0, %v452
    %v454 = vpop.f32.mrf.mxu0
    %455 = vdwg.mxu0
    %456 = vrot.lane.b32.xlu0 %v219, 96
    %v457 = vpop.permute.xlu0 %456
    %v458 = vsel %vm229, %v219, 0
    %v460 = vsel %vm229, %v457, 0
    %462 = vmatprep.subr.mxu0 0.0
    %463 = vmatpush1.xpose.msra.mxu0 0.0
    %464 = vmatprep.subr.mxu0 0.0
    %465 = vmatpush1.xpose.msra.mxu0 0.0
    %466 = vmatprep.subr.mxu0 0.0
    %467 = vmatpush1.xpose.msra.mxu0 0.0
    %468 = vmatprep.subr.mxu0 0.0
    %469 = vmatpush1.xpose.msra.mxu0 0.0
    %470 = vmatprep.subr.mxu0 0.0
    %471 = vmatpush1.xpose.msra.mxu0 0.0
    %472 = vmatprep.subr.mxu0 0.0
    %473 = vmatpush1.xpose.msra.mxu0 0.0
    %474 = vmatprep.subr.mxu0 0.0
    %475 = vmatpush1.xpose.msra.mxu0 0.0
    %476 = vmatprep.subr.mxu0 0.0
    %477 = vmatpush1.xpose.msra.mxu0 0.0
    %478 = vmatprep.subr.mxu0 0.0
    %479 = vmatpush1.xpose.msra.mxu0 0.0
    %480 = vmatprep.subr.mxu0 0.0
    %481 = vmatpush1.xpose.msra.mxu0 0.0
    %482 = vmatprep.subr.mxu0 0.0
    %483 = vmatpush1.xpose.msra.mxu0 0.0
    %484 = vmatprep.subr.mxu0 0.0
    %485 = vmatpush1.xpose.msra.mxu0 0.0
    %486 = vmatprep.subr.mxu0 0.0
    %487 = vmatpush1.xpose.msra.mxu0 0.0
    %488 = vmatprep.subr.mxu0 0.0
    %489 = vmatpush1.xpose.msra.mxu0 0.0
    %490 = vmatprep.subr.mxu0 0.0
    %491 = vmatpush1.xpose.msra.mxu0 0.0
    %492 = vmatprep.subr.mxu0 0.0
    %493 = vmatpush1.xpose.msra.mxu0 %v460
    %494 = vmatprep.subr.mxu0 0.0
    %495 = vmatpush2.xpose.msra.mxu0 0.0
    %496 = vmatprep.subr.mxu0 0.0
    %497 = vmatpush2.xpose.msra.mxu0 0.0
    %498 = vmatprep.subr.mxu0 0.0
    %499 = vmatpush2.xpose.msra.mxu0 0.0
    %500 = vmatprep.subr.mxu0 0.0
    %501 = vmatpush2.xpose.msra.mxu0 0.0
    %502 = vmatprep.subr.mxu0 0.0
    %503 = vmatpush2.xpose.msra.mxu0 0.0
    %504 = vmatprep.subr.mxu0 0.0
    %505 = vmatpush2.xpose.msra.mxu0 0.0
    %506 = vmatprep.subr.mxu0 0.0
    %507 = vmatpush2.xpose.msra.mxu0 0.0
    %508 = vmatprep.subr.mxu0 0.0
    %509 = vmatpush2.xpose.msra.mxu0 0.0
    %510 = vmatprep.subr.mxu0 0.0
    %511 = vmatpush2.xpose.msra.mxu0 0.0
    %512 = vmatprep.subr.mxu0 0.0
    %513 = vmatpush2.xpose.msra.mxu0 0.0
    %514 = vmatprep.subr.mxu0 0.0
    %515 = vmatpush2.xpose.msra.mxu0 0.0
    %516 = vmatprep.subr.mxu0 0.0
    %517 = vmatpush2.xpose.msra.mxu0 0.0
    %518 = vmatprep.subr.mxu0 0.0
    %519 = vmatpush2.xpose.msra.mxu0 0.0
    %520 = vmatprep.subr.mxu0 0.0
    %521 = vmatpush2.xpose.msra.mxu0 0.0
    %522 = vmatprep.subr.mxu0 0.0
    %523 = vmatpush2.xpose.msra.mxu0 0.0
    %524 = vmatprep.subr.mxu0 0.0
    %525 = vmatpush2.xpose.msra.mxu0 0.0
    %526 = vmatprep.mubr.f32.mxu0 0.0
    %527 = vmatmul.mubr.f32.gmra.mxu0 %v458
    %v528 = vpop.f32.mrf.mxu0
    %v529 = vadd.f32 0.0, %v528
    %v530 = vpop.f32.mrf.mxu0
    %531 = vdwg.mxu0
    %532 = vrot.lane.b32.xlu0 %v210, 96
    %v533 = vpop.permute.xlu0 %532
    %v534 = vsel %vm229, %v210, 0
    %v536 = vsel %vm229, %v533, 0
    %538 = vmatprep.subr.mxu0 0.0
    %539 = vmatpush1.xpose.msra.mxu0 0.0
    %540 = vmatprep.subr.mxu0 0.0
    %541 = vmatpush1.xpose.msra.mxu0 0.0
    %542 = vmatprep.subr.mxu0 0.0
    %543 = vmatpush1.xpose.msra.mxu0 0.0
    %544 = vmatprep.subr.mxu0 0.0
    %545 = vmatpush1.xpose.msra.mxu0 0.0
    %546 = vmatprep.subr.mxu0 0.0
    %547 = vmatpush1.xpose.msra.mxu0 0.0
    %548 = vmatprep.subr.mxu0 0.0
    %549 = vmatpush1.xpose.msra.mxu0 0.0
    %550 = vmatprep.subr.mxu0 0.0
    %551 = vmatpush1.xpose.msra.mxu0 0.0
    %552 = vmatprep.subr.mxu0 0.0
    %553 = vmatpush1.xpose.msra.mxu0 0.0
    %554 = vmatprep.subr.mxu0 0.0
    %555 = vmatpush1.xpose.msra.mxu0 0.0
    %556 = vmatprep.subr.mxu0 0.0
    %557 = vmatpush1.xpose.msra.mxu0 0.0
    %558 = vmatprep.subr.mxu0 0.0
    %559 = vmatpush1.xpose.msra.mxu0 0.0
    %560 = vmatprep.subr.mxu0 0.0
    %561 = vmatpush1.xpose.msra.mxu0 0.0
    %562 = vmatprep.subr.mxu0 0.0
    %563 = vmatpush1.xpose.msra.mxu0 0.0
    %564 = vmatprep.subr.mxu0 0.0
    %565 = vmatpush1.xpose.msra.mxu0 0.0
    %566 = vmatprep.subr.mxu0 0.0
    %567 = vmatpush1.xpose.msra.mxu0 0.0
    %568 = vmatprep.subr.mxu0 0.0
    %569 = vmatpush1.xpose.msra.mxu0 %v536
    %570 = vmatprep.subr.mxu0 0.0
    %571 = vmatpush2.xpose.msra.mxu0 0.0
    %572 = vmatprep.subr.mxu0 0.0
    %573 = vmatpush2.xpose.msra.mxu0 0.0
    %574 = vmatprep.subr.mxu0 0.0
    %575 = vmatpush2.xpose.msra.mxu0 0.0
    %576 = vmatprep.subr.mxu0 0.0
    %577 = vmatpush2.xpose.msra.mxu0 0.0
    %578 = vmatprep.subr.mxu0 0.0
    %579 = vmatpush2.xpose.msra.mxu0 0.0
    %580 = vmatprep.subr.mxu0 0.0
    %581 = vmatpush2.xpose.msra.mxu0 0.0
    %582 = vmatprep.subr.mxu0 0.0
    %583 = vmatpush2.xpose.msra.mxu0 0.0
    %584 = vmatprep.subr.mxu0 0.0
    %585 = vmatpush2.xpose.msra.mxu0 0.0
    %586 = vmatprep.subr.mxu0 0.0
    %587 = vmatpush2.xpose.msra.mxu0 0.0
    %588 = vmatprep.subr.mxu0 0.0
    %589 = vmatpush2.xpose.msra.mxu0 0.0
    %590 = vmatprep.subr.mxu0 0.0
    %591 = vmatpush2.xpose.msra.mxu0 0.0
    %592 = vmatprep.subr.mxu0 0.0
    %593 = vmatpush2.xpose.msra.mxu0 0.0
    %594 = vmatprep.subr.mxu0 0.0
    %595 = vmatpush2.xpose.msra.mxu0 0.0
    %596 = vmatprep.subr.mxu0 0.0
    %597 = vmatpush2.xpose.msra.mxu0 0.0
    %598 = vmatprep.subr.mxu0 0.0
    %599 = vmatpush2.xpose.msra.mxu0 0.0
    %600 = vmatprep.subr.mxu0 0.0
    %601 = vmatpush2.xpose.msra.mxu0 0.0
    %602 = vmatprep.mubr.f32.mxu0 0.0
    %603 = vmatmul.mubr.f32.gmra.mxu0 %v534
    %v604 = vpop.f32.mrf.mxu0
    %v605 = vadd.f32 0.0, %v604
    %v606 = vpop.f32.mrf.mxu0
    %607 = vdwg.mxu0
    %608 = vrot.lane.b32.xlu0 %v222, 96
    %v609 = vpop.permute.xlu0 %608
    %v610 = vsel %vm229, %v222, 0
    %v612 = vsel %vm229, %v609, 0
    %614 = vmatprep.subr.mxu0 0.0
    %615 = vmatpush1.xpose.msra.mxu0 0.0
    %616 = vmatprep.subr.mxu0 0.0
    %617 = vmatpush1.xpose.msra.mxu0 0.0
    %618 = vmatprep.subr.mxu0 0.0
    %619 = vmatpush1.xpose.msra.mxu0 0.0
    %620 = vmatprep.subr.mxu0 0.0
    %621 = vmatpush1.xpose.msra.mxu0 0.0
    %622 = vmatprep.subr.mxu0 0.0
    %623 = vmatpush1.xpose.msra.mxu0 0.0
    %624 = vmatprep.subr.mxu0 0.0
    %625 = vmatpush1.xpose.msra.mxu0 0.0
    %626 = vmatprep.subr.mxu0 0.0
    %627 = vmatpush1.xpose.msra.mxu0 0.0
    %628 = vmatprep.subr.mxu0 0.0
    %629 = vmatpush1.xpose.msra.mxu0 0.0
    %630 = vmatprep.subr.mxu0 0.0
    %631 = vmatpush1.xpose.msra.mxu0 0.0
    %632 = vmatprep.subr.mxu0 0.0
    %633 = vmatpush1.xpose.msra.mxu0 0.0
    %634 = vmatprep.subr.mxu0 0.0
    %635 = vmatpush1.xpose.msra.mxu0 0.0
    %636 = vmatprep.subr.mxu0 0.0
    %637 = vmatpush1.xpose.msra.mxu0 0.0
    %638 = vmatprep.subr.mxu0 0.0
    %639 = vmatpush1.xpose.msra.mxu0 0.0
    %640 = vmatprep.subr.mxu0 0.0
    %641 = vmatpush1.xpose.msra.mxu0 0.0
    %642 = vmatprep.subr.mxu0 0.0
    %643 = vmatpush1.xpose.msra.mxu0 0.0
    %644 = vmatprep.subr.mxu0 0.0
    %645 = vmatpush1.xpose.msra.mxu0 %v612
    %646 = vmatprep.subr.mxu0 0.0
    %647 = vmatpush2.xpose.msra.mxu0 0.0
    %648 = vmatprep.subr.mxu0 0.0
    %649 = vmatpush2.xpose.msra.mxu0 0.0
    %650 = vmatprep.subr.mxu0 0.0
    %651 = vmatpush2.xpose.msra.mxu0 0.0
    %652 = vmatprep.subr.mxu0 0.0
    %653 = vmatpush2.xpose.msra.mxu0 0.0
    %654 = vmatprep.subr.mxu0 0.0
    %655 = vmatpush2.xpose.msra.mxu0 0.0
    %656 = vmatprep.subr.mxu0 0.0
    %657 = vmatpush2.xpose.msra.mxu0 0.0
    %658 = vmatprep.subr.mxu0 0.0
    %659 = vmatpush2.xpose.msra.mxu0 0.0
    %660 = vmatprep.subr.mxu0 0.0
    %661 = vmatpush2.xpose.msra.mxu0 0.0
    %662 = vmatprep.subr.mxu0 0.0
    %663 = vmatpush2.xpose.msra.mxu0 0.0
    %664 = vmatprep.subr.mxu0 0.0
    %665 = vmatpush2.xpose.msra.mxu0 0.0
    %666 = vmatprep.subr.mxu0 0.0
    %667 = vmatpush2.xpose.msra.mxu0 0.0
    %668 = vmatprep.subr.mxu0 0.0
    %669 = vmatpush2.xpose.msra.mxu0 0.0
    %670 = vmatprep.subr.mxu0 0.0
    %671 = vmatpush2.xpose.msra.mxu0 0.0
    %672 = vmatprep.subr.mxu0 0.0
    %673 = vmatpush2.xpose.msra.mxu0 0.0
    %674 = vmatprep.subr.mxu0 0.0
    %675 = vmatpush2.xpose.msra.mxu0 0.0
    %676 = vmatprep.subr.mxu0 0.0
    %677 = vmatpush2.xpose.msra.mxu0 0.0
    %678 = vmatprep.mubr.f32.mxu0 0.0
    %679 = vmatmul.mubr.f32.gmra.mxu0 %v610
    %v680 = vpop.f32.mrf.mxu0
    %v681 = vadd.f32 0.0, %v680
    %v682 = vpop.f32.mrf.mxu0
    %683 = vdwg.mxu0
    %684 = vrot.lane.b32.xlu0 %v224, 96
    %v685 = vpop.permute.xlu0 %684
    %v686 = vsel %vm229, %v224, 0
    %v688 = vsel %vm229, %v685, 0
    %690 = vmatprep.subr.mxu0 0.0
    %691 = vmatpush1.xpose.msra.mxu0 0.0
    %692 = vmatprep.subr.mxu0 0.0
    %693 = vmatpush1.xpose.msra.mxu0 0.0
    %694 = vmatprep.subr.mxu0 0.0
    %695 = vmatpush1.xpose.msra.mxu0 0.0
    %696 = vmatprep.subr.mxu0 0.0
    %697 = vmatpush1.xpose.msra.mxu0 0.0
    %698 = vmatprep.subr.mxu0 0.0
    %699 = vmatpush1.xpose.msra.mxu0 0.0
    %700 = vmatprep.subr.mxu0 0.0
    %701 = vmatpush1.xpose.msra.mxu0 0.0
    %702 = vmatprep.subr.mxu0 0.0
    %703 = vmatpush1.xpose.msra.mxu0 0.0
    %704 = vmatprep.subr.mxu0 0.0
    %705 = vmatpush1.xpose.msra.mxu0 0.0
    %706 = vmatprep.subr.mxu0 0.0
    %707 = vmatpush1.xpose.msra.mxu0 0.0
    %708 = vmatprep.subr.mxu0 0.0
    %709 = vmatpush1.xpose.msra.mxu0 0.0
    %710 = vmatprep.subr.mxu0 0.0
    %711 = vmatpush1.xpose.msra.mxu0 0.0
    %712 = vmatprep.subr.mxu0 0.0
    %713 = vmatpush1.xpose.msra.mxu0 0.0
    %714 = vmatprep.subr.mxu0 0.0
    %715 = vmatpush1.xpose.msra.mxu0 0.0
    %716 = vmatprep.subr.mxu0 0.0
    %717 = vmatpush1.xpose.msra.mxu0 0.0
    %718 = vmatprep.subr.mxu0 0.0
    %719 = vmatpush1.xpose.msra.mxu0 0.0
    %720 = vmatprep.subr.mxu0 0.0
    %721 = vmatpush1.xpose.msra.mxu0 %v688
    %722 = vmatprep.subr.mxu0 0.0
    %723 = vmatpush2.xpose.msra.mxu0 0.0
    %724 = vmatprep.subr.mxu0 0.0
    %725 = vmatpush2.xpose.msra.mxu0 0.0
    %726 = vmatprep.subr.mxu0 0.0
    %727 = vmatpush2.xpose.msra.mxu0 0.0
    %728 = vmatprep.subr.mxu0 0.0
    %729 = vmatpush2.xpose.msra.mxu0 0.0
    %730 = vmatprep.subr.mxu0 0.0
    %731 = vmatpush2.xpose.msra.mxu0 0.0
    %732 = vmatprep.subr.mxu0 0.0
    %733 = vmatpush2.xpose.msra.mxu0 0.0
    %734 = vmatprep.subr.mxu0 0.0
    %735 = vmatpush2.xpose.msra.mxu0 0.0
    %736 = vmatprep.subr.mxu0 0.0
    %737 = vmatpush2.xpose.msra.mxu0 0.0
    %738 = vmatprep.subr.mxu0 0.0
    %739 = vmatpush2.xpose.msra.mxu0 0.0
    %740 = vmatprep.subr.mxu0 0.0
    %741 = vmatpush2.xpose.msra.mxu0 0.0
    %742 = vmatprep.subr.mxu0 0.0
    %743 = vmatpush2.xpose.msra.mxu0 0.0
    %744 = vmatprep.subr.mxu0 0.0
    %745 = vmatpush2.xpose.msra.mxu0 0.0
    %746 = vmatprep.subr.mxu0 0.0
    %747 = vmatpush2.xpose.msra.mxu0 0.0
    %748 = vmatprep.subr.mxu0 0.0
    %749 = vmatpush2.xpose.msra.mxu0 0.0
    %750 = vmatprep.subr.mxu0 0.0
    %751 = vmatpush2.xpose.msra.mxu0 0.0
    %752 = vmatprep.subr.mxu0 0.0
    %753 = vmatpush2.xpose.msra.mxu0 0.0
    %754 = vmatprep.mubr.f32.mxu0 0.0
    %755 = vmatmul.mubr.f32.gmra.mxu0 %v686
    %v756 = vpop.f32.mrf.mxu0
    %v757 = vadd.f32 0.0, %v756
    %v758 = vpop.f32.mrf.mxu0
    %759 = vdwg.mxu0
    %760 = vrot.lane.b32.xlu0 %v226, 96
    %v761 = vpop.permute.xlu0 %760
    %v762 = vsel %vm229, %v226, 0
    %v764 = vsel %vm229, %v761, 0
    %766 = vmatprep.subr.mxu0 0.0
    %767 = vmatpush1.xpose.msra.mxu0 0.0
    %768 = vmatprep.subr.mxu0 0.0
    %769 = vmatpush1.xpose.msra.mxu0 0.0
    %770 = vmatprep.subr.mxu0 0.0
    %771 = vmatpush1.xpose.msra.mxu0 0.0
    %772 = vmatprep.subr.mxu0 0.0
    %773 = vmatpush1.xpose.msra.mxu0 0.0
    %774 = vmatprep.subr.mxu0 0.0
    %775 = vmatpush1.xpose.msra.mxu0 0.0
    %776 = vmatprep.subr.mxu0 0.0
    %777 = vmatpush1.xpose.msra.mxu0 0.0
    %778 = vmatprep.subr.mxu0 0.0
    %779 = vmatpush1.xpose.msra.mxu0 0.0
    %780 = vmatprep.subr.mxu0 0.0
    %781 = vmatpush1.xpose.msra.mxu0 0.0
    %782 = vmatprep.subr.mxu0 0.0
    %783 = vmatpush1.xpose.msra.mxu0 0.0
    %784 = vmatprep.subr.mxu0 0.0
    %785 = vmatpush1.xpose.msra.mxu0 0.0
    %786 = vmatprep.subr.mxu0 0.0
    %787 = vmatpush1.xpose.msra.mxu0 0.0
    %788 = vmatprep.subr.mxu0 0.0
    %789 = vmatpush1.xpose.msra.mxu0 0.0
    %790 = vmatprep.subr.mxu0 0.0
    %791 = vmatpush1.xpose.msra.mxu0 0.0
    %792 = vmatprep.subr.mxu0 0.0
    %793 = vmatpush1.xpose.msra.mxu0 0.0
    %794 = vmatprep.subr.mxu0 0.0
    %795 = vmatpush1.xpose.msra.mxu0 0.0
    %796 = vmatprep.subr.mxu0 0.0
    %797 = vmatpush1.xpose.msra.mxu0 %v764
    %798 = vmatprep.subr.mxu0 0.0
    %799 = vmatpush2.xpose.msra.mxu0 0.0
    %800 = vmatprep.subr.mxu0 0.0
    %801 = vmatpush2.xpose.msra.mxu0 0.0
    %802 = vmatprep.subr.mxu0 0.0
    %803 = vmatpush2.xpose.msra.mxu0 0.0
    %804 = vmatprep.subr.mxu0 0.0
    %805 = vmatpush2.xpose.msra.mxu0 0.0
    %806 = vmatprep.subr.mxu0 0.0
    %807 = vmatpush2.xpose.msra.mxu0 0.0
    %808 = vmatprep.subr.mxu0 0.0
    %809 = vmatpush2.xpose.msra.mxu0 0.0
    %810 = vmatprep.subr.mxu0 0.0
    %811 = vmatpush2.xpose.msra.mxu0 0.0
    %812 = vmatprep.subr.mxu0 0.0
    %813 = vmatpush2.xpose.msra.mxu0 0.0
    %814 = vmatprep.subr.mxu0 0.0
    %815 = vmatpush2.xpose.msra.mxu0 0.0
    %816 = vmatprep.subr.mxu0 0.0
    %817 = vmatpush2.xpose.msra.mxu0 0.0
    %818 = vmatprep.subr.mxu0 0.0
    %819 = vmatpush2.xpose.msra.mxu0 0.0
    %820 = vmatprep.subr.mxu0 0.0
    %821 = vmatpush2.xpose.msra.mxu0 0.0
    %822 = vmatprep.subr.mxu0 0.0
    %823 = vmatpush2.xpose.msra.mxu0 0.0
    %824 = vmatprep.subr.mxu0 0.0
    %825 = vmatpush2.xpose.msra.mxu0 0.0
    %826 = vmatprep.subr.mxu0 0.0
    %827 = vmatpush2.xpose.msra.mxu0 0.0
    %828 = vmatprep.subr.mxu0 0.0
    %829 = vmatpush2.xpose.msra.mxu0 0.0
    %830 = vmatprep.mubr.f32.mxu0 0.0
    %831 = vmatmul.mubr.f32.gmra.mxu0 %v762
    %v832 = vpop.f32.mrf.mxu0
    %v833 = vadd.f32 0.0, %v832
    %v834 = vpop.f32.mrf.mxu0
    %835 = vdwg.mxu0
    %v836 = vmul.f32 %v301, 0.35355338
    %v837 = vmul.f32 %v377, 0.35355338
    %v838 = vmul.f32 %v453, 0.35355338
    %v839 = vmul.f32 %v529, 0.35355338
    %v840 = vmul.f32 %v605, 0.35355338
    %v841 = vmul.f32 %v681, 0.35355338
    %v842 = vmul.f32 %v757, 0.35355338
    %v843 = vmul.f32 %v833, 0.35355338
    %v844 = vsel %vm229, %v836, -inf
    %845 = vmax.xlane.f32.xlu0 %v844
    %v846 = vpop.xlane.xlu0 %845
    %v847 = vsel %vm229, %v837, -inf
    %848 = vmax.xlane.f32.xlu0 %v847
    %v849 = vpop.xlane.xlu0 %848
    %v850 = vsel %vm229, %v838, -inf
    %851 = vmax.xlane.f32.xlu0 %v850
    %v852 = vpop.xlane.xlu0 %851
    %v853 = vsel %vm229, %v839, -inf
    %854 = vmax.xlane.f32.xlu0 %v853
    %v855 = vpop.xlane.xlu0 %854
    %v856 = vsel %vm229, %v840, -inf
    %857 = vmax.xlane.f32.xlu0 %v856
    %v858 = vpop.xlane.xlu0 %857
    %v859 = vsel %vm229, %v841, -inf
    %860 = vmax.xlane.f32.xlu0 %v859
    %v861 = vpop.xlane.xlu0 %860
    %v862 = vsel %vm229, %v842, -inf
    %863 = vmax.xlane.f32.xlu0 %v862
    %v864 = vpop.xlane.xlu0 %863
    %v865 = vsel %vm229, %v843, -inf
    %866 = vmax.xlane.f32.xlu0 %v865
    %v867 = vpop.xlane.xlu0 %866
    %v868 = vsub.f32 %v836, %v846
    %v869 = vsub.f32 %v837, %v849
    %v870 = vsub.f32 %v838, %v852
    %v871 = vsub.f32 %v839, %v855
    %v872 = vsub.f32 %v840, %v858
    %v873 = vsub.f32 %v841, %v861
    %v874 = vsub.f32 %v842, %v864
    %v875 = vsub.f32 %v843, %v867
    %v876 = vmul.f32 %v868, 1.442695
    %v877 = vpow.pop %v876
    %v878 = vmul.f32 %v869, 1.442695
    %v879 = vpow.pop %v878
    %v880 = vmul.f32 %v870, 1.442695
    %v881 = vpow.pop %v880
    %v882 = vmul.f32 %v871, 1.442695
    %v883 = vpow.pop %v882
    %v884 = vmul.f32 %v872, 1.442695
    %v885 = vpow.pop %v884
    %v886 = vmul.f32 %v873, 1.442695
    %v887 = vpow.pop %v886
    %v888 = vmul.f32 %v874, 1.442695
    %v889 = vpow.pop %v888
    %v890 = vmul.f32 %v875, 1.442695
    %v891 = vpow.pop %v890
    %v892 = vsel %vm229, %v877, 0.0
    %893 = vadd.xlane.f32.xlu0 %v892
    %v894 = vpop.xlane.xlu0 %893
    %v895 = vsel %vm229, %v879, 0.0
    %896 = vadd.xlane.f32.xlu0 %v895
    %v897 = vpop.xlane.xlu0 %896
    %v898 = vsel %vm229, %v881, 0.0
    %899 = vadd.xlane.f32.xlu0 %v898
    %v900 = vpop.xlane.xlu0 %899
    %v901 = vsel %vm229, %v883, 0.0
    %902 = vadd.xlane.f32.xlu0 %v901
    %v903 = vpop.xlane.xlu0 %902
    %v904 = vsel %vm229, %v885, 0.0
    %905 = vadd.xlane.f32.xlu0 %v904
    %v906 = vpop.xlane.xlu0 %905
    %v907 = vsel %vm229, %v887, 0.0
    %908 = vadd.xlane.f32.xlu0 %v907
    %v909 = vpop.xlane.xlu0 %908
    %v910 = vsel %vm229, %v889, 0.0
    %911 = vadd.xlane.f32.xlu0 %v910
    %v912 = vpop.xlane.xlu0 %911
    %v913 = vsel %vm229, %v891, 0.0
    %914 = vadd.xlane.f32.xlu0 %v913
    %v915 = vpop.xlane.xlu0 %914
    %v916 = vrcp.pop %v894
    %v917 = vrcp.pop %v897
    %v918 = vrcp.pop %v900
    %v919 = vrcp.pop %v903
    %v920 = vrcp.pop %v906
    %v921 = vrcp.pop %v909
    %v922 = vrcp.pop %v912
    %v923 = vrcp.pop %v915
    %v924 = vmul.f32 %v877, %v916
    %v925 = vmul.f32 %v879, %v917
    %v926 = vmul.f32 %v881, %v918
    %v927 = vmul.f32 %v883, %v919
    %v928 = vmul.f32 %v885, %v920
    %v929 = vmul.f32 %v887, %v921
    %v930 = vmul.f32 %v889, %v922
    %v931 = vmul.f32 %v891, %v923
    %932 = vrot.lane.b32.xlu0 %v205, 64
    %v933 = vpop.permute.xlu0 %932
    %v936 = vsel %vm229, %v924, 0
    %938 = vmatprep.subr.mxu0 0.0
    %939 = vmatpush1.msra.mxu0 0.0
    %940 = vmatprep.subr.mxu0 0.0
    %941 = vmatpush1.msra.mxu0 0.0
    %942 = vmatprep.subr.mxu0 0.0
    %943 = vmatpush1.msra.mxu0 0.0
    %944 = vmatprep.subr.mxu0 0.0
    %945 = vmatpush1.msra.mxu0 0.0
    %946 = vmatprep.subr.mxu0 0.0
    %947 = vmatpush1.msra.mxu0 0.0
    %948 = vmatprep.subr.mxu0 0.0
    %949 = vmatpush1.msra.mxu0 0.0
    %950 = vmatprep.subr.mxu0 0.0
    %951 = vmatpush1.msra.mxu0 0.0
    %952 = vmatprep.subr.mxu0 0.0
    %953 = vmatpush1.msra.mxu0 0.0
    %954 = vmatprep.subr.mxu0 0.0
    %955 = vmatpush1.msra.mxu0 0.0
    %956 = vmatprep.subr.mxu0 0.0
    %957 = vmatpush1.msra.mxu0 0.0
    %958 = vmatprep.subr.mxu0 0.0
    %959 = vmatpush1.msra.mxu0 0.0
    %960 = vmatprep.subr.mxu0 0.0
    %961 = vmatpush1.msra.mxu0 0.0
    %962 = vmatprep.subr.mxu0 0.0
    %963 = vmatpush1.msra.mxu0 0.0
    %964 = vmatprep.subr.mxu0 0.0
    %965 = vmatpush1.msra.mxu0 0.0
    %966 = vmatprep.subr.mxu0 0.0
    %967 = vmatpush1.msra.mxu0 0.0
    %968 = vmatprep.subr.mxu0 0.0
    %969 = vmatpush1.msra.mxu0 %v933
    %970 = vmatprep.subr.mxu0 0.0
    %971 = vmatpush2.msra.mxu0 0.0
    %972 = vmatprep.subr.mxu0 0.0
    %973 = vmatpush2.msra.mxu0 0.0
    %974 = vmatprep.subr.mxu0 0.0
    %975 = vmatpush2.msra.mxu0 0.0
    %976 = vmatprep.subr.mxu0 0.0
    %977 = vmatpush2.msra.mxu0 0.0
    %978 = vmatprep.subr.mxu0 0.0
    %979 = vmatpush2.msra.mxu0 0.0
    %980 = vmatprep.subr.mxu0 0.0
    %981 = vmatpush2.msra.mxu0 0.0
    %982 = vmatprep.subr.mxu0 0.0
    %983 = vmatpush2.msra.mxu0 0.0
    %984 = vmatprep.subr.mxu0 0.0
    %985 = vmatpush2.msra.mxu0 0.0
    %986 = vmatprep.subr.mxu0 0.0
    %987 = vmatpush2.msra.mxu0 0.0
    %988 = vmatprep.subr.mxu0 0.0
    %989 = vmatpush2.msra.mxu0 0.0
    %990 = vmatprep.subr.mxu0 0.0
    %991 = vmatpush2.msra.mxu0 0.0
    %992 = vmatprep.subr.mxu0 0.0
    %993 = vmatpush2.msra.mxu0 0.0
    %994 = vmatprep.subr.mxu0 0.0
    %995 = vmatpush2.msra.mxu0 0.0
    %996 = vmatprep.subr.mxu0 0.0
    %997 = vmatpush2.msra.mxu0 0.0
    %998 = vmatprep.subr.mxu0 0.0
    %999 = vmatpush2.msra.mxu0 0.0
    %1000 = vmatprep.subr.mxu0 0.0
    %1001 = vmatpush2.msra.mxu0 0.0
    %1002 = vmatprep.mubr.f32.mxu0 0.0
    %1003 = vmatmul.mubr.f32.gmra.mxu0 %v936
    %v1004 = vpop.f32.mrf.mxu0
    %v1005 = vadd.f32 0.0, %v1004
    %v1006 = vpop.f32.mrf.mxu0
    %1007 = vdwg.mxu0
    %1008 = vrot.lane.b32.xlu0 %v215, 64
    %v1009 = vpop.permute.xlu0 %1008
    %v1012 = vsel %vm229, %v925, 0
    %1014 = vmatprep.subr.mxu0 0.0
    %1015 = vmatpush1.msra.mxu0 0.0
    %1016 = vmatprep.subr.mxu0 0.0
    %1017 = vmatpush1.msra.mxu0 0.0
    %1018 = vmatprep.subr.mxu0 0.0
    %1019 = vmatpush1.msra.mxu0 0.0
    %1020 = vmatprep.subr.mxu0 0.0
    %1021 = vmatpush1.msra.mxu0 0.0
    %1022 = vmatprep.subr.mxu0 0.0
    %1023 = vmatpush1.msra.mxu0 0.0
    %1024 = vmatprep.subr.mxu0 0.0
    %1025 = vmatpush1.msra.mxu0 0.0
    %1026 = vmatprep.subr.mxu0 0.0
    %1027 = vmatpush1.msra.mxu0 0.0
    %1028 = vmatprep.subr.mxu0 0.0
    %1029 = vmatpush1.msra.mxu0 0.0
    %1030 = vmatprep.subr.mxu0 0.0
    %1031 = vmatpush1.msra.mxu0 0.0
    %1032 = vmatprep.subr.mxu0 0.0
    %1033 = vmatpush1.msra.mxu0 0.0
    %1034 = vmatprep.subr.mxu0 0.0
    %1035 = vmatpush1.msra.mxu0 0.0
    %1036 = vmatprep.subr.mxu0 0.0
    %1037 = vmatpush1.msra.mxu0 0.0
    %1038 = vmatprep.subr.mxu0 0.0
    %1039 = vmatpush1.msra.mxu0 0.0
    %1040 = vmatprep.subr.mxu0 0.0
    %1041 = vmatpush1.msra.mxu0 0.0
    %1042 = vmatprep.subr.mxu0 0.0
    %1043 = vmatpush1.msra.mxu0 0.0
    %1044 = vmatprep.subr.mxu0 0.0
    %1045 = vmatpush1.msra.mxu0 %v1009
    %1046 = vmatprep.subr.mxu0 0.0
    %1047 = vmatpush2.msra.mxu0 0.0
    %1048 = vmatprep.subr.mxu0 0.0
    %1049 = vmatpush2.msra.mxu0 0.0
    %1050 = vmatprep.subr.mxu0 0.0
    %1051 = vmatpush2.msra.mxu0 0.0
    %1052 = vmatprep.subr.mxu0 0.0
    %1053 = vmatpush2.msra.mxu0 0.0
    %1054 = vmatprep.subr.mxu0 0.0
    %1055 = vmatpush2.msra.mxu0 0.0
    %1056 = vmatprep.subr.mxu0 0.0
    %1057 = vmatpush2.msra.mxu0 0.0
    %1058 = vmatprep.subr.mxu0 0.0
    %1059 = vmatpush2.msra.mxu0 0.0
    %1060 = vmatprep.subr.mxu0 0.0
    %1061 = vmatpush2.msra.mxu0 0.0
    %1062 = vmatprep.subr.mxu0 0.0
    %1063 = vmatpush2.msra.mxu0 0.0
    %1064 = vmatprep.subr.mxu0 0.0
    %1065 = vmatpush2.msra.mxu0 0.0
    %1066 = vmatprep.subr.mxu0 0.0
    %1067 = vmatpush2.msra.mxu0 0.0
    %1068 = vmatprep.subr.mxu0 0.0
    %1069 = vmatpush2.msra.mxu0 0.0
    %1070 = vmatprep.subr.mxu0 0.0
    %1071 = vmatpush2.msra.mxu0 0.0
    %1072 = vmatprep.subr.mxu0 0.0
    %1073 = vmatpush2.msra.mxu0 0.0
    %1074 = vmatprep.subr.mxu0 0.0
    %1075 = vmatpush2.msra.mxu0 0.0
    %1076 = vmatprep.subr.mxu0 0.0
    %1077 = vmatpush2.msra.mxu0 0.0
    %1078 = vmatprep.mubr.f32.mxu0 0.0
    %1079 = vmatmul.mubr.f32.gmra.mxu0 %v1012
    %v1080 = vpop.f32.mrf.mxu0
    %v1081 = vadd.f32 0.0, %v1080
    %v1082 = vpop.f32.mrf.mxu0
    %1083 = vdwg.mxu0
    %1084 = vrot.lane.b32.xlu0 %v217, 64
    %v1085 = vpop.permute.xlu0 %1084
    %v1088 = vsel %vm229, %v926, 0
    %1090 = vmatprep.subr.mxu0 0.0
    %1091 = vmatpush1.msra.mxu0 0.0
    %1092 = vmatprep.subr.mxu0 0.0
    %1093 = vmatpush1.msra.mxu0 0.0
    %1094 = vmatprep.subr.mxu0 0.0
    %1095 = vmatpush1.msra.mxu0 0.0
    %1096 = vmatprep.subr.mxu0 0.0
    %1097 = vmatpush1.msra.mxu0 0.0
    %1098 = vmatprep.subr.mxu0 0.0
    %1099 = vmatpush1.msra.mxu0 0.0
    %1100 = vmatprep.subr.mxu0 0.0
    %1101 = vmatpush1.msra.mxu0 0.0
    %1102 = vmatprep.subr.mxu0 0.0
    %1103 = vmatpush1.msra.mxu0 0.0
    %1104 = vmatprep.subr.mxu0 0.0
    %1105 = vmatpush1.msra.mxu0 0.0
    %1106 = vmatprep.subr.mxu0 0.0
    %1107 = vmatpush1.msra.mxu0 0.0
    %1108 = vmatprep.subr.mxu0 0.0
    %1109 = vmatpush1.msra.mxu0 0.0
    %1110 = vmatprep.subr.mxu0 0.0
    %1111 = vmatpush1.msra.mxu0 0.0
    %1112 = vmatprep.subr.mxu0 0.0
    %1113 = vmatpush1.msra.mxu0 0.0
    %1114 = vmatprep.subr.mxu0 0.0
    %1115 = vmatpush1.msra.mxu0 0.0
    %1116 = vmatprep.subr.mxu0 0.0
    %1117 = vmatpush1.msra.mxu0 0.0
    %1118 = vmatprep.subr.mxu0 0.0
    %1119 = vmatpush1.msra.mxu0 0.0
    %1120 = vmatprep.subr.mxu0 0.0
    %1121 = vmatpush1.msra.mxu0 %v1085
    %1122 = vmatprep.subr.mxu0 0.0
    %1123 = vmatpush2.msra.mxu0 0.0
    %1124 = vmatprep.subr.mxu0 0.0
    %1125 = vmatpush2.msra.mxu0 0.0
    %1126 = vmatprep.subr.mxu0 0.0
    %1127 = vmatpush2.msra.mxu0 0.0
    %1128 = vmatprep.subr.mxu0 0.0
    %1129 = vmatpush2.msra.mxu0 0.0
    %1130 = vmatprep.subr.mxu0 0.0
    %1131 = vmatpush2.msra.mxu0 0.0
    %1132 = vmatprep.subr.mxu0 0.0
    %1133 = vmatpush2.msra.mxu0 0.0
    %1134 = vmatprep.subr.mxu0 0.0
    %1135 = vmatpush2.msra.mxu0 0.0
    %1136 = vmatprep.subr.mxu0 0.0
    %1137 = vmatpush2.msra.mxu0 0.0
    %1138 = vmatprep.subr.mxu0 0.0
    %1139 = vmatpush2.msra.mxu0 0.0
    %1140 = vmatprep.subr.mxu0 0.0
    %1141 = vmatpush2.msra.mxu0 0.0
    %1142 = vmatprep.subr.mxu0 0.0
    %1143 = vmatpush2.msra.mxu0 0.0
    %1144 = vmatprep.subr.mxu0 0.0
    %1145 = vmatpush2.msra.mxu0 0.0
    %1146 = vmatprep.subr.mxu0 0.0
    %1147 = vmatpush2.msra.mxu0 0.0
    %1148 = vmatprep.subr.mxu0 0.0
    %1149 = vmatpush2.msra.mxu0 0.0
    %1150 = vmatprep.subr.mxu0 0.0
    %1151 = vmatpush2.msra.mxu0 0.0
    %1152 = vmatprep.subr.mxu0 0.0
    %1153 = vmatpush2.msra.mxu0 0.0
    %1154 = vmatprep.mubr.f32.mxu0 0.0
    %1155 = vmatmul.mubr.f32.gmra.mxu0 %v1088
    %v1156 = vpop.f32.mrf.mxu0
    %v1157 = vadd.f32 0.0, %v1156
    %v1158 = vpop.f32.mrf.mxu0
    %1159 = vdwg.mxu0
    %1160 = vrot.lane.b32.xlu0 %v219, 64
    %v1161 = vpop.permute.xlu0 %1160
    %v1164 = vsel %vm229, %v927, 0
    %1166 = vmatprep.subr.mxu0 0.0
    %1167 = vmatpush1.msra.mxu0 0.0
    %1168 = vmatprep.subr.mxu0 0.0
    %1169 = vmatpush1.msra.mxu0 0.0
    %1170 = vmatprep.subr.mxu0 0.0
    %1171 = vmatpush1.msra.mxu0 0.0
    %1172 = vmatprep.subr.mxu0 0.0
    %1173 = vmatpush1.msra.mxu0 0.0
    %1174 = vmatprep.subr.mxu0 0.0
    %1175 = vmatpush1.msra.mxu0 0.0
    %1176 = vmatprep.subr.mxu0 0.0
    %1177 = vmatpush1.msra.mxu0 0.0
    %1178 = vmatprep.subr.mxu0 0.0
    %1179 = vmatpush1.msra.mxu0 0.0
    %1180 = vmatprep.subr.mxu0 0.0
    %1181 = vmatpush1.msra.mxu0 0.0
    %1182 = vmatprep.subr.mxu0 0.0
    %1183 = vmatpush1.msra.mxu0 0.0
    %1184 = vmatprep.subr.mxu0 0.0
    %1185 = vmatpush1.msra.mxu0 0.0
    %1186 = vmatprep.subr.mxu0 0.0
    %1187 = vmatpush1.msra.mxu0 0.0
    %1188 = vmatprep.subr.mxu0 0.0
    %1189 = vmatpush1.msra.mxu0 0.0
    %1190 = vmatprep.subr.mxu0 0.0
    %1191 = vmatpush1.msra.mxu0 0.0
    %1192 = vmatprep.subr.mxu0 0.0
    %1193 = vmatpush1.msra.mxu0 0.0
    %1194 = vmatprep.subr.mxu0 0.0
    %1195 = vmatpush1.msra.mxu0 0.0
    %1196 = vmatprep.subr.mxu0 0.0
    %1197 = vmatpush1.msra.mxu0 %v1161
    %1198 = vmatprep.subr.mxu0 0.0
    %1199 = vmatpush2.msra.mxu0 0.0
    %1200 = vmatprep.subr.mxu0 0.0
    %1201 = vmatpush2.msra.mxu0 0.0
    %1202 = vmatprep.subr.mxu0 0.0
    %1203 = vmatpush2.msra.mxu0 0.0
    %1204 = vmatprep.subr.mxu0 0.0
    %1205 = vmatpush2.msra.mxu0 0.0
    %1206 = vmatprep.subr.mxu0 0.0
    %1207 = vmatpush2.msra.mxu0 0.0
    %1208 = vmatprep.subr.mxu0 0.0
    %1209 = vmatpush2.msra.mxu0 0.0
    %1210 = vmatprep.subr.mxu0 0.0
    %1211 = vmatpush2.msra.mxu0 0.0
    %1212 = vmatprep.subr.mxu0 0.0
    %1213 = vmatpush2.msra.mxu0 0.0
    %1214 = vmatprep.subr.mxu0 0.0
    %1215 = vmatpush2.msra.mxu0 0.0
    %1216 = vmatprep.subr.mxu0 0.0
    %1217 = vmatpush2.msra.mxu0 0.0
    %1218 = vmatprep.subr.mxu0 0.0
    %1219 = vmatpush2.msra.mxu0 0.0
    %1220 = vmatprep.subr.mxu0 0.0
    %1221 = vmatpush2.msra.mxu0 0.0
    %1222 = vmatprep.subr.mxu0 0.0
    %1223 = vmatpush2.msra.mxu0 0.0
    %1224 = vmatprep.subr.mxu0 0.0
    %1225 = vmatpush2.msra.mxu0 0.0
    %1226 = vmatprep.subr.mxu0 0.0
    %1227 = vmatpush2.msra.mxu0 0.0
    %1228 = vmatprep.subr.mxu0 0.0
    %1229 = vmatpush2.msra.mxu0 0.0
    %1230 = vmatprep.mubr.f32.mxu0 0.0
    %1231 = vmatmul.mubr.f32.gmra.mxu0 %v1164
    %v1232 = vpop.f32.mrf.mxu0
    %v1233 = vadd.f32 0.0, %v1232
    %v1234 = vpop.f32.mrf.mxu0
    %1235 = vdwg.mxu0
    %1236 = vrot.lane.b32.xlu0 %v210, 64
    %v1237 = vpop.permute.xlu0 %1236
    %v1240 = vsel %vm229, %v928, 0
    %1242 = vmatprep.subr.mxu0 0.0
    %1243 = vmatpush1.msra.mxu0 0.0
    %1244 = vmatprep.subr.mxu0 0.0
    %1245 = vmatpush1.msra.mxu0 0.0
    %1246 = vmatprep.subr.mxu0 0.0
    %1247 = vmatpush1.msra.mxu0 0.0
    %1248 = vmatprep.subr.mxu0 0.0
    %1249 = vmatpush1.msra.mxu0 0.0
    %1250 = vmatprep.subr.mxu0 0.0
    %1251 = vmatpush1.msra.mxu0 0.0
    %1252 = vmatprep.subr.mxu0 0.0
    %1253 = vmatpush1.msra.mxu0 0.0
    %1254 = vmatprep.subr.mxu0 0.0
    %1255 = vmatpush1.msra.mxu0 0.0
    %1256 = vmatprep.subr.mxu0 0.0
    %1257 = vmatpush1.msra.mxu0 0.0
    %1258 = vmatprep.subr.mxu0 0.0
    %1259 = vmatpush1.msra.mxu0 0.0
    %1260 = vmatprep.subr.mxu0 0.0
    %1261 = vmatpush1.msra.mxu0 0.0
    %1262 = vmatprep.subr.mxu0 0.0
    %1263 = vmatpush1.msra.mxu0 0.0
    %1264 = vmatprep.subr.mxu0 0.0
    %1265 = vmatpush1.msra.mxu0 0.0
    %1266 = vmatprep.subr.mxu0 0.0
    %1267 = vmatpush1.msra.mxu0 0.0
    %1268 = vmatprep.subr.mxu0 0.0
    %1269 = vmatpush1.msra.mxu0 0.0
    %1270 = vmatprep.subr.mxu0 0.0
    %1271 = vmatpush1.msra.mxu0 0.0
    %1272 = vmatprep.subr.mxu0 0.0
    %1273 = vmatpush1.msra.mxu0 %v1237
    %1274 = vmatprep.subr.mxu0 0.0
    %1275 = vmatpush2.msra.mxu0 0.0
    %1276 = vmatprep.subr.mxu0 0.0
    %1277 = vmatpush2.msra.mxu0 0.0
    %1278 = vmatprep.subr.mxu0 0.0
    %1279 = vmatpush2.msra.mxu0 0.0
    %1280 = vmatprep.subr.mxu0 0.0
    %1281 = vmatpush2.msra.mxu0 0.0
    %1282 = vmatprep.subr.mxu0 0.0
    %1283 = vmatpush2.msra.mxu0 0.0
    %1284 = vmatprep.subr.mxu0 0.0
    %1285 = vmatpush2.msra.mxu0 0.0
    %1286 = vmatprep.subr.mxu0 0.0
    %1287 = vmatpush2.msra.mxu0 0.0
    %1288 = vmatprep.subr.mxu0 0.0
    %1289 = vmatpush2.msra.mxu0 0.0
    %1290 = vmatprep.subr.mxu0 0.0
    %1291 = vmatpush2.msra.mxu0 0.0
    %1292 = vmatprep.subr.mxu0 0.0
    %1293 = vmatpush2.msra.mxu0 0.0
    %1294 = vmatprep.subr.mxu0 0.0
    %1295 = vmatpush2.msra.mxu0 0.0
    %1296 = vmatprep.subr.mxu0 0.0
    %1297 = vmatpush2.msra.mxu0 0.0
    %1298 = vmatprep.subr.mxu0 0.0
    %1299 = vmatpush2.msra.mxu0 0.0
    %1300 = vmatprep.subr.mxu0 0.0
    %1301 = vmatpush2.msra.mxu0 0.0
    %1302 = vmatprep.subr.mxu0 0.0
    %1303 = vmatpush2.msra.mxu0 0.0
    %1304 = vmatprep.subr.mxu0 0.0
    %1305 = vmatpush2.msra.mxu0 0.0
    %1306 = vmatprep.mubr.f32.mxu0 0.0
    %1307 = vmatmul.mubr.f32.gmra.mxu0 %v1240
    %v1308 = vpop.f32.mrf.mxu0
    %v1309 = vadd.f32 0.0, %v1308
    %v1310 = vpop.f32.mrf.mxu0
    %1311 = vdwg.mxu0
    %1312 = vrot.lane.b32.xlu0 %v222, 64
    %v1313 = vpop.permute.xlu0 %1312
    %v1316 = vsel %vm229, %v929, 0
    %1318 = vmatprep.subr.mxu0 0.0
    %1319 = vmatpush1.msra.mxu0 0.0
    %1320 = vmatprep.subr.mxu0 0.0
    %1321 = vmatpush1.msra.mxu0 0.0
    %1322 = vmatprep.subr.mxu0 0.0
    %1323 = vmatpush1.msra.mxu0 0.0
    %1324 = vmatprep.subr.mxu0 0.0
    %1325 = vmatpush1.msra.mxu0 0.0
    %1326 = vmatprep.subr.mxu0 0.0
    %1327 = vmatpush1.msra.mxu0 0.0
    %1328 = vmatprep.subr.mxu0 0.0
    %1329 = vmatpush1.msra.mxu0 0.0
    %1330 = vmatprep.subr.mxu0 0.0
    %1331 = vmatpush1.msra.mxu0 0.0
    %1332 = vmatprep.subr.mxu0 0.0
    %1333 = vmatpush1.msra.mxu0 0.0
    %1334 = vmatprep.subr.mxu0 0.0
    %1335 = vmatpush1.msra.mxu0 0.0
    %1336 = vmatprep.subr.mxu0 0.0
    %1337 = vmatpush1.msra.mxu0 0.0
    %1338 = vmatprep.subr.mxu0 0.0
    %1339 = vmatpush1.msra.mxu0 0.0
    %1340 = vmatprep.subr.mxu0 0.0
    %1341 = vmatpush1.msra.mxu0 0.0
    %1342 = vmatprep.subr.mxu0 0.0
    %1343 = vmatpush1.msra.mxu0 0.0
    %1344 = vmatprep.subr.mxu0 0.0
    %1345 = vmatpush1.msra.mxu0 0.0
    %1346 = vmatprep.subr.mxu0 0.0
    %1347 = vmatpush1.msra.mxu0 0.0
    %1348 = vmatprep.subr.mxu0 0.0
    %1349 = vmatpush1.msra.mxu0 %v1313
    %1350 = vmatprep.subr.mxu0 0.0
    %1351 = vmatpush2.msra.mxu0 0.0
    %1352 = vmatprep.subr.mxu0 0.0
    %1353 = vmatpush2.msra.mxu0 0.0
    %1354 = vmatprep.subr.mxu0 0.0
    %1355 = vmatpush2.msra.mxu0 0.0
    %1356 = vmatprep.subr.mxu0 0.0
    %1357 = vmatpush2.msra.mxu0 0.0
    %1358 = vmatprep.subr.mxu0 0.0
    %1359 = vmatpush2.msra.mxu0 0.0
    %1360 = vmatprep.subr.mxu0 0.0
    %1361 = vmatpush2.msra.mxu0 0.0
    %1362 = vmatprep.subr.mxu0 0.0
    %1363 = vmatpush2.msra.mxu0 0.0
    %1364 = vmatprep.subr.mxu0 0.0
    %1365 = vmatpush2.msra.mxu0 0.0
    %1366 = vmatprep.subr.mxu0 0.0
    %1367 = vmatpush2.msra.mxu0 0.0
    %1368 = vmatprep.subr.mxu0 0.0
    %1369 = vmatpush2.msra.mxu0 0.0
    %1370 = vmatprep.subr.mxu0 0.0
    %1371 = vmatpush2.msra.mxu0 0.0
    %1372 = vmatprep.subr.mxu0 0.0
    %1373 = vmatpush2.msra.mxu0 0.0
    %1374 = vmatprep.subr.mxu0 0.0
    %1375 = vmatpush2.msra.mxu0 0.0
    %1376 = vmatprep.subr.mxu0 0.0
    %1377 = vmatpush2.msra.mxu0 0.0
    %1378 = vmatprep.subr.mxu0 0.0
    %1379 = vmatpush2.msra.mxu0 0.0
    %1380 = vmatprep.subr.mxu0 0.0
    %1381 = vmatpush2.msra.mxu0 0.0
    %1382 = vmatprep.mubr.f32.mxu0 0.0
    %1383 = vmatmul.mubr.f32.gmra.mxu0 %v1316
    %v1384 = vpop.f32.mrf.mxu0
    %v1385 = vadd.f32 0.0, %v1384
    %v1386 = vpop.f32.mrf.mxu0
    %1387 = vdwg.mxu0
    %1388 = vrot.lane.b32.xlu0 %v224, 64
    %v1389 = vpop.permute.xlu0 %1388
    %v1392 = vsel %vm229, %v930, 0
    %1394 = vmatprep.subr.mxu0 0.0
    %1395 = vmatpush1.msra.mxu0 0.0
    %1396 = vmatprep.subr.mxu0 0.0
    %1397 = vmatpush1.msra.mxu0 0.0
    %1398 = vmatprep.subr.mxu0 0.0
    %1399 = vmatpush1.msra.mxu0 0.0
    %1400 = vmatprep.subr.mxu0 0.0
    %1401 = vmatpush1.msra.mxu0 0.0
    %1402 = vmatprep.subr.mxu0 0.0
    %1403 = vmatpush1.msra.mxu0 0.0
    %1404 = vmatprep.subr.mxu0 0.0
    %1405 = vmatpush1.msra.mxu0 0.0
    %1406 = vmatprep.subr.mxu0 0.0
    %1407 = vmatpush1.msra.mxu0 0.0
    %1408 = vmatprep.subr.mxu0 0.0
    %1409 = vmatpush1.msra.mxu0 0.0
    %1410 = vmatprep.subr.mxu0 0.0
    %1411 = vmatpush1.msra.mxu0 0.0
    %1412 = vmatprep.subr.mxu0 0.0
    %1413 = vmatpush1.msra.mxu0 0.0
    %1414 = vmatprep.subr.mxu0 0.0
    %1415 = vmatpush1.msra.mxu0 0.0
    %1416 = vmatprep.subr.mxu0 0.0
    %1417 = vmatpush1.msra.mxu0 0.0
    %1418 = vmatprep.subr.mxu0 0.0
    %1419 = vmatpush1.msra.mxu0 0.0
    %1420 = vmatprep.subr.mxu0 0.0
    %1421 = vmatpush1.msra.mxu0 0.0
    %1422 = vmatprep.subr.mxu0 0.0
    %1423 = vmatpush1.msra.mxu0 0.0
    %1424 = vmatprep.subr.mxu0 0.0
    %1425 = vmatpush1.msra.mxu0 %v1389
    %1426 = vmatprep.subr.mxu0 0.0
    %1427 = vmatpush2.msra.mxu0 0.0
    %1428 = vmatprep.subr.mxu0 0.0
    %1429 = vmatpush2.msra.mxu0 0.0
    %1430 = vmatprep.subr.mxu0 0.0
    %1431 = vmatpush2.msra.mxu0 0.0
    %1432 = vmatprep.subr.mxu0 0.0
    %1433 = vmatpush2.msra.mxu0 0.0
    %1434 = vmatprep.subr.mxu0 0.0
    %1435 = vmatpush2.msra.mxu0 0.0
    %1436 = vmatprep.subr.mxu0 0.0
    %1437 = vmatpush2.msra.mxu0 0.0
    %1438 = vmatprep.subr.mxu0 0.0
    %1439 = vmatpush2.msra.mxu0 0.0
    %1440 = vmatprep.subr.mxu0 0.0
    %1441 = vmatpush2.msra.mxu0 0.0
    %1442 = vmatprep.subr.mxu0 0.0
    %1443 = vmatpush2.msra.mxu0 0.0
    %1444 = vmatprep.subr.mxu0 0.0
    %1445 = vmatpush2.msra.mxu0 0.0
    %1446 = vmatprep.subr.mxu0 0.0
    %1447 = vmatpush2.msra.mxu0 0.0
    %1448 = vmatprep.subr.mxu0 0.0
    %1449 = vmatpush2.msra.mxu0 0.0
    %1450 = vmatprep.subr.mxu0 0.0
    %1451 = vmatpush2.msra.mxu0 0.0
    %1452 = vmatprep.subr.mxu0 0.0
    %1453 = vmatpush2.msra.mxu0 0.0
    %1454 = vmatprep.subr.mxu0 0.0
    %1455 = vmatpush2.msra.mxu0 0.0
    %1456 = vmatprep.subr.mxu0 0.0
    %1457 = vmatpush2.msra.mxu0 0.0
    %1458 = vmatprep.mubr.f32.mxu0 0.0
    %1459 = vmatmul.mubr.f32.gmra.mxu0 %v1392
    %v1460 = vpop.f32.mrf.mxu0
    %v1461 = vadd.f32 0.0, %v1460
    %v1462 = vpop.f32.mrf.mxu0
    %1463 = vdwg.mxu0
    %1464 = vrot.lane.b32.xlu0 %v226, 64
    %v1465 = vpop.permute.xlu0 %1464
    %v1468 = vsel %vm229, %v931, 0
    %1470 = vmatprep.subr.mxu0 0.0
    %1471 = vmatpush1.msra.mxu0 0.0
    %1472 = vmatprep.subr.mxu0 0.0
    %1473 = vmatpush1.msra.mxu0 0.0
    %1474 = vmatprep.subr.mxu0 0.0
    %1475 = vmatpush1.msra.mxu0 0.0
    %1476 = vmatprep.subr.mxu0 0.0
    %1477 = vmatpush1.msra.mxu0 0.0
    %1478 = vmatprep.subr.mxu0 0.0
    %1479 = vmatpush1.msra.mxu0 0.0
    %1480 = vmatprep.subr.mxu0 0.0
    %1481 = vmatpush1.msra.mxu0 0.0
    %1482 = vmatprep.subr.mxu0 0.0
    %1483 = vmatpush1.msra.mxu0 0.0
    %1484 = vmatprep.subr.mxu0 0.0
    %1485 = vmatpush1.msra.mxu0 0.0
    %1486 = vmatprep.subr.mxu0 0.0
    %1487 = vmatpush1.msra.mxu0 0.0
    %1488 = vmatprep.subr.mxu0 0.0
    %1489 = vmatpush1.msra.mxu0 0.0
    %1490 = vmatprep.subr.mxu0 0.0
    %1491 = vmatpush1.msra.mxu0 0.0
    %1492 = vmatprep.subr.mxu0 0.0
    %1493 = vmatpush1.msra.mxu0 0.0
    %1494 = vmatprep.subr.mxu0 0.0
    %1495 = vmatpush1.msra.mxu0 0.0
    %1496 = vmatprep.subr.mxu0 0.0
    %1497 = vmatpush1.msra.mxu0 0.0
    %1498 = vmatprep.subr.mxu0 0.0
    %1499 = vmatpush1.msra.mxu0 0.0
    %1500 = vmatprep.subr.mxu0 0.0
    %1501 = vmatpush1.msra.mxu0 %v1465
    %1502 = vmatprep.subr.mxu0 0.0
    %1503 = vmatpush2.msra.mxu0 0.0
    %1504 = vmatprep.subr.mxu0 0.0
    %1505 = vmatpush2.msra.mxu0 0.0
    %1506 = vmatprep.subr.mxu0 0.0
    %1507 = vmatpush2.msra.mxu0 0.0
    %1508 = vmatprep.subr.mxu0 0.0
    %1509 = vmatpush2.msra.mxu0 0.0
    %1510 = vmatprep.subr.mxu0 0.0
    %1511 = vmatpush2.msra.mxu0 0.0
    %1512 = vmatprep.subr.mxu0 0.0
    %1513 = vmatpush2.msra.mxu0 0.0
    %1514 = vmatprep.subr.mxu0 0.0
    %1515 = vmatpush2.msra.mxu0 0.0
    %1516 = vmatprep.subr.mxu0 0.0
    %1517 = vmatpush2.msra.mxu0 0.0
    %1518 = vmatprep.subr.mxu0 0.0
    %1519 = vmatpush2.msra.mxu0 0.0
    %1520 = vmatprep.subr.mxu0 0.0
    %1521 = vmatpush2.msra.mxu0 0.0
    %1522 = vmatprep.subr.mxu0 0.0
    %1523 = vmatpush2.msra.mxu0 0.0
    %1524 = vmatprep.subr.mxu0 0.0
    %1525 = vmatpush2.msra.mxu0 0.0
    %1526 = vmatprep.subr.mxu0 0.0
    %1527 = vmatpush2.msra.mxu0 0.0
    %1528 = vmatprep.subr.mxu0 0.0
    %1529 = vmatpush2.msra.mxu0 0.0
    %1530 = vmatprep.subr.mxu0 0.0
    %1531 = vmatpush2.msra.mxu0 0.0
    %1532 = vmatprep.subr.mxu0 0.0
    %1533 = vmatpush2.msra.mxu0 0.0
    %1534 = vmatprep.mubr.f32.mxu0 0.0
    %1535 = vmatmul.mubr.f32.gmra.mxu0 %v1468
    %v1536 = vpop.f32.mrf.mxu0
    %v1537 = vadd.f32 0.0, %v1536
    %v1538 = vpop.f32.mrf.mxu0
    %1539 = vdwg.mxu0
    %1541 = vrot.lane.b32.xlu0 %v1081, 8
    %v1542 = vpop.permute.xlu0 %1541
    %1545 = vrot.lane.b32.xlu0 %v1157, 16
    %v1546 = vpop.permute.xlu0 %1545
    %1549 = vrot.lane.b32.xlu0 %v1233, 24
    %v1550 = vpop.permute.xlu0 %1549
    %v1552 = vsel %vm229, %v1005, %v1542
    %vm1553 = vcmask 130048
    %v1554 = vsel %vm1553, %v1552, %v1546
    %vm1555 = vcmask 195584
    %v1556 = vsel %vm1555, %v1554, %v1550
    %1558 = vrot.lane.b32.xlu0 %v1385, 8
    %v1559 = vpop.permute.xlu0 %1558
    %1562 = vrot.lane.b32.xlu0 %v1461, 16
    %v1563 = vpop.permute.xlu0 %1562
    %1566 = vrot.lane.b32.xlu0 %v1537, 24
    %v1567 = vpop.permute.xlu0 %1566
    %v1569 = vsel %vm229, %v1309, %v1559
    %v1570 = vsel %vm1553, %v1569, %v1563
    %v1571 = vsel %vm1555, %v1570, %v1567
    %v1572 = vld [vmem:[%s4] sm:$0xff]
    %v1573 = vld [vmem:[%s4 + $0x8] sm:$0xff]
    %v1574 = vld [vmem:[%s4 + $0x10] sm:$0xff]
    %v1575 = vld [vmem:[%s4 + $0x18] sm:$0xff]
    %v1576 = vld [vmem:[%s5] sm:$0x1]
    %v1578 = vlaneseq
    %v1579 = vshrl.u32 %v1578, 7
    %v1580 = vsub.s32 0, %v1579
    %v1581 = vrot.slane %v1576, %v1580
    %v1584 = vsel %vm80, %v1556, 0
    %v1587 = vsel %vm80, %v1571, 0
    %1589 = vmatprep.subr.mxu0 0.0
    %1590 = vmatpush1.msra.mxu0 0.0
    %1591 = vmatprep.subr.mxu0 0.0
    %1592 = vmatpush1.msra.mxu0 0.0
    %1593 = vmatprep.subr.mxu0 0.0
    %1594 = vmatpush1.msra.mxu0 0.0
    %1595 = vmatprep.subr.mxu0 0.0
    %1596 = vmatpush1.msra.mxu0 0.0
    %1597 = vmatprep.subr.mxu0 0.0
    %1598 = vmatpush1.msra.mxu0 0.0
    %1599 = vmatprep.subr.mxu0 0.0
    %1600 = vmatpush1.msra.mxu0 0.0
    %1601 = vmatprep.subr.mxu0 0.0
    %1602 = vmatpush1.msra.mxu0 0.0
    %1603 = vmatprep.subr.mxu0 0.0
    %1604 = vmatpush1.msra.mxu0 0.0
    %1605 = vmatprep.subr.mxu0 0.0
    %1606 = vmatpush1.msra.mxu0 0.0
    %1607 = vmatprep.subr.mxu0 0.0
    %1608 = vmatpush1.msra.mxu0 0.0
    %1609 = vmatprep.subr.mxu0 0.0
    %1610 = vmatpush1.msra.mxu0 0.0
    %1611 = vmatprep.subr.mxu0 0.0
    %1612 = vmatpush1.msra.mxu0 0.0
    %1613 = vmatprep.subr.mxu0 0.0
    %1614 = vmatpush1.msra.mxu0 %v1575
    %1615 = vmatprep.subr.mxu0 0.0
    %1616 = vmatpush1.msra.mxu0 %v1574
    %1617 = vmatprep.subr.mxu0 0.0
    %1618 = vmatpush1.msra.mxu0 %v1573
    %1619 = vmatprep.subr.mxu0 0.0
    %1620 = vmatpush1.msra.mxu0 %v1572
    %1621 = vmatprep.subr.mxu0 0.0
    %1622 = vmatpush2.msra.mxu0 0.0
    %1623 = vmatprep.subr.mxu0 0.0
    %1624 = vmatpush2.msra.mxu0 0.0
    %1625 = vmatprep.subr.mxu0 0.0
    %1626 = vmatpush2.msra.mxu0 0.0
    %1627 = vmatprep.subr.mxu0 0.0
    %1628 = vmatpush2.msra.mxu0 0.0
    %1629 = vmatprep.subr.mxu0 0.0
    %1630 = vmatpush2.msra.mxu0 0.0
    %1631 = vmatprep.subr.mxu0 0.0
    %1632 = vmatpush2.msra.mxu0 0.0
    %1633 = vmatprep.subr.mxu0 0.0
    %1634 = vmatpush2.msra.mxu0 0.0
    %1635 = vmatprep.subr.mxu0 0.0
    %1636 = vmatpush2.msra.mxu0 0.0
    %1637 = vmatprep.subr.mxu0 0.0
    %1638 = vmatpush2.msra.mxu0 0.0
    %1639 = vmatprep.subr.mxu0 0.0
    %1640 = vmatpush2.msra.mxu0 0.0
    %1641 = vmatprep.subr.mxu0 0.0
    %1642 = vmatpush2.msra.mxu0 0.0
    %1643 = vmatprep.subr.mxu0 0.0
    %1644 = vmatpush2.msra.mxu0 0.0
    %1645 = vmatprep.subr.mxu0 0.0
    %1646 = vmatpush2.msra.mxu0 0.0
    %1647 = vmatprep.subr.mxu0 0.0
    %1648 = vmatpush2.msra.mxu0 0.0
    %1649 = vmatprep.subr.mxu0 0.0
    %1650 = vmatpush2.msra.mxu0 0.0
    %1651 = vmatprep.subr.mxu0 0.0
    %1652 = vmatpush2.msra.mxu0 0.0
    %1653 = vmatprep.mubr.f32.mxu0 0.0
    %1654 = vmatmul.mubr.f32.gmra.mxu0 %v1584
    %v1655 = vpop.f32.mrf.mxu0
    %v1656 = vadd.f32 %v1581, %v1655
    %v1657 = vpop.f32.mrf.mxu0
    %1658 = vmatprep.mubr.f32.mxu0 0.0
    %1659 = vmatmul.mubr.f32.gmra.mxu0 %v1587
    %v1660 = vpop.f32.mrf.mxu0
    %v1661 = vadd.f32 %v1581, %v1660
    %v1662 = vpop.f32.mrf.mxu0
    %1663 = vdwg.mxu0
    %v1664 = vadd.f32 %v1656, %v76
    %v1665 = vadd.f32 %v1661, %v77
    %v1666 = vld [vmem:[%s6] sm:$0x1]
    %v1667 = vld [vmem:[%s7] sm:$0x1]
    %v1668 = vsel %vm80, %v1664, 0.0
    %1669 = vadd.xlane.f32.xlu0 %v1668
    %v1670 = vpop.xlane.xlu0 %1669
    %v1671 = vsel %vm80, %v1665, 0.0
    %1672 = vadd.xlane.f32.xlu0 %v1671
    %v1673 = vpop.xlane.xlu0 %1672
    %v1674 = vmul.f32 %v1670, %v87
    %v1675 = vmul.f32 %v1673, %v87
    %v1676 = vmul.f32 %v1664, %v1664
    %v1677 = vmul.f32 %v1665, %v1665
    %v1678 = vsel %vm80, %v1676, 0.0
    %1679 = vadd.xlane.f32.xlu0 %v1678
    %v1680 = vpop.xlane.xlu0 %1679
    %v1681 = vsel %vm80, %v1677, 0.0
    %1682 = vadd.xlane.f32.xlu0 %v1681
    %v1683 = vpop.xlane.xlu0 %1682
    %v1684 = vmul.f32 %v1680, %v87
    %v1685 = vmul.f32 %v1683, %v87
    %v1686 = vmul.f32 %v1674, %v1674
    %v1687 = vmul.f32 %v1675, %v1675
    %v1688 = vsub.f32 %v1684, %v1686
    %v1689 = vsub.f32 %v1685, %v1687
    %v1690 = vsub.f32 %v1664, %v1674
    %v1691 = vsub.f32 %v1665, %v1675
    %v1692 = vadd.f32 %v1688, 1e-05
    %v1693 = vadd.f32 %v1689, 1e-05
    %v1694 = vrsqrt.pop %v1692
    %v1695 = vrsqrt.pop %v1693
    %v1696 = vmul.f32 %v1690, %v1694
    %v1697 = vmul.f32 %v1691, %v1695
    %v1699 = vlaneseq
    %v1700 = vshrl.u32 %v1699, 7
    %v1701 = vsub.s32 0, %v1700
    %v1702 = vrot.slane %v1666, %v1701
    %v1704 = vmul.f32 %v1696, %v1702
    %v1705 = vmul.f32 %v1697, %v1702
    %v1707 = vlaneseq
    %v1708 = vshrl.u32 %v1707, 7
    %v1709 = vsub.s32 0, %v1708
    %v1710 = vrot.slane %v1667, %v1709
    %v1712 = vadd.f32 %v1704, %v1710
    %v1713 = vadd.f32 %v1705, %v1710
    %v1714 = vld [vmem:[%s8] sm:$0xff]
    %v1715 = vld [vmem:[%s8 + $0x8] sm:$0xff]
    %v1716 = vld [vmem:[%s8 + $0x10] sm:$0xff]
    %v1717 = vld [vmem:[%s8 + $0x18] sm:$0xff]
    %v1718 = vld [vmem:[%s9] sm:$0x1]
    %v1720 = vlaneseq
    %v1721 = vshrl.u32 %v1720, 7
    %v1722 = vsub.s32 0, %v1721
    %v1723 = vrot.slane %v1718, %v1722
    %v1726 = vsel %vm80, %v1712, 0
    %v1729 = vsel %vm80, %v1713, 0
    %1731 = vmatprep.subr.mxu0 0.0
    %1732 = vmatpush1.msra.mxu0 0.0
    %1733 = vmatprep.subr.mxu0 0.0
    %1734 = vmatpush1.msra.mxu0 0.0
    %1735 = vmatprep.subr.mxu0 0.0
    %1736 = vmatpush1.msra.mxu0 0.0
    %1737 = vmatprep.subr.mxu0 0.0
    %1738 = vmatpush1.msra.mxu0 0.0
    %1739 = vmatprep.subr.mxu0 0.0
    %1740 = vmatpush1.msra.mxu0 0.0
    %1741 = vmatprep.subr.mxu0 0.0
    %1742 = vmatpush1.msra.mxu0 0.0
    %1743 = vmatprep.subr.mxu0 0.0
    %1744 = vmatpush1.msra.mxu0 0.0
    %1745 = vmatprep.subr.mxu0 0.0
    %1746 = vmatpush1.msra.mxu0 0.0
    %1747 = vmatprep.subr.mxu0 0.0
    %1748 = vmatpush1.msra.mxu0 0.0
    %1749 = vmatprep.subr.mxu0 0.0
    %1750 = vmatpush1.msra.mxu0 0.0
    %1751 = vmatprep.subr.mxu0 0.0
    %1752 = vmatpush1.msra.mxu0 0.0
    %1753 = vmatprep.subr.mxu0 0.0
    %1754 = vmatpush1.msra.mxu0 0.0
    %1755 = vmatprep.subr.mxu0 0.0
    %1756 = vmatpush1.msra.mxu0 %v1717
    %1757 = vmatprep.subr.mxu0 0.0
    %1758 = vmatpush1.msra.mxu0 %v1716
    %1759 = vmatprep.subr.mxu0 0.0
    %1760 = vmatpush1.msra.mxu0 %v1715
    %1761 = vmatprep.subr.mxu0 0.0
    %1762 = vmatpush1.msra.mxu0 %v1714
    %1763 = vmatprep.subr.mxu0 0.0
    %1764 = vmatpush2.msra.mxu0 0.0
    %1765 = vmatprep.subr.mxu0 0.0
    %1766 = vmatpush2.msra.mxu0 0.0
    %1767 = vmatprep.subr.mxu0 0.0
    %1768 = vmatpush2.msra.mxu0 0.0
    %1769 = vmatprep.subr.mxu0 0.0
    %1770 = vmatpush2.msra.mxu0 0.0
    %1771 = vmatprep.subr.mxu0 0.0
    %1772 = vmatpush2.msra.mxu0 0.0
    %1773 = vmatprep.subr.mxu0 0.0
    %1774 = vmatpush2.msra.mxu0 0.0
    %1775 = vmatprep.subr.mxu0 0.0
    %1776 = vmatpush2.msra.mxu0 0.0
    %1777 = vmatprep.subr.mxu0 0.0
    %1778 = vmatpush2.msra.mxu0 0.0
    %1779 = vmatprep.subr.mxu0 0.0
    %1780 = vmatpush2.msra.mxu0 0.0
    %1781 = vmatprep.subr.mxu0 0.0
    %1782 = vmatpush2.msra.mxu0 0.0
    %1783 = vmatprep.subr.mxu0 0.0
    %1784 = vmatpush2.msra.mxu0 0.0
    %1785 = vmatprep.subr.mxu0 0.0
    %1786 = vmatpush2.msra.mxu0 0.0
    %1787 = vmatprep.subr.mxu0 0.0
    %1788 = vmatpush2.msra.mxu0 0.0
    %1789 = vmatprep.subr.mxu0 0.0
    %1790 = vmatpush2.msra.mxu0 0.0
    %1791 = vmatprep.subr.mxu0 0.0
    %1792 = vmatpush2.msra.mxu0 0.0
    %1793 = vmatprep.subr.mxu0 0.0
    %1794 = vmatpush2.msra.mxu0 0.0
    %1795 = vmatprep.mubr.f32.mxu0 0.0
    %1796 = vmatmul.mubr.f32.gmra.mxu0 %v1726
    %v1797 = vpop.f32.mrf.mxu0
    %v1798 = vadd.f32 %v1723, %v1797
    %v1799 = vpop.f32.mrf.mxu0
    %1800 = vmatprep.mubr.f32.mxu0 0.0
    %1801 = vmatmul.mubr.f32.gmra.mxu0 %v1729
    %v1802 = vpop.f32.mrf.mxu0
    %v1803 = vadd.f32 %v1723, %v1802
    %v1804 = vpop.f32.mrf.mxu0
    %1805 = vdwg.mxu0
    %v1806 = vmul.f32 %v1798, 0.5
    %v1807 = vmul.f32 %v1803, 0.5
    %v1808 = vmul.f32 %v1798, 0.70710677
    %v1809 = vmul.f32 %v1803, 0.70710677
    %vm1810 = vcmp.ge.f32.partialorder %v1808, 0.0
    %vm1811 = vcmp.ge.f32.partialorder %v1809, 0.0
    %v1812 = vsel %vm1810, 1.0, -1.0
    %v1813 = vsel %vm1811, 1.0, -1.0
    %v1814 = vand.u32 2147483647, %v1808
    %v1815 = vand.u32 2147483647, %v1809
    %v1816 = vmul.f32 %v1814, 0.3275911
    %v1817 = vmul.f32 %v1815, 0.3275911
    %v1818 = vadd.f32 %v1816, 1.0
    %v1819 = vadd.f32 %v1817, 1.0
    %v1820 = vrcp.pop %v1818
    %v1821 = vrcp.pop %v1819
    %v1822 = vmul.f32 %v1820, 1.0614054
    %v1823 = vmul.f32 %v1821, 1.0614054
    %v1824 = vadd.f32 %v1822, -1.4531521
    %v1825 = vadd.f32 %v1823, -1.4531521
    %v1826 = vmul.f32 %v1824, %v1820
    %v1827 = vmul.f32 %v1825, %v1821
    %v1828 = vadd.f32 %v1826, 1.4214138
    %v1829 = vadd.f32 %v1827, 1.4214138
    %v1830 = vmul.f32 %v1828, %v1820
    %v1831 = vmul.f32 %v1829, %v1821
    %v1832 = vadd.f32 %v1830, -0.28449672
    %v1833 = vadd.f32 %v1831, -0.28449672
    %v1834 = vmul.f32 %v1832, %v1820
    %v1835 = vmul.f32 %v1833, %v1821
    %v1836 = vadd.f32 %v1834, 0.2548296
    %v1837 = vadd.f32 %v1835, 0.2548296
    %v1838 = vmul.f32 %v1836, %v1820
    %v1839 = vmul.f32 %v1837, %v1821
    %v1840 = vsub.f32 0.0, %v1814
    %v1841 = vsub.f32 0.0, %v1815
    %v1842 = vmul.f32 %v1840, %v1814
    %v1843 = vmul.f32 %v1841, %v1815
    %v1844 = vmul.f32 %v1842, 1.442695
    %v1845 = vpow.pop %v1844
    %v1846 = vmul.f32 %v1843, 1.442695
    %v1847 = vpow.pop %v1846
    %v1848 = vmul.f32 %v1838, %v1845
    %v1849 = vmul.f32 %v1839, %v1847
    %v1850 = vsub.f32 1.0, %v1848
    %v1851 = vsub.f32 1.0, %v1849
    %v1852 = vmul.f32 %v1812, %v1850
    %v1853 = vmul.f32 %v1813, %v1851
    %v1854 = vadd.f32 %v1852, 1.0
    %v1855 = vadd.f32 %v1853, 1.0
    %v1856 = vmul.f32 %v1806, %v1854
    %v1857 = vmul.f32 %v1807, %v1855
    %v1858 = vld [vmem:[%s10] sm:$0xff]
    %v1859 = vld [vmem:[%s10 + $0x8] sm:$0xff]
    %v1860 = vld [vmem:[%s10 + $0x10] sm:$0xff]
    %v1861 = vld [vmem:[%s10 + $0x18] sm:$0xff]
    %v1862 = vld [vmem:[%s10 + $0x20] sm:$0xff]
    %v1863 = vld [vmem:[%s10 + $0x28] sm:$0xff]
    %v1864 = vld [vmem:[%s10 + $0x30] sm:$0xff]
    %v1865 = vld [vmem:[%s10 + $0x38] sm:$0xff]
    %v1866 = vld [vmem:[%s11] sm:$0x1]
    %v1868 = vlaneseq
    %v1869 = vshrl.u32 %v1868, 7
    %v1870 = vsub.s32 0, %v1869
    %v1871 = vrot.slane %v1866, %v1870
    %vm1873 = vcmask 523264
    %v1875 = vsel %vm1873, %v1856, 0
    %v1878 = vsel %vm1873, %v1857, 0
    %1880 = vmatprep.subr.mxu0 0.0
    %1881 = vmatpush1.msra.mxu0 0.0
    %1882 = vmatprep.subr.mxu0 0.0
    %1883 = vmatpush1.msra.mxu0 0.0
    %1884 = vmatprep.subr.mxu0 0.0
    %1885 = vmatpush1.msra.mxu0 0.0
    %1886 = vmatprep.subr.mxu0 0.0
    %1887 = vmatpush1.msra.mxu0 0.0
    %1888 = vmatprep.subr.mxu0 0.0
    %1889 = vmatpush1.msra.mxu0 0.0
    %1890 = vmatprep.subr.mxu0 0.0
    %1891 = vmatpush1.msra.mxu0 0.0
    %1892 = vmatprep.subr.mxu0 0.0
    %1893 = vmatpush1.msra.mxu0 0.0
    %1894 = vmatprep.subr.mxu0 0.0
    %1895 = vmatpush1.msra.mxu0 0.0
    %1896 = vmatprep.subr.mxu0 0.0
    %1897 = vmatpush1.msra.mxu0 %v1865
    %1898 = vmatprep.subr.mxu0 0.0
    %1899 = vmatpush1.msra.mxu0 %v1864
    %1900 = vmatprep.subr.mxu0 0.0
    %1901 = vmatpush1.msra.mxu0 %v1863
    %1902 = vmatprep.subr.mxu0 0.0
    %1903 = vmatpush1.msra.mxu0 %v1862
    %1904 = vmatprep.subr.mxu0 0.0
    %1905 = vmatpush1.msra.mxu0 %v1861
    %1906 = vmatprep.subr.mxu0 0.0
    %1907 = vmatpush1.msra.mxu0 %v1860
    %1908 = vmatprep.subr.mxu0 0.0
    %1909 = vmatpush1.msra.mxu0 %v1859
    %1910 = vmatprep.subr.mxu0 0.0
    %1911 = vmatpush1.msra.mxu0 %v1858
    %1912 = vmatprep.subr.mxu0 0.0
    %1913 = vmatpush2.msra.mxu0 0.0
    %1914 = vmatprep.subr.mxu0 0.0
    %1915 = vmatpush2.msra.mxu0 0.0
    %1916 = vmatprep.subr.mxu0 0.0
    %1917 = vmatpush2.msra.mxu0 0.0
    %1918 = vmatprep.subr.mxu0 0.0
    %1919 = vmatpush2.msra.mxu0 0.0
    %1920 = vmatprep.subr.mxu0 0.0
    %1921 = vmatpush2.msra.mxu0 0.0
    %1922 = vmatprep.subr.mxu0 0.0
    %1923 = vmatpush2.msra.mxu0 0.0
    %1924 = vmatprep.subr.mxu0 0.0
    %1925 = vmatpush2.msra.mxu0 0.0
    %1926 = vmatprep.subr.mxu0 0.0
    %1927 = vmatpush2.msra.mxu0 0.0
    %1928 = vmatprep.subr.mxu0 0.0
    %1929 = vmatpush2.msra.mxu0 0.0
    %1930 = vmatprep.subr.mxu0 0.0
    %1931 = vmatpush2.msra.mxu0 0.0
    %1932 = vmatprep.subr.mxu0 0.0
    %1933 = vmatpush2.msra.mxu0 0.0
    %1934 = vmatprep.subr.mxu0 0.0
    %1935 = vmatpush2.msra.mxu0 0.0
    %1936 = vmatprep.subr.mxu0 0.0
    %1937 = vmatpush2.msra.mxu0 0.0
    %1938 = vmatprep.subr.mxu0 0.0
    %1939 = vmatpush2.msra.mxu0 0.0
    %1940 = vmatprep.subr.mxu0 0.0
    %1941 = vmatpush2.msra.mxu0 0.0
    %1942 = vmatprep.subr.mxu0 0.0
    %1943 = vmatpush2.msra.mxu0 0.0
    %1944 = vmatprep.mubr.f32.mxu0 0.0
    %1945 = vmatmul.mubr.f32.gmra.mxu0 %v1875
    %v1946 = vpop.f32.mrf.mxu0
    %v1947 = vadd.f32 %v1871, %v1946
    %v1948 = vpop.f32.mrf.mxu0
    %1949 = vmatprep.mubr.f32.mxu0 0.0
    %1950 = vmatmul.mubr.f32.gmra.mxu0 %v1878
    %v1951 = vpop.f32.mrf.mxu0
    %v1952 = vadd.f32 %v1871, %v1951
    %v1953 = vpop.f32.mrf.mxu0
    %1954 = vdwg.mxu0
    %v1955 = vadd.f32 %v1947, %v1664
    %v1956 = vadd.f32 %v1952, %v1665
    %s1957 = scalar_lea.vmem [#allocation5], 1
    %v1958 = vld [vmem:[%s1957] sm:$0x1]
    %s1959 = scalar_lea.vmem %s2, 1
    %v1960 = vld [vmem:[%s1959] sm:$0x1]
    %v1961 = vsel %vm80, %v1955, 0.0
    %1962 = vadd.xlane.f32.xlu0 %v1961
    %v1963 = vpop.xlane.xlu0 %1962
    %v1964 = vsel %vm80, %v1956, 0.0
    %1965 = vadd.xlane.f32.xlu0 %v1964
    %v1966 = vpop.xlane.xlu0 %1965
    %v1967 = vmul.f32 %v1963, %v87
    %v1968 = vmul.f32 %v1966, %v87
    %v1969 = vmul.f32 %v1955, %v1955
    %v1970 = vmul.f32 %v1956, %v1956
    %v1971 = vsel %vm80, %v1969, 0.0
    %1972 = vadd.xlane.f32.xlu0 %v1971
    %v1973 = vpop.xlane.xlu0 %1972
    %v1974 = vsel %vm80, %v1970, 0.0
    %1975 = vadd.xlane.f32.xlu0 %v1974
    %v1976 = vpop.xlane.xlu0 %1975
    %v1977 = vmul.f32 %v1973, %v87
    %v1978 = vmul.f32 %v1976, %v87
    %v1979 = vmul.f32 %v1967, %v1967
    %v1980 = vmul.f32 %v1968, %v1968
    %v1981 = vsub.f32 %v1977, %v1979
    %v1982 = vsub.f32 %v1978, %v1980
    %v1983 = vsub.f32 %v1955, %v1967
    %v1984 = vsub.f32 %v1956, %v1968
    %v1985 = vadd.f32 %v1981, 1e-05
    %v1986 = vadd.f32 %v1982, 1e-05
    %v1987 = vrsqrt.pop %v1985
    %v1988 = vrsqrt.pop %v1986
    %v1989 = vmul.f32 %v1983, %v1987
    %v1990 = vmul.f32 %v1984, %v1988
    %v1992 = vlaneseq
    %v1993 = vshrl.u32 %v1992, 7
    %v1994 = vsub.s32 0, %v1993
    %v1995 = vrot.slane %v1958, %v1994
    %v1997 = vmul.f32 %v1989, %v1995
    %v1998 = vmul.f32 %v1990, %v1995
    %v2000 = vlaneseq
    %v2001 = vshrl.u32 %v2000, 7
    %v2002 = vsub.s32 0, %v2001
    %v2003 = vrot.slane %v1960, %v2002
    %v2005 = vadd.f32 %v1997, %v2003
    %v2006 = vadd.f32 %v1998, %v2003
    %s2007 = scalar_lea.vmem %s3, 32
    %v2008 = vld [vmem:[%s2007] sm:$0xff]
    %v2009 = vld [vmem:[%s2007 + $0x8] sm:$0xff]
    %v2010 = vld [vmem:[%s2007 + $0x10] sm:$0xff]
    %v2011 = vld [vmem:[%s2007 + $0x18] sm:$0xff]
    %v2013 = vsel %vm80, %v2005, 0
    %v2016 = vsel %vm80, %v2006, 0
    %2018 = vmatprep.subr.mxu0 0.0
    %2019 = vmatpush1.msra.mxu0 0.0
    %2020 = vmatprep.subr.mxu0 0.0
    %2021 = vmatpush1.msra.mxu0 0.0
    %2022 = vmatprep.subr.mxu0 0.0
    %2023 = vmatpush1.msra.mxu0 0.0
    %2024 = vmatprep.subr.mxu0 0.0
    %2025 = vmatpush1.msra.mxu0 0.0
    %2026 = vmatprep.subr.mxu0 0.0
    %2027 = vmatpush1.msra.mxu0 0.0
    %2028 = vmatprep.subr.mxu0 0.0
    %2029 = vmatpush1.msra.mxu0 0.0
    %2030 = vmatprep.subr.mxu0 0.0
    %2031 = vmatpush1.msra.mxu0 0.0
    %2032 = vmatprep.subr.mxu0 0.0
    %2033 = vmatpush1.msra.mxu0 0.0
    %2034 = vmatprep.subr.mxu0 0.0
    %2035 = vmatpush1.msra.mxu0 0.0
    %2036 = vmatprep.subr.mxu0 0.0
    %2037 = vmatpush1.msra.mxu0 0.0
    %2038 = vmatprep.subr.mxu0 0.0
    %2039 = vmatpush1.msra.mxu0 0.0
    %2040 = vmatprep.subr.mxu0 0.0
    %2041 = vmatpush1.msra.mxu0 0.0
    %2042 = vmatprep.subr.mxu0 0.0
    %2043 = vmatpush1.msra.mxu0 %v2011
    %2044 = vmatprep.subr.mxu0 0.0
    %2045 = vmatpush1.msra.mxu0 %v2010
    %2046 = vmatprep.subr.mxu0 0.0
    %2047 = vmatpush1.msra.mxu0 %v2009
    %2048 = vmatprep.subr.mxu0 0.0
    %2049 = vmatpush1.msra.mxu0 %v2008
    %2050 = vmatprep.subr.mxu0 0.0
    %2051 = vmatpush2.msra.mxu0 0.0
    %2052 = vmatprep.subr.mxu0 0.0
    %2053 = vmatpush2.msra.mxu0 0.0
    %2054 = vmatprep.subr.mxu0 0.0
    %2055 = vmatpush2.msra.mxu0 0.0
    %2056 = vmatprep.subr.mxu0 0.0
    %2057 = vmatpush2.msra.mxu0 0.0
    %2058 = vmatprep.subr.mxu0 0.0
    %2059 = vmatpush2.msra.mxu0 0.0
    %2060 = vmatprep.subr.mxu0 0.0
    %2061 = vmatpush2.msra.mxu0 0.0
    %2062 = vmatprep.subr.mxu0 0.0
    %2063 = vmatpush2.msra.mxu0 0.0
    %2064 = vmatprep.subr.mxu0 0.0
    %2065 = vmatpush2.msra.mxu0 0.0
    %2066 = vmatprep.subr.mxu0 0.0
    %2067 = vmatpush2.msra.mxu0 0.0
    %2068 = vmatprep.subr.mxu0 0.0
    %2069 = vmatpush2.msra.mxu0 0.0
    %2070 = vmatprep.subr.mxu0 0.0
    %2071 = vmatpush2.msra.mxu0 0.0
    %2072 = vmatprep.subr.mxu0 0.0
    %2073 = vmatpush2.msra.mxu0 0.0
    %2074 = vmatprep.subr.mxu0 0.0
    %2075 = vmatpush2.msra.mxu0 0.0
    %2076 = vmatprep.subr.mxu0 0.0
    %2077 = vmatpush2.msra.mxu0 0.0
    %2078 = vmatprep.subr.mxu0 0.0
    %2079 = vmatpush2.msra.mxu0 0.0
    %2080 = vmatprep.subr.mxu0 0.0
    %2081 = vmatpush2.msra.mxu0 0.0
    %2082 = vmatprep.mubr.f32.mxu0 0.0
    %2083 = vmatmul.mubr.f32.gmra.mxu0 %v2013
    %v2084 = vpop.f32.mrf.mxu0
    %v2085 = vadd.f32 0.0, %v2084
    %v2086 = vpop.f32.mrf.mxu0
    %2087 = vmatprep.mubr.f32.mxu0 0.0
    %2088 = vmatmul.mubr.f32.gmra.mxu0 %v2016
    %v2089 = vpop.f32.mrf.mxu0
    %v2090 = vadd.f32 0.0, %v2089
    %v2091 = vpop.f32.mrf.mxu0
    %2092 = vdwg.mxu0
    %2094 = vrot.lane.b32.xlu0 %v2085, 120
    %v2095 = vpop.permute.xlu0 %2094
    %2096 = vrot.lane.b32.xlu0 %v2085, 112
    %v2097 = vpop.permute.xlu0 %2096
    %2098 = vrot.lane.b32.xlu0 %v2085, 104
    %v2099 = vpop.permute.xlu0 %2098
    %2101 = vrot.lane.b32.xlu0 %v2090, 120
    %v2102 = vpop.permute.xlu0 %2101
    %2103 = vrot.lane.b32.xlu0 %v2090, 112
    %v2104 = vpop.permute.xlu0 %2103
    %2105 = vrot.lane.b32.xlu0 %v2090, 104
    %v2106 = vpop.permute.xlu0 %2105
    %2107 = vrot.lane.b32.xlu0 %v2085, 96
    %v2108 = vpop.permute.xlu0 %2107
    %v2109 = vsel %vm229, %v2085, 0
    %v2111 = vsel %vm229, %v2108, 0
    %2113 = vmatprep.subr.mxu0 0.0
    %2114 = vmatpush1.xpose.msra.mxu0 0.0
    %2115 = vmatprep.subr.mxu0 0.0
    %2116 = vmatpush1.xpose.msra.mxu0 0.0
    %2117 = vmatprep.subr.mxu0 0.0
    %2118 = vmatpush1.xpose.msra.mxu0 0.0
    %2119 = vmatprep.subr.mxu0 0.0
    %2120 = vmatpush1.xpose.msra.mxu0 0.0
    %2121 = vmatprep.subr.mxu0 0.0
    %2122 = vmatpush1.xpose.msra.mxu0 0.0
    %2123 = vmatprep.subr.mxu0 0.0
    %2124 = vmatpush1.xpose.msra.mxu0 0.0
    %2125 = vmatprep.subr.mxu0 0.0
    %2126 = vmatpush1.xpose.msra.mxu0 0.0
    %2127 = vmatprep.subr.mxu0 0.0
    %2128 = vmatpush1.xpose.msra.mxu0 0.0
    %2129 = vmatprep.subr.mxu0 0.0
    %2130 = vmatpush1.xpose.msra.mxu0 0.0
    %2131 = vmatprep.subr.mxu0 0.0
    %2132 = vmatpush1.xpose.msra.mxu0 0.0
    %2133 = vmatprep.subr.mxu0 0.0
    %2134 = vmatpush1.xpose.msra.mxu0 0.0
    %2135 = vmatprep.subr.mxu0 0.0
    %2136 = vmatpush1.xpose.msra.mxu0 0.0
    %2137 = vmatprep.subr.mxu0 0.0
    %2138 = vmatpush1.xpose.msra.mxu0 0.0
    %2139 = vmatprep.subr.mxu0 0.0
    %2140 = vmatpush1.xpose.msra.mxu0 0.0
    %2141 = vmatprep.subr.mxu0 0.0
    %2142 = vmatpush1.xpose.msra.mxu0 0.0
    %2143 = vmatprep.subr.mxu0 0.0
    %2144 = vmatpush1.xpose.msra.mxu0 %v2111
    %2145 = vmatprep.subr.mxu0 0.0
    %2146 = vmatpush2.xpose.msra.mxu0 0.0
    %2147 = vmatprep.subr.mxu0 0.0
    %2148 = vmatpush2.xpose.msra.mxu0 0.0
    %2149 = vmatprep.subr.mxu0 0.0
    %2150 = vmatpush2.xpose.msra.mxu0 0.0
    %2151 = vmatprep.subr.mxu0 0.0
    %2152 = vmatpush2.xpose.msra.mxu0 0.0
    %2153 = vmatprep.subr.mxu0 0.0
    %2154 = vmatpush2.xpose.msra.mxu0 0.0
    %2155 = vmatprep.subr.mxu0 0.0
    %2156 = vmatpush2.xpose.msra.mxu0 0.0
    %2157 = vmatprep.subr.mxu0 0.0
    %2158 = vmatpush2.xpose.msra.mxu0 0.0
    %2159 = vmatprep.subr.mxu0 0.0
    %2160 = vmatpush2.xpose.msra.mxu0 0.0
    %2161 = vmatprep.subr.mxu0 0.0
    %2162 = vmatpush2.xpose.msra.mxu0 0.0
    %2163 = vmatprep.subr.mxu0 0.0
    %2164 = vmatpush2.xpose.msra.mxu0 0.0
    %2165 = vmatprep.subr.mxu0 0.0
    %2166 = vmatpush2.xpose.msra.mxu0 0.0
    %2167 = vmatprep.subr.mxu0 0.0
    %2168 = vmatpush2.xpose.msra.mxu0 0.0
    %2169 = vmatprep.subr.mxu0 0.0
    %2170 = vmatpush2.xpose.msra.mxu0 0.0
    %2171 = vmatprep.subr.mxu0 0.0
    %2172 = vmatpush2.xpose.msra.mxu0 0.0
    %2173 = vmatprep.subr.mxu0 0.0
    %2174 = vmatpush2.xpose.msra.mxu0 0.0
    %2175 = vmatprep.subr.mxu0 0.0
    %2176 = vmatpush2.xpose.msra.mxu0 0.0
    %2177 = vmatprep.mubr.f32.mxu0 0.0
    %2178 = vmatmul.mubr.f32.gmra.mxu0 %v2109
    %v2179 = vpop.f32.mrf.mxu0
    %v2180 = vadd.f32 0.0, %v2179
    %v2181 = vpop.f32.mrf.mxu0
    %2182 = vdwg.mxu0
    %2183 = vrot.lane.b32.xlu0 %v2095, 96
    %v2184 = vpop.permute.xlu0 %2183
    %v2185 = vsel %vm229, %v2095, 0
    %v2187 = vsel %vm229, %v2184, 0
    %2189 = vmatprep.subr.mxu0 0.0
    %2190 = vmatpush1.xpose.msra.mxu0 0.0
    %2191 = vmatprep.subr.mxu0 0.0
    %2192 = vmatpush1.xpose.msra.mxu0 0.0
    %2193 = vmatprep.subr.mxu0 0.0
    %2194 = vmatpush1.xpose.msra.mxu0 0.0
    %2195 = vmatprep.subr.mxu0 0.0
    %2196 = vmatpush1.xpose.msra.mxu0 0.0
    %2197 = vmatprep.subr.mxu0 0.0
    %2198 = vmatpush1.xpose.msra.mxu0 0.0
    %2199 = vmatprep.subr.mxu0 0.0
    %2200 = vmatpush1.xpose.msra.mxu0 0.0
    %2201 = vmatprep.subr.mxu0 0.0
    %2202 = vmatpush1.xpose.msra.mxu0 0.0
    %2203 = vmatprep.subr.mxu0 0.0
    %2204 = vmatpush1.xpose.msra.mxu0 0.0
    %2205 = vmatprep.subr.mxu0 0.0
    %2206 = vmatpush1.xpose.msra.mxu0 0.0
    %2207 = vmatprep.subr.mxu0 0.0
    %2208 = vmatpush1.xpose.msra.mxu0 0.0
    %2209 = vmatprep.subr.mxu0 0.0
    %2210 = vmatpush1.xpose.msra.mxu0 0.0
    %2211 = vmatprep.subr.mxu0 0.0
    %2212 = vmatpush1.xpose.msra.mxu0 0.0
    %2213 = vmatprep.subr.mxu0 0.0
    %2214 = vmatpush1.xpose.msra.mxu0 0.0
    %2215 = vmatprep.subr.mxu0 0.0
    %2216 = vmatpush1.xpose.msra.mxu0 0.0
    %2217 = vmatprep.subr.mxu0 0.0
    %2218 = vmatpush1.xpose.msra.mxu0 0.0
    %2219 = vmatprep.subr.mxu0 0.0
    %2220 = vmatpush1.xpose.msra.mxu0 %v2187
    %2221 = vmatprep.subr.mxu0 0.0
    %2222 = vmatpush2.xpose.msra.mxu0 0.0
    %2223 = vmatprep.subr.mxu0 0.0
    %2224 = vmatpush2.xpose.msra.mxu0 0.0
    %2225 = vmatprep.subr.mxu0 0.0
    %2226 = vmatpush2.xpose.msra.mxu0 0.0
    %2227 = vmatprep.subr.mxu0 0.0
    %2228 = vmatpush2.xpose.msra.mxu0 0.0
    %2229 = vmatprep.subr.mxu0 0.0
    %2230 = vmatpush2.xpose.msra.mxu0 0.0
    %2231 = vmatprep.subr.mxu0 0.0
    %2232 = vmatpush2.xpose.msra.mxu0 0.0
    %2233 = vmatprep.subr.mxu0 0.0
    %2234 = vmatpush2.xpose.msra.mxu0 0.0
    %2235 = vmatprep.subr.mxu0 0.0
    %2236 = vmatpush2.xpose.msra.mxu0 0.0
    %2237 = vmatprep.subr.mxu0 0.0
    %2238 = vmatpush2.xpose.msra.mxu0 0.0
    %2239 = vmatprep.subr.mxu0 0.0
    %2240 = vmatpush2.xpose.msra.mxu0 0.0
    %2241 = vmatprep.subr.mxu0 0.0
    %2242 = vmatpush2.xpose.msra.mxu0 0.0
    %2243 = vmatprep.subr.mxu0 0.0
    %2244 = vmatpush2.xpose.msra.mxu0 0.0
    %2245 = vmatprep.subr.mxu0 0.0
    %2246 = vmatpush2.xpose.msra.mxu0 0.0
    %2247 = vmatprep.subr.mxu0 0.0
    %2248 = vmatpush2.xpose.msra.mxu0 0.0
    %2249 = vmatprep.subr.mxu0 0.0
    %2250 = vmatpush2.xpose.msra.mxu0 0.0
    %2251 = vmatprep.subr.mxu0 0.0
    %2252 = vmatpush2.xpose.msra.mxu0 0.0
    %2253 = vmatprep.mubr.f32.mxu0 0.0
    %2254 = vmatmul.mubr.f32.gmra.mxu0 %v2185
    %v2255 = vpop.f32.mrf.mxu0
    %v2256 = vadd.f32 0.0, %v2255
    %v2257 = vpop.f32.mrf.mxu0
    %2258 = vdwg.mxu0
    %2259 = vrot.lane.b32.xlu0 %v2097, 96
    %v2260 = vpop.permute.xlu0 %2259
    %v2261 = vsel %vm229, %v2097, 0
    %v2263 = vsel %vm229, %v2260, 0
    %2265 = vmatprep.subr.mxu0 0.0
    %2266 = vmatpush1.xpose.msra.mxu0 0.0
    %2267 = vmatprep.subr.mxu0 0.0
    %2268 = vmatpush1.xpose.msra.mxu0 0.0
    %2269 = vmatprep.subr.mxu0 0.0
    %2270 = vmatpush1.xpose.msra.mxu0 0.0
    %2271 = vmatprep.subr.mxu0 0.0
    %2272 = vmatpush1.xpose.msra.mxu0 0.0
    %2273 = vmatprep.subr.mxu0 0.0
    %2274 = vmatpush1.xpose.msra.mxu0 0.0
    %2275 = vmatprep.subr.mxu0 0.0
    %2276 = vmatpush1.xpose.msra.mxu0 0.0
    %2277 = vmatprep.subr.mxu0 0.0
    %2278 = vmatpush1.xpose.msra.mxu0 0.0
    %2279 = vmatprep.subr.mxu0 0.0
    %2280 = vmatpush1.xpose.msra.mxu0 0.0
    %2281 = vmatprep.subr.mxu0 0.0
    %2282 = vmatpush1.xpose.msra.mxu0 0.0
    %2283 = vmatprep.subr.mxu0 0.0
    %2284 = vmatpush1.xpose.msra.mxu0 0.0
    %2285 = vmatprep.subr.mxu0 0.0
    %2286 = vmatpush1.xpose.msra.mxu0 0.0
    %2287 = vmatprep.subr.mxu0 0.0
    %2288 = vmatpush1.xpose.msra.mxu0 0.0
    %2289 = vmatprep.subr.mxu0 0.0
    %2290 = vmatpush1.xpose.msra.mxu0 0.0
    %2291 = vmatprep.subr.mxu0 0.0
    %2292 = vmatpush1.xpose.msra.mxu0 0.0
    %2293 = vmatprep.subr.mxu0 0.0
    %2294 = vmatpush1.xpose.msra.mxu0 0.0
    %2295 = vmatprep.subr.mxu0 0.0
    %2296 = vmatpush1.xpose.msra.mxu0 %v2263
    %2297 = vmatprep.subr.mxu0 0.0
    %2298 = vmatpush2.xpose.msra.mxu0 0.0
    %2299 = vmatprep.subr.mxu0 0.0
    %2300 = vmatpush2.xpose.msra.mxu0 0.0
    %2301 = vmatprep.subr.mxu0 0.0
    %2302 = vmatpush2.xpose.msra.mxu0 0.0
    %2303 = vmatprep.subr.mxu0 0.0
    %2304 = vmatpush2.xpose.msra.mxu0 0.0
    %2305 = vmatprep.subr.mxu0 0.0
    %2306 = vmatpush2.xpose.msra.mxu0 0.0
    %2307 = vmatprep.subr.mxu0 0.0
    %2308 = vmatpush2.xpose.msra.mxu0 0.0
    %2309 = vmatprep.subr.mxu0 0.0
    %2310 = vmatpush2.xpose.msra.mxu0 0.0
    %2311 = vmatprep.subr.mxu0 0.0
    %2312 = vmatpush2.xpose.msra.mxu0 0.0
    %2313 = vmatprep.subr.mxu0 0.0
    %2314 = vmatpush2.xpose.msra.mxu0 0.0
    %2315 = vmatprep.subr.mxu0 0.0
    %2316 = vmatpush2.xpose.msra.mxu0 0.0
    %2317 = vmatprep.subr.mxu0 0.0
    %2318 = vmatpush2.xpose.msra.mxu0 0.0
    %2319 = vmatprep.subr.mxu0 0.0
    %2320 = vmatpush2.xpose.msra.mxu0 0.0
    %2321 = vmatprep.subr.mxu0 0.0
    %2322 = vmatpush2.xpose.msra.mxu0 0.0
    %2323 = vmatprep.subr.mxu0 0.0
    %2324 = vmatpush2.xpose.msra.mxu0 0.0
    %2325 = vmatprep.subr.mxu0 0.0
    %2326 = vmatpush2.xpose.msra.mxu0 0.0
    %2327 = vmatprep.subr.mxu0 0.0
    %2328 = vmatpush2.xpose.msra.mxu0 0.0
    %2329 = vmatprep.mubr.f32.mxu0 0.0
    %2330 = vmatmul.mubr.f32.gmra.mxu0 %v2261
    %v2331 = vpop.f32.mrf.mxu0
    %v2332 = vadd.f32 0.0, %v2331
    %v2333 = vpop.f32.mrf.mxu0
    %2334 = vdwg.mxu0
    %2335 = vrot.lane.b32.xlu0 %v2099, 96
    %v2336 = vpop.permute.xlu0 %2335
    %v2337 = vsel %vm229, %v2099, 0
    %v2339 = vsel %vm229, %v2336, 0
    %2341 = vmatprep.subr.mxu0 0.0
    %2342 = vmatpush1.xpose.msra.mxu0 0.0
    %2343 = vmatprep.subr.mxu0 0.0
    %2344 = vmatpush1.xpose.msra.mxu0 0.0
    %2345 = vmatprep.subr.mxu0 0.0
    %2346 = vmatpush1.xpose.msra.mxu0 0.0
    %2347 = vmatprep.subr.mxu0 0.0
    %2348 = vmatpush1.xpose.msra.mxu0 0.0
    %2349 = vmatprep.subr.mxu0 0.0
    %2350 = vmatpush1.xpose.msra.mxu0 0.0
    %2351 = vmatprep.subr.mxu0 0.0
    %2352 = vmatpush1.xpose.msra.mxu0 0.0
    %2353 = vmatprep.subr.mxu0 0.0
    %2354 = vmatpush1.xpose.msra.mxu0 0.0
    %2355 = vmatprep.subr.mxu0 0.0
    %2356 = vmatpush1.xpose.msra.mxu0 0.0
    %2357 = vmatprep.subr.mxu0 0.0
    %2358 = vmatpush1.xpose.msra.mxu0 0.0
    %2359 = vmatprep.subr.mxu0 0.0
    %2360 = vmatpush1.xpose.msra.mxu0 0.0
    %2361 = vmatprep.subr.mxu0 0.0
    %2362 = vmatpush1.xpose.msra.mxu0 0.0
    %2363 = vmatprep.subr.mxu0 0.0
    %2364 = vmatpush1.xpose.msra.mxu0 0.0
    %2365 = vmatprep.subr.mxu0 0.0
    %2366 = vmatpush1.xpose.msra.mxu0 0.0
    %2367 = vmatprep.subr.mxu0 0.0
    %2368 = vmatpush1.xpose.msra.mxu0 0.0
    %2369 = vmatprep.subr.mxu0 0.0
    %2370 = vmatpush1.xpose.msra.mxu0 0.0
    %2371 = vmatprep.subr.mxu0 0.0
    %2372 = vmatpush1.xpose.msra.mxu0 %v2339
    %2373 = vmatprep.subr.mxu0 0.0
    %2374 = vmatpush2.xpose.msra.mxu0 0.0
    %2375 = vmatprep.subr.mxu0 0.0
    %2376 = vmatpush2.xpose.msra.mxu0 0.0
    %2377 = vmatprep.subr.mxu0 0.0
    %2378 = vmatpush2.xpose.msra.mxu0 0.0
    %2379 = vmatprep.subr.mxu0 0.0
    %2380 = vmatpush2.xpose.msra.mxu0 0.0
    %2381 = vmatprep.subr.mxu0 0.0
    %2382 = vmatpush2.xpose.msra.mxu0 0.0
    %2383 = vmatprep.subr.mxu0 0.0
    %2384 = vmatpush2.xpose.msra.mxu0 0.0
    %2385 = vmatprep.subr.mxu0 0.0
    %2386 = vmatpush2.xpose.msra.mxu0 0.0
    %2387 = vmatprep.subr.mxu0 0.0
    %2388 = vmatpush2.xpose.msra.mxu0 0.0
    %2389 = vmatprep.subr.mxu0 0.0
    %2390 = vmatpush2.xpose.msra.mxu0 0.0
    %2391 = vmatprep.subr.mxu0 0.0
    %2392 = vmatpush2.xpose.msra.mxu0 0.0
    %2393 = vmatprep.subr.mxu0 0.0
    %2394 = vmatpush2.xpose.msra.mxu0 0.0
    %2395 = vmatprep.subr.mxu0 0.0
    %2396 = vmatpush2.xpose.msra.mxu0 0.0
    %2397 = vmatprep.subr.mxu0 0.0
    %2398 = vmatpush2.xpose.msra.mxu0 0.0
    %2399 = vmatprep.subr.mxu0 0.0
    %2400 = vmatpush2.xpose.msra.mxu0 0.0
    %2401 = vmatprep.subr.mxu0 0.0
    %2402 = vmatpush2.xpose.msra.mxu0 0.0
    %2403 = vmatprep.subr.mxu0 0.0
    %2404 = vmatpush2.xpose.msra.mxu0 0.0
    %2405 = vmatprep.mubr.f32.mxu0 0.0
    %2406 = vmatmul.mubr.f32.gmra.mxu0 %v2337
    %v2407 = vpop.f32.mrf.mxu0
    %v2408 = vadd.f32 0.0, %v2407
    %v2409 = vpop.f32.mrf.mxu0
    %2410 = vdwg.mxu0
    %2411 = vrot.lane.b32.xlu0 %v2090, 96
    %v2412 = vpop.permute.xlu0 %2411
    %v2413 = vsel %vm229, %v2090, 0
    %v2415 = vsel %vm229, %v2412, 0
    %2417 = vmatprep.subr.mxu0 0.0
    %2418 = vmatpush1.xpose.msra.mxu0 0.0
    %2419 = vmatprep.subr.mxu0 0.0
    %2420 = vmatpush1.xpose.msra.mxu0 0.0
    %2421 = vmatprep.subr.mxu0 0.0
    %2422 = vmatpush1.xpose.msra.mxu0 0.0
    %2423 = vmatprep.subr.mxu0 0.0
    %2424 = vmatpush1.xpose.msra.mxu0 0.0
    %2425 = vmatprep.subr.mxu0 0.0
    %2426 = vmatpush1.xpose.msra.mxu0 0.0
    %2427 = vmatprep.subr.mxu0 0.0
    %2428 = vmatpush1.xpose.msra.mxu0 0.0
    %2429 = vmatprep.subr.mxu0 0.0
    %2430 = vmatpush1.xpose.msra.mxu0 0.0
    %2431 = vmatprep.subr.mxu0 0.0
    %2432 = vmatpush1.xpose.msra.mxu0 0.0
    %2433 = vmatprep.subr.mxu0 0.0
    %2434 = vmatpush1.xpose.msra.mxu0 0.0
    %2435 = vmatprep.subr.mxu0 0.0
    %2436 = vmatpush1.xpose.msra.mxu0 0.0
    %2437 = vmatprep.subr.mxu0 0.0
    %2438 = vmatpush1.xpose.msra.mxu0 0.0
    %2439 = vmatprep.subr.mxu0 0.0
    %2440 = vmatpush1.xpose.msra.mxu0 0.0
    %2441 = vmatprep.subr.mxu0 0.0
    %2442 = vmatpush1.xpose.msra.mxu0 0.0
    %2443 = vmatprep.subr.mxu0 0.0
    %2444 = vmatpush1.xpose.msra.mxu0 0.0
    %2445 = vmatprep.subr.mxu0 0.0
    %2446 = vmatpush1.xpose.msra.mxu0 0.0
    %2447 = vmatprep.subr.mxu0 0.0
    %2448 = vmatpush1.xpose.msra.mxu0 %v2415
    %2449 = vmatprep.subr.mxu0 0.0
    %2450 = vmatpush2.xpose.msra.mxu0 0.0
    %2451 = vmatprep.subr.mxu0 0.0
    %2452 = vmatpush2.xpose.msra.mxu0 0.0
    %2453 = vmatprep.subr.mxu0 0.0
    %2454 = vmatpush2.xpose.msra.mxu0 0.0
    %2455 = vmatprep.subr.mxu0 0.0
    %2456 = vmatpush2.xpose.msra.mxu0 0.0
    %2457 = vmatprep.subr.mxu0 0.0
    %2458 = vmatpush2.xpose.msra.mxu0 0.0
    %2459 = vmatprep.subr.mxu0 0.0
    %2460 = vmatpush2.xpose.msra.mxu0 0.0
    %2461 = vmatprep.subr.mxu0 0.0
    %2462 = vmatpush2.xpose.msra.mxu0 0.0
    %2463 = vmatprep.subr.mxu0 0.0
    %2464 = vmatpush2.xpose.msra.mxu0 0.0
    %2465 = vmatprep.subr.mxu0 0.0
    %2466 = vmatpush2.xpose.msra.mxu0 0.0
    %2467 = vmatprep.subr.mxu0 0.0
    %2468 = vmatpush2.xpose.msra.mxu0 0.0
    %2469 = vmatprep.subr.mxu0 0.0
    %2470 = vmatpush2.xpose.msra.mxu0 0.0
    %2471 = vmatprep.subr.mxu0 0.0
    %2472 = vmatpush2.xpose.msra.mxu0 0.0
    %2473 = vmatprep.subr.mxu0 0.0
    %2474 = vmatpush2.xpose.msra.mxu0 0.0
    %2475 = vmatprep.subr.mxu0 0.0
    %2476 = vmatpush2.xpose.msra.mxu0 0.0
    %2477 = vmatprep.subr.mxu0 0.0
    %2478 = vmatpush2.xpose.msra.mxu0 0.0
    %2479 = vmatprep.subr.mxu0 0.0
    %2480 = vmatpush2.xpose.msra.mxu0 0.0
    %2481 = vmatprep.mubr.f32.mxu0 0.0
    %2482 = vmatmul.mubr.f32.gmra.mxu0 %v2413
    %v2483 = vpop.f32.mrf.mxu0
    %v2484 = vadd.f32 0.0, %v2483
    %v2485 = vpop.f32.mrf.mxu0
    %2486 = vdwg.mxu0
    %2487 = vrot.lane.b32.xlu0 %v2102, 96
    %v2488 = vpop.permute.xlu0 %2487
    %v2489 = vsel %vm229, %v2102, 0
    %v2491 = vsel %vm229, %v2488, 0
    %2493 = vmatprep.subr.mxu0 0.0
    %2494 = vmatpush1.xpose.msra.mxu0 0.0
    %2495 = vmatprep.subr.mxu0 0.0
    %2496 = vmatpush1.xpose.msra.mxu0 0.0
    %2497 = vmatprep.subr.mxu0 0.0
    %2498 = vmatpush1.xpose.msra.mxu0 0.0
    %2499 = vmatprep.subr.mxu0 0.0
    %2500 = vmatpush1.xpose.msra.mxu0 0.0
    %2501 = vmatprep.subr.mxu0 0.0
    %2502 = vmatpush1.xpose.msra.mxu0 0.0
    %2503 = vmatprep.subr.mxu0 0.0
    %2504 = vmatpush1.xpose.msra.mxu0 0.0
    %2505 = vmatprep.subr.mxu0 0.0
    %2506 = vmatpush1.xpose.msra.mxu0 0.0
    %2507 = vmatprep.subr.mxu0 0.0
    %2508 = vmatpush1.xpose.msra.mxu0 0.0
    %2509 = vmatprep.subr.mxu0 0.0
    %2510 = vmatpush1.xpose.msra.mxu0 0.0
    %2511 = vmatprep.subr.mxu0 0.0
    %2512 = vmatpush1.xpose.msra.mxu0 0.0
    %2513 = vmatprep.subr.mxu0 0.0
    %2514 = vmatpush1.xpose.msra.mxu0 0.0
    %2515 = vmatprep.subr.mxu0 0.0
    %2516 = vmatpush1.xpose.msra.mxu0 0.0
    %2517 = vmatprep.subr.mxu0 0.0
    %2518 = vmatpush1.xpose.msra.mxu0 0.0
    %2519 = vmatprep.subr.mxu0 0.0
    %2520 = vmatpush1.xpose.msra.mxu0 0.0
    %2521 = vmatprep.subr.mxu0 0.0
    %2522 = vmatpush1.xpose.msra.mxu0 0.0
    %2523 = vmatprep.subr.mxu0 0.0
    %2524 = vmatpush1.xpose.msra.mxu0 %v2491
    %2525 = vmatprep.subr.mxu0 0.0
    %2526 = vmatpush2.xpose.msra.mxu0 0.0
    %2527 = vmatprep.subr.mxu0 0.0
    %2528 = vmatpush2.xpose.msra.mxu0 0.0
    %2529 = vmatprep.subr.mxu0 0.0
    %2530 = vmatpush2.xpose.msra.mxu0 0.0
    %2531 = vmatprep.subr.mxu0 0.0
    %2532 = vmatpush2.xpose.msra.mxu0 0.0
    %2533 = vmatprep.subr.mxu0 0.0
    %2534 = vmatpush2.xpose.msra.mxu0 0.0
    %2535 = vmatprep.subr.mxu0 0.0
    %2536 = vmatpush2.xpose.msra.mxu0 0.0
    %2537 = vmatprep.subr.mxu0 0.0
    %2538 = vmatpush2.xpose.msra.mxu0 0.0
    %2539 = vmatprep.subr.mxu0 0.0
    %2540 = vmatpush2.xpose.msra.mxu0 0.0
    %2541 = vmatprep.subr.mxu0 0.0
    %2542 = vmatpush2.xpose.msra.mxu0 0.0
    %2543 = vmatprep.subr.mxu0 0.0
    %2544 = vmatpush2.xpose.msra.mxu0 0.0
    %2545 = vmatprep.subr.mxu0 0.0
    %2546 = vmatpush2.xpose.msra.mxu0 0.0
    %2547 = vmatprep.subr.mxu0 0.0
    %2548 = vmatpush2.xpose.msra.mxu0 0.0
    %2549 = vmatprep.subr.mxu0 0.0
    %2550 = vmatpush2.xpose.msra.mxu0 0.0
    %2551 = vmatprep.subr.mxu0 0.0
    %2552 = vmatpush2.xpose.msra.mxu0 0.0
    %2553 = vmatprep.subr.mxu0 0.0
    %2554 = vmatpush2.xpose.msra.mxu0 0.0
    %2555 = vmatprep.subr.mxu0 0.0
    %2556 = vmatpush2.xpose.msra.mxu0 0.0
    %2557 = vmatprep.mubr.f32.mxu0 0.0
    %2558 = vmatmul.mubr.f32.gmra.mxu0 %v2489
    %v2559 = vpop.f32.mrf.mxu0
    %v2560 = vadd.f32 0.0, %v2559
    %v2561 = vpop.f32.mrf.mxu0
    %2562 = vdwg.mxu0
    %2563 = vrot.lane.b32.xlu0 %v2104, 96
    %v2564 = vpop.permute.xlu0 %2563
    %v2565 = vsel %vm229, %v2104, 0
    %v2567 = vsel %vm229, %v2564, 0
    %2569 = vmatprep.subr.mxu0 0.0
    %2570 = vmatpush1.xpose.msra.mxu0 0.0
    %2571 = vmatprep.subr.mxu0 0.0
    %2572 = vmatpush1.xpose.msra.mxu0 0.0
    %2573 = vmatprep.subr.mxu0 0.0
    %2574 = vmatpush1.xpose.msra.mxu0 0.0
    %2575 = vmatprep.subr.mxu0 0.0
    %2576 = vmatpush1.xpose.msra.mxu0 0.0
    %2577 = vmatprep.subr.mxu0 0.0
    %2578 = vmatpush1.xpose.msra.mxu0 0.0
    %2579 = vmatprep.subr.mxu0 0.0
    %2580 = vmatpush1.xpose.msra.mxu0 0.0
    %2581 = vmatprep.subr.mxu0 0.0
    %2582 = vmatpush1.xpose.msra.mxu0 0.0
    %2583 = vmatprep.subr.mxu0 0.0
    %2584 = vmatpush1.xpose.msra.mxu0 0.0
    %2585 = vmatprep.subr.mxu0 0.0
    %2586 = vmatpush1.xpose.msra.mxu0 0.0
    %2587 = vmatprep.subr.mxu0 0.0
    %2588 = vmatpush1.xpose.msra.mxu0 0.0
    %2589 = vmatprep.subr.mxu0 0.0
    %2590 = vmatpush1.xpose.msra.mxu0 0.0
    %2591 = vmatprep.subr.mxu0 0.0
    %2592 = vmatpush1.xpose.msra.mxu0 0.0
    %2593 = vmatprep.subr.mxu0 0.0
    %2594 = vmatpush1.xpose.msra.mxu0 0.0
    %2595 = vmatprep.subr.mxu0 0.0
    %2596 = vmatpush1.xpose.msra.mxu0 0.0
    %2597 = vmatprep.subr.mxu0 0.0
    %2598 = vmatpush1.xpose.msra.mxu0 0.0
    %2599 = vmatprep.subr.mxu0 0.0
    %2600 = vmatpush1.xpose.msra.mxu0 %v2567
    %2601 = vmatprep.subr.mxu0 0.0
    %2602 = vmatpush2.xpose.msra.mxu0 0.0
    %2603 = vmatprep.subr.mxu0 0.0
    %2604 = vmatpush2.xpose.msra.mxu0 0.0
    %2605 = vmatprep.subr.mxu0 0.0
    %2606 = vmatpush2.xpose.msra.mxu0 0.0
    %2607 = vmatprep.subr.mxu0 0.0
    %2608 = vmatpush2.xpose.msra.mxu0 0.0
    %2609 = vmatprep.subr.mxu0 0.0
    %2610 = vmatpush2.xpose.msra.mxu0 0.0
    %2611 = vmatprep.subr.mxu0 0.0
    %2612 = vmatpush2.xpose.msra.mxu0 0.0
    %2613 = vmatprep.subr.mxu0 0.0
    %2614 = vmatpush2.xpose.msra.mxu0 0.0
    %2615 = vmatprep.subr.mxu0 0.0
    %2616 = vmatpush2.xpose.msra.mxu0 0.0
    %2617 = vmatprep.subr.mxu0 0.0
    %2618 = vmatpush2.xpose.msra.mxu0 0.0
    %2619 = vmatprep.subr.mxu0 0.0
    %2620 = vmatpush2.xpose.msra.mxu0 0.0
    %2621 = vmatprep.subr.mxu0 0.0
    %2622 = vmatpush2.xpose.msra.mxu0 0.0
    %2623 = vmatprep.subr.mxu0 0.0
    %2624 = vmatpush2.xpose.msra.mxu0 0.0
    %2625 = vmatprep.subr.mxu0 0.0
    %2626 = vmatpush2.xpose.msra.mxu0 0.0
    %2627 = vmatprep.subr.mxu0 0.0
    %2628 = vmatpush2.xpose.msra.mxu0 0.0
    %2629 = vmatprep.subr.mxu0 0.0
    %2630 = vmatpush2.xpose.msra.mxu0 0.0
    %2631 = vmatprep.subr.mxu0 0.0
    %2632 = vmatpush2.xpose.msra.mxu0 0.0
    %2633 = vmatprep.mubr.f32.mxu0 0.0
    %2634 = vmatmul.mubr.f32.gmra.mxu0 %v2565
    %v2635 = vpop.f32.mrf.mxu0
    %v2636 = vadd.f32 0.0, %v2635
    %v2637 = vpop.f32.mrf.mxu0
    %2638 = vdwg.mxu0
    %2639 = vrot.lane.b32.xlu0 %v2106, 96
    %v2640 = vpop.permute.xlu0 %2639
    %v2641 = vsel %vm229, %v2106, 0
    %v2643 = vsel %vm229, %v2640, 0
    %2645 = vmatprep.subr.mxu0 0.0
    %2646 = vmatpush1.xpose.msra.mxu0 0.0
    %2647 = vmatprep.subr.mxu0 0.0
    %2648 = vmatpush1.xpose.msra.mxu0 0.0
    %2649 = vmatprep.subr.mxu0 0.0
    %2650 = vmatpush1.xpose.msra.mxu0 0.0
    %2651 = vmatprep.subr.mxu0 0.0
    %2652 = vmatpush1.xpose.msra.mxu0 0.0
    %2653 = vmatprep.subr.mxu0 0.0
    %2654 = vmatpush1.xpose.msra.mxu0 0.0
    %2655 = vmatprep.subr.mxu0 0.0
    %2656 = vmatpush1.xpose.msra.mxu0 0.0
    %2657 = vmatprep.subr.mxu0 0.0
    %2658 = vmatpush1.xpose.msra.mxu0 0.0
    %2659 = vmatprep.subr.mxu0 0.0
    %2660 = vmatpush1.xpose.msra.mxu0 0.0
    %2661 = vmatprep.subr.mxu0 0.0
    %2662 = vmatpush1.xpose.msra.mxu0 0.0
    %2663 = vmatprep.subr.mxu0 0.0
    %2664 = vmatpush1.xpose.msra.mxu0 0.0
    %2665 = vmatprep.subr.mxu0 0.0
    %2666 = vmatpush1.xpose.msra.mxu0 0.0
    %2667 = vmatprep.subr.mxu0 0.0
    %2668 = vmatpush1.xpose.msra.mxu0 0.0
    %2669 = vmatprep.subr.mxu0 0.0
    %2670 = vmatpush1.xpose.msra.mxu0 0.0
    %2671 = vmatprep.subr.mxu0 0.0
    %2672 = vmatpush1.xpose.msra.mxu0 0.0
    %2673 = vmatprep.subr.mxu0 0.0
    %2674 = vmatpush1.xpose.msra.mxu0 0.0
    %2675 = vmatprep.subr.mxu0 0.0
    %2676 = vmatpush1.xpose.msra.mxu0 %v2643
    %2677 = vmatprep.subr.mxu0 0.0
    %2678 = vmatpush2.xpose.msra.mxu0 0.0
    %2679 = vmatprep.subr.mxu0 0.0
    %2680 = vmatpush2.xpose.msra.mxu0 0.0
    %2681 = vmatprep.subr.mxu0 0.0
    %2682 = vmatpush2.xpose.msra.mxu0 0.0
    %2683 = vmatprep.subr.mxu0 0.0
    %2684 = vmatpush2.xpose.msra.mxu0 0.0
    %2685 = vmatprep.subr.mxu0 0.0
    %2686 = vmatpush2.xpose.msra.mxu0 0.0
    %2687 = vmatprep.subr.mxu0 0.0
    %2688 = vmatpush2.xpose.msra.mxu0 0.0
    %2689 = vmatprep.subr.mxu0 0.0
    %2690 = vmatpush2.xpose.msra.mxu0 0.0
    %2691 = vmatprep.subr.mxu0 0.0
    %2692 = vmatpush2.xpose.msra.mxu0 0.0
    %2693 = vmatprep.subr.mxu0 0.0
    %2694 = vmatpush2.xpose.msra.mxu0 0.0
    %2695 = vmatprep.subr.mxu0 0.0
    %2696 = vmatpush2.xpose.msra.mxu0 0.0
    %2697 = vmatprep.subr.mxu0 0.0
    %2698 = vmatpush2.xpose.msra.mxu0 0.0
    %2699 = vmatprep.subr.mxu0 0.0
    %2700 = vmatpush2.xpose.msra.mxu0 0.0
    %2701 = vmatprep.subr.mxu0 0.0
    %2702 = vmatpush2.xpose.msra.mxu0 0.0
    %2703 = vmatprep.subr.mxu0 0.0
    %2704 = vmatpush2.xpose.msra.mxu0 0.0
    %2705 = vmatprep.subr.mxu0 0.0
    %2706 = vmatpush2.xpose.msra.mxu0 0.0
    %2707 = vmatprep.subr.mxu0 0.0
    %2708 = vmatpush2.xpose.msra.mxu0 0.0
    %2709 = vmatprep.mubr.f32.mxu0 0.0
    %2710 = vmatmul.mubr.f32.gmra.mxu0 %v2641
    %v2711 = vpop.f32.mrf.mxu0
    %v2712 = vadd.f32 0.0, %v2711
    %v2713 = vpop.f32.mrf.mxu0
    %2714 = vdwg.mxu0
    %v2715 = vmul.f32 %v2180, 0.35355338
    %v2716 = vmul.f32 %v2256, 0.35355338
    %v2717 = vmul.f32 %v2332, 0.35355338
    %v2718 = vmul.f32 %v2408, 0.35355338
    %v2719 = vmul.f32 %v2484, 0.35355338
    %v2720 = vmul.f32 %v2560, 0.35355338
    %v2721 = vmul.f32 %v2636, 0.35355338
    %v2722 = vmul.f32 %v2712, 0.35355338
    %v2723 = vsel %vm229, %v2715, -inf
    %2724 = vmax.xlane.f32.xlu0 %v2723
    %v2725 = vpop.xlane.xlu0 %2724
    %v2726 = vsel %vm229, %v2716, -inf
    %2727 = vmax.xlane.f32.xlu0 %v2726
    %v2728 = vpop.xlane.xlu0 %2727
    %v2729 = vsel %vm229, %v2717, -inf
    %2730 = vmax.xlane.f32.xlu0 %v2729
    %v2731 = vpop.xlane.xlu0 %2730
    %v2732 = vsel %vm229, %v2718, -inf
    %2733 = vmax.xlane.f32.xlu0 %v2732
    %v2734 = vpop.xlane.xlu0 %2733
    %v2735 = vsel %vm229, %v2719, -inf
    %2736 = vmax.xlane.f32.xlu0 %v2735
    %v2737 = vpop.xlane.xlu0 %2736
    %v2738 = vsel %vm229, %v2720, -inf
    %2739 = vmax.xlane.f32.xlu0 %v2738
    %v2740 = vpop.xlane.xlu0 %2739
    %v2741 = vsel %vm229, %v2721, -inf
    %2742 = vmax.xlane.f32.xlu0 %v2741
    %v2743 = vpop.xlane.xlu0 %2742
    %v2744 = vsel %vm229, %v2722, -inf
    %2745 = vmax.xlane.f32.xlu0 %v2744
    %v2746 = vpop.xlane.xlu0 %2745
    %v2747 = vsub.f32 %v2715, %v2725
    %v2748 = vsub.f32 %v2716, %v2728
    %v2749 = vsub.f32 %v2717, %v2731
    %v2750 = vsub.f32 %v2718, %v2734
    %v2751 = vsub.f32 %v2719, %v2737
    %v2752 = vsub.f32 %v2720, %v2740
    %v2753 = vsub.f32 %v2721, %v2743
    %v2754 = vsub.f32 %v2722, %v2746
    %v2755 = vmul.f32 %v2747, 1.442695
    %v2756 = vpow.pop %v2755
    %v2757 = vmul.f32 %v2748, 1.442695
    %v2758 = vpow.pop %v2757
    %v2759 = vmul.f32 %v2749, 1.442695
    %v2760 = vpow.pop %v2759
    %v2761 = vmul.f32 %v2750, 1.442695
    %v2762 = vpow.pop %v2761
    %v2763 = vmul.f32 %v2751, 1.442695
    %v2764 = vpow.pop %v2763
    %v2765 = vmul.f32 %v2752, 1.442695
    %v2766 = vpow.pop %v2765
    %v2767 = vmul.f32 %v2753, 1.442695
    %v2768 = vpow.pop %v2767
    %v2769 = vmul.f32 %v2754, 1.442695
    %v2770 = vpow.pop %v2769
    %v2771 = vsel %vm229, %v2756, 0.0
    %2772 = vadd.xlane.f32.xlu0 %v2771
    %v2773 = vpop.xlane.xlu0 %2772
    %v2774 = vsel %vm229, %v2758, 0.0
    %2775 = vadd.xlane.f32.xlu0 %v2774
    %v2776 = vpop.xlane.xlu0 %2775
    %v2777 = vsel %vm229, %v2760, 0.0
    %2778 = vadd.xlane.f32.xlu0 %v2777
    %v2779 = vpop.xlane.xlu0 %2778
    %v2780 = vsel %vm229, %v2762, 0.0
    %2781 = vadd.xlane.f32.xlu0 %v2780
    %v2782 = vpop.xlane.xlu0 %2781
    %v2783 = vsel %vm229, %v2764, 0.0
    %2784 = vadd.xlane.f32.xlu0 %v2783
    %v2785 = vpop.xlane.xlu0 %2784
    %v2786 = vsel %vm229, %v2766, 0.0
    %2787 = vadd.xlane.f32.xlu0 %v2786
    %v2788 = vpop.xlane.xlu0 %2787
    %v2789 = vsel %vm229, %v2768, 0.0
    %2790 = vadd.xlane.f32.xlu0 %v2789
    %v2791 = vpop.xlane.xlu0 %2790
    %v2792 = vsel %vm229, %v2770, 0.0
    %2793 = vadd.xlane.f32.xlu0 %v2792
    %v2794 = vpop.xlane.xlu0 %2793
    %v2795 = vrcp.pop %v2773
    %v2796 = vrcp.pop %v2776
    %v2797 = vrcp.pop %v2779
    %v2798 = vrcp.pop %v2782
    %v2799 = vrcp.pop %v2785
    %v2800 = vrcp.pop %v2788
    %v2801 = vrcp.pop %v2791
    %v2802 = vrcp.pop %v2794
    %v2803 = vmul.f32 %v2756, %v2795
    %v2804 = vmul.f32 %v2758, %v2796
    %v2805 = vmul.f32 %v2760, %v2797
    %v2806 = vmul.f32 %v2762, %v2798
    %v2807 = vmul.f32 %v2764, %v2799
    %v2808 = vmul.f32 %v2766, %v2800
    %v2809 = vmul.f32 %v2768, %v2801
    %v2810 = vmul.f32 %v2770, %v2802
    %2811 = vrot.lane.b32.xlu0 %v2085, 64
    %v2812 = vpop.permute.xlu0 %2811
    %v2815 = vsel %vm229, %v2803, 0
    %2817 = vmatprep.subr.mxu0 0.0
    %2818 = vmatpush1.msra.mxu0 0.0
    %2819 = vmatprep.subr.mxu0 0.0
    %2820 = vmatpush1.msra.mxu0 0.0
    %2821 = vmatprep.subr.mxu0 0.0
    %2822 = vmatpush1.msra.mxu0 0.0
    %2823 = vmatprep.subr.mxu0 0.0
    %2824 = vmatpush1.msra.mxu0 0.0
    %2825 = vmatprep.subr.mxu0 0.0
    %2826 = vmatpush1.msra.mxu0 0.0
    %2827 = vmatprep.subr.mxu0 0.0
    %2828 = vmatpush1.msra.mxu0 0.0
    %2829 = vmatprep.subr.mxu0 0.0
    %2830 = vmatpush1.msra.mxu0 0.0
    %2831 = vmatprep.subr.mxu0 0.0
    %2832 = vmatpush1.msra.mxu0 0.0
    %2833 = vmatprep.subr.mxu0 0.0
    %2834 = vmatpush1.msra.mxu0 0.0
    %2835 = vmatprep.subr.mxu0 0.0
    %2836 = vmatpush1.msra.mxu0 0.0
    %2837 = vmatprep.subr.mxu0 0.0
    %2838 = vmatpush1.msra.mxu0 0.0
    %2839 = vmatprep.subr.mxu0 0.0
    %2840 = vmatpush1.msra.mxu0 0.0
    %2841 = vmatprep.subr.mxu0 0.0
    %2842 = vmatpush1.msra.mxu0 0.0
    %2843 = vmatprep.subr.mxu0 0.0
    %2844 = vmatpush1.msra.mxu0 0.0
    %2845 = vmatprep.subr.mxu0 0.0
    %2846 = vmatpush1.msra.mxu0 0.0
    %2847 = vmatprep.subr.mxu0 0.0
    %2848 = vmatpush1.msra.mxu0 %v2812
    %2849 = vmatprep.subr.mxu0 0.0
    %2850 = vmatpush2.msra.mxu0 0.0
    %2851 = vmatprep.subr.mxu0 0.0
    %2852 = vmatpush2.msra.mxu0 0.0
    %2853 = vmatprep.subr.mxu0 0.0
    %2854 = vmatpush2.msra.mxu0 0.0
    %2855 = vmatprep.subr.mxu0 0.0
    %2856 = vmatpush2.msra.mxu0 0.0
    %2857 = vmatprep.subr.mxu0 0.0
    %2858 = vmatpush2.msra.mxu0 0.0
    %2859 = vmatprep.subr.mxu0 0.0
    %2860 = vmatpush2.msra.mxu0 0.0
    %2861 = vmatprep.subr.mxu0 0.0
    %2862 = vmatpush2.msra.mxu0 0.0
    %2863 = vmatprep.subr.mxu0 0.0
    %2864 = vmatpush2.msra.mxu0 0.0
    %2865 = vmatprep.subr.mxu0 0.0
    %2866 = vmatpush2.msra.mxu0 0.0
    %2867 = vmatprep.subr.mxu0 0.0
    %2868 = vmatpush2.msra.mxu0 0.0
    %2869 = vmatprep.subr.mxu0 0.0
    %2870 = vmatpush2.msra.mxu0 0.0
    %2871 = vmatprep.subr.mxu0 0.0
    %2872 = vmatpush2.msra.mxu0 0.0
    %2873 = vmatprep.subr.mxu0 0.0
    %2874 = vmatpush2.msra.mxu0 0.0
    %2875 = vmatprep.subr.mxu0 0.0
    %2876 = vmatpush2.msra.mxu0 0.0
    %2877 = vmatprep.subr.mxu0 0.0
    %2878 = vmatpush2.msra.mxu0 0.0
    %2879 = vmatprep.subr.mxu0 0.0
    %2880 = vmatpush2.msra.mxu0 0.0
    %2881 = vmatprep.mubr.f32.mxu0 0.0
    %2882 = vmatmul.mubr.f32.gmra.mxu0 %v2815
    %v2883 = vpop.f32.mrf.mxu0
    %v2884 = vadd.f32 0.0, %v2883
    %v2885 = vpop.f32.mrf.mxu0
    %2886 = vdwg.mxu0
    %2887 = vrot.lane.b32.xlu0 %v2095, 64
    %v2888 = vpop.permute.xlu0 %2887
    %v2891 = vsel %vm229, %v2804, 0
    %2893 = vmatprep.subr.mxu0 0.0
    %2894 = vmatpush1.msra.mxu0 0.0
    %2895 = vmatprep.subr.mxu0 0.0
    %2896 = vmatpush1.msra.mxu0 0.0
    %2897 = vmatprep.subr.mxu0 0.0
    %2898 = vmatpush1.msra.mxu0 0.0
    %2899 = vmatprep.subr.mxu0 0.0
    %2900 = vmatpush1.msra.mxu0 0.0
    %2901 = vmatprep.subr.mxu0 0.0
    %2902 = vmatpush1.msra.mxu0 0.0
    %2903 = vmatprep.subr.mxu0 0.0
    %2904 = vmatpush1.msra.mxu0 0.0
    %2905 = vmatprep.subr.mxu0 0.0
    %2906 = vmatpush1.msra.mxu0 0.0
    %2907 = vmatprep.subr.mxu0 0.0
    %2908 = vmatpush1.msra.mxu0 0.0
    %2909 = vmatprep.subr.mxu0 0.0
    %2910 = vmatpush1.msra.mxu0 0.0
    %2911 = vmatprep.subr.mxu0 0.0
    %2912 = vmatpush1.msra.mxu0 0.0
    %2913 = vmatprep.subr.mxu0 0.0
    %2914 = vmatpush1.msra.mxu0 0.0
    %2915 = vmatprep.subr.mxu0 0.0
    %2916 = vmatpush1.msra.mxu0 0.0
    %2917 = vmatprep.subr.mxu0 0.0
    %2918 = vmatpush1.msra.mxu0 0.0
    %2919 = vmatprep.subr.mxu0 0.0
    %2920 = vmatpush1.msra.mxu0 0.0
    %2921 = vmatprep.subr.mxu0 0.0
    %2922 = vmatpush1.msra.mxu0 0.0
    %2923 = vmatprep.subr.mxu0 0.0
    %2924 = vmatpush1.msra.mxu0 %v2888
    %2925 = vmatprep.subr.mxu0 0.0
    %2926 = vmatpush2.msra.mxu0 0.0
    %2927 = vmatprep.subr.mxu0 0.0
    %2928 = vmatpush2.msra.mxu0 0.0
    %2929 = vmatprep.subr.mxu0 0.0
    %2930 = vmatpush2.msra.mxu0 0.0
    %2931 = vmatprep.subr.mxu0 0.0
    %2932 = vmatpush2.msra.mxu0 0.0
    %2933 = vmatprep.subr.mxu0 0.0
    %2934 = vmatpush2.msra.mxu0 0.0
    %2935 = vmatprep.subr.mxu0 0.0
    %2936 = vmatpush2.msra.mxu0 0.0
    %2937 = vmatprep.subr.mxu0 0.0
    %2938 = vmatpush2.msra.mxu0 0.0
    %2939 = vmatprep.subr.mxu0 0.0
    %2940 = vmatpush2.msra.mxu0 0.0
    %2941 = vmatprep.subr.mxu0 0.0
    %2942 = vmatpush2.msra.mxu0 0.0
    %2943 = vmatprep.subr.mxu0 0.0
    %2944 = vmatpush2.msra.mxu0 0.0
    %2945 = vmatprep.subr.mxu0 0.0
    %2946 = vmatpush2.msra.mxu0 0.0
    %2947 = vmatprep.subr.mxu0 0.0
    %2948 = vmatpush2.msra.mxu0 0.0
    %2949 = vmatprep.subr.mxu0 0.0
    %2950 = vmatpush2.msra.mxu0 0.0
    %2951 = vmatprep.subr.mxu0 0.0
    %2952 = vmatpush2.msra.mxu0 0.0
    %2953 = vmatprep.subr.mxu0 0.0
    %2954 = vmatpush2.msra.mxu0 0.0
    %2955 = vmatprep.subr.mxu0 0.0
    %2956 = vmatpush2.msra.mxu0 0.0
    %2957 = vmatprep.mubr.f32.mxu0 0.0
    %2958 = vmatmul.mubr.f32.gmra.mxu0 %v2891
    %v2959 = vpop.f32.mrf.mxu0
    %v2960 = vadd.f32 0.0, %v2959
    %v2961 = vpop.f32.mrf.mxu0
    %2962 = vdwg.mxu0
    %2963 = vrot.lane.b32.xlu0 %v2097, 64
    %v2964 = vpop.permute.xlu0 %2963
    %v2967 = vsel %vm229, %v2805, 0
    %2969 = vmatprep.subr.mxu0 0.0
    %2970 = vmatpush1.msra.mxu0 0.0
    %2971 = vmatprep.subr.mxu0 0.0
    %2972 = vmatpush1.msra.mxu0 0.0
    %2973 = vmatprep.subr.mxu0 0.0
    %2974 = vmatpush1.msra.mxu0 0.0
    %2975 = vmatprep.subr.mxu0 0.0
    %2976 = vmatpush1.msra.mxu0 0.0
    %2977 = vmatprep.subr.mxu0 0.0
    %2978 = vmatpush1.msra.mxu0 0.0
    %2979 = vmatprep.subr.mxu0 0.0
    %2980 = vmatpush1.msra.mxu0 0.0
    %2981 = vmatprep.subr.mxu0 0.0
    %2982 = vmatpush1.msra.mxu0 0.0
    %2983 = vmatprep.subr.mxu0 0.0
    %2984 = vmatpush1.msra.mxu0 0.0
    %2985 = vmatprep.subr.mxu0 0.0
    %2986 = vmatpush1.msra.mxu0 0.0
    %2987 = vmatprep.subr.mxu0 0.0
    %2988 = vmatpush1.msra.mxu0 0.0
    %2989 = vmatprep.subr.mxu0 0.0
    %2990 = vmatpush1.msra.mxu0 0.0
    %2991 = vmatprep.subr.mxu0 0.0
    %2992 = vmatpush1.msra.mxu0 0.0
    %2993 = vmatprep.subr.mxu0 0.0
    %2994 = vmatpush1.msra.mxu0 0.0
    %2995 = vmatprep.subr.mxu0 0.0
    %2996 = vmatpush1.msra.mxu0 0.0
    %2997 = vmatprep.subr.mxu0 0.0
    %2998 = vmatpush1.msra.mxu0 0.0
    %2999 = vmatprep.subr.mxu0 0.0
    %3000 = vmatpush1.msra.mxu0 %v2964
    %3001 = vmatprep.subr.mxu0 0.0
    %3002 = vmatpush2.msra.mxu0 0.0
    %3003 = vmatprep.subr.mxu0 0.0
    %3004 = vmatpush2.msra.mxu0 0.0
    %3005 = vmatprep.subr.mxu0 0.0
    %3006 = vmatpush2.msra.mxu0 0.0
    %3007 = vmatprep.subr.mxu0 0.0
    %3008 = vmatpush2.msra.mxu0 0.0
    %3009 = vmatprep.subr.mxu0 0.0
    %3010 = vmatpush2.msra.mxu0 0.0
    %3011 = vmatprep.subr.mxu0 0.0
    %3012 = vmatpush2.msra.mxu0 0.0
    %3013 = vmatprep.subr.mxu0 0.0
    %3014 = vmatpush2.msra.mxu0 0.0
    %3015 = vmatprep.subr.mxu0 0.0
    %3016 = vmatpush2.msra.mxu0 0.0
    %3017 = vmatprep.subr.mxu0 0.0
    %3018 = vmatpush2.msra.mxu0 0.0
    %3019 = vmatprep.subr.mxu0 0.0
    %3020 = vmatpush2.msra.mxu0 0.0
    %3021 = vmatprep.subr.mxu0 0.0
    %3022 = vmatpush2.msra.mxu0 0.0
    %3023 = vmatprep.subr.mxu0 0.0
    %3024 = vmatpush2.msra.mxu0 0.0
    %3025 = vmatprep.subr.mxu0 0.0
    %3026 = vmatpush2.msra.mxu0 0.0
    %3027 = vmatprep.subr.mxu0 0.0
    %3028 = vmatpush2.msra.mxu0 0.0
    %3029 = vmatprep.subr.mxu0 0.0
    %3030 = vmatpush2.msra.mxu0 0.0
    %3031 = vmatprep.subr.mxu0 0.0
    %3032 = vmatpush2.msra.mxu0 0.0
    %3033 = vmatprep.mubr.f32.mxu0 0.0
    %3034 = vmatmul.mubr.f32.gmra.mxu0 %v2967
    %v3035 = vpop.f32.mrf.mxu0
    %v3036 = vadd.f32 0.0, %v3035
    %v3037 = vpop.f32.mrf.mxu0
    %3038 = vdwg.mxu0
    %3039 = vrot.lane.b32.xlu0 %v2099, 64
    %v3040 = vpop.permute.xlu0 %3039
    %v3043 = vsel %vm229, %v2806, 0
    %3045 = vmatprep.subr.mxu0 0.0
    %3046 = vmatpush1.msra.mxu0 0.0
    %3047 = vmatprep.subr.mxu0 0.0
    %3048 = vmatpush1.msra.mxu0 0.0
    %3049 = vmatprep.subr.mxu0 0.0
    %3050 = vmatpush1.msra.mxu0 0.0
    %3051 = vmatprep.subr.mxu0 0.0
    %3052 = vmatpush1.msra.mxu0 0.0
    %3053 = vmatprep.subr.mxu0 0.0
    %3054 = vmatpush1.msra.mxu0 0.0
    %3055 = vmatprep.subr.mxu0 0.0
    %3056 = vmatpush1.msra.mxu0 0.0
    %3057 = vmatprep.subr.mxu0 0.0
    %3058 = vmatpush1.msra.mxu0 0.0
    %3059 = vmatprep.subr.mxu0 0.0
    %3060 = vmatpush1.msra.mxu0 0.0
    %3061 = vmatprep.subr.mxu0 0.0
    %3062 = vmatpush1.msra.mxu0 0.0
    %3063 = vmatprep.subr.mxu0 0.0
    %3064 = vmatpush1.msra.mxu0 0.0
    %3065 = vmatprep.subr.mxu0 0.0
    %3066 = vmatpush1.msra.mxu0 0.0
    %3067 = vmatprep.subr.mxu0 0.0
    %3068 = vmatpush1.msra.mxu0 0.0
    %3069 = vmatprep.subr.mxu0 0.0
    %3070 = vmatpush1.msra.mxu0 0.0
    %3071 = vmatprep.subr.mxu0 0.0
    %3072 = vmatpush1.msra.mxu0 0.0
    %3073 = vmatprep.subr.mxu0 0.0
    %3074 = vmatpush1.msra.mxu0 0.0
    %3075 = vmatprep.subr.mxu0 0.0
    %3076 = vmatpush1.msra.mxu0 %v3040
    %3077 = vmatprep.subr.mxu0 0.0
    %3078 = vmatpush2.msra.mxu0 0.0
    %3079 = vmatprep.subr.mxu0 0.0
    %3080 = vmatpush2.msra.mxu0 0.0
    %3081 = vmatprep.subr.mxu0 0.0
    %3082 = vmatpush2.msra.mxu0 0.0
    %3083 = vmatprep.subr.mxu0 0.0
    %3084 = vmatpush2.msra.mxu0 0.0
    %3085 = vmatprep.subr.mxu0 0.0
    %3086 = vmatpush2.msra.mxu0 0.0
    %3087 = vmatprep.subr.mxu0 0.0
    %3088 = vmatpush2.msra.mxu0 0.0
    %3089 = vmatprep.subr.mxu0 0.0
    %3090 = vmatpush2.msra.mxu0 0.0
    %3091 = vmatprep.subr.mxu0 0.0
    %3092 = vmatpush2.msra.mxu0 0.0
    %3093 = vmatprep.subr.mxu0 0.0
    %3094 = vmatpush2.msra.mxu0 0.0
    %3095 = vmatprep.subr.mxu0 0.0
    %3096 = vmatpush2.msra.mxu0 0.0
    %3097 = vmatprep.subr.mxu0 0.0
    %3098 = vmatpush2.msra.mxu0 0.0
    %3099 = vmatprep.subr.mxu0 0.0
    %3100 = vmatpush2.msra.mxu0 0.0
    %3101 = vmatprep.subr.mxu0 0.0
    %3102 = vmatpush2.msra.mxu0 0.0
    %3103 = vmatprep.subr.mxu0 0.0
    %3104 = vmatpush2.msra.mxu0 0.0
    %3105 = vmatprep.subr.mxu0 0.0
    %3106 = vmatpush2.msra.mxu0 0.0
    %3107 = vmatprep.subr.mxu0 0.0
    %3108 = vmatpush2.msra.mxu0 0.0
    %3109 = vmatprep.mubr.f32.mxu0 0.0
    %3110 = vmatmul.mubr.f32.gmra.mxu0 %v3043
    %v3111 = vpop.f32.mrf.mxu0
    %v3112 = vadd.f32 0.0, %v3111
    %v3113 = vpop.f32.mrf.mxu0
    %3114 = vdwg.mxu0
    %3115 = vrot.lane.b32.xlu0 %v2090, 64
    %v3116 = vpop.permute.xlu0 %3115
    %v3119 = vsel %vm229, %v2807, 0
    %3121 = vmatprep.subr.mxu0 0.0
    %3122 = vmatpush1.msra.mxu0 0.0
    %3123 = vmatprep.subr.mxu0 0.0
    %3124 = vmatpush1.msra.mxu0 0.0
    %3125 = vmatprep.subr.mxu0 0.0
    %3126 = vmatpush1.msra.mxu0 0.0
    %3127 = vmatprep.subr.mxu0 0.0
    %3128 = vmatpush1.msra.mxu0 0.0
    %3129 = vmatprep.subr.mxu0 0.0
    %3130 = vmatpush1.msra.mxu0 0.0
    %3131 = vmatprep.subr.mxu0 0.0
    %3132 = vmatpush1.msra.mxu0 0.0
    %3133 = vmatprep.subr.mxu0 0.0
    %3134 = vmatpush1.msra.mxu0 0.0
    %3135 = vmatprep.subr.mxu0 0.0
    %3136 = vmatpush1.msra.mxu0 0.0
    %3137 = vmatprep.subr.mxu0 0.0
    %3138 = vmatpush1.msra.mxu0 0.0
    %3139 = vmatprep.subr.mxu0 0.0
    %3140 = vmatpush1.msra.mxu0 0.0
    %3141 = vmatprep.subr.mxu0 0.0
    %3142 = vmatpush1.msra.mxu0 0.0
    %3143 = vmatprep.subr.mxu0 0.0
    %3144 = vmatpush1.msra.mxu0 0.0
    %3145 = vmatprep.subr.mxu0 0.0
    %3146 = vmatpush1.msra.mxu0 0.0
    %3147 = vmatprep.subr.mxu0 0.0
    %3148 = vmatpush1.msra.mxu0 0.0
    %3149 = vmatprep.subr.mxu0 0.0
    %3150 = vmatpush1.msra.mxu0 0.0
    %3151 = vmatprep.subr.mxu0 0.0
    %3152 = vmatpush1.msra.mxu0 %v3116
    %3153 = vmatprep.subr.mxu0 0.0
    %3154 = vmatpush2.msra.mxu0 0.0
    %3155 = vmatprep.subr.mxu0 0.0
    %3156 = vmatpush2.msra.mxu0 0.0
    %3157 = vmatprep.subr.mxu0 0.0
    %3158 = vmatpush2.msra.mxu0 0.0
    %3159 = vmatprep.subr.mxu0 0.0
    %3160 = vmatpush2.msra.mxu0 0.0
    %3161 = vmatprep.subr.mxu0 0.0
    %3162 = vmatpush2.msra.mxu0 0.0
    %3163 = vmatprep.subr.mxu0 0.0
    %3164 = vmatpush2.msra.mxu0 0.0
    %3165 = vmatprep.subr.mxu0 0.0
    %3166 = vmatpush2.msra.mxu0 0.0
    %3167 = vmatprep.subr.mxu0 0.0
    %3168 = vmatpush2.msra.mxu0 0.0
    %3169 = vmatprep.subr.mxu0 0.0
    %3170 = vmatpush2.msra.mxu0 0.0
    %3171 = vmatprep.subr.mxu0 0.0
    %3172 = vmatpush2.msra.mxu0 0.0
    %3173 = vmatprep.subr.mxu0 0.0
    %3174 = vmatpush2.msra.mxu0 0.0
    %3175 = vmatprep.subr.mxu0 0.0
    %3176 = vmatpush2.msra.mxu0 0.0
    %3177 = vmatprep.subr.mxu0 0.0
    %3178 = vmatpush2.msra.mxu0 0.0
    %3179 = vmatprep.subr.mxu0 0.0
    %3180 = vmatpush2.msra.mxu0 0.0
    %3181 = vmatprep.subr.mxu0 0.0
    %3182 = vmatpush2.msra.mxu0 0.0
    %3183 = vmatprep.subr.mxu0 0.0
    %3184 = vmatpush2.msra.mxu0 0.0
    %3185 = vmatprep.mubr.f32.mxu0 0.0
    %3186 = vmatmul.mubr.f32.gmra.mxu0 %v3119
    %v3187 = vpop.f32.mrf.mxu0
    %v3188 = vadd.f32 0.0, %v3187
    %v3189 = vpop.f32.mrf.mxu0
    %3190 = vdwg.mxu0
    %3191 = vrot.lane.b32.xlu0 %v2102, 64
    %v3192 = vpop.permute.xlu0 %3191
    %v3195 = vsel %vm229, %v2808, 0
    %3197 = vmatprep.subr.mxu0 0.0
    %3198 = vmatpush1.msra.mxu0 0.0
    %3199 = vmatprep.subr.mxu0 0.0
    %3200 = vmatpush1.msra.mxu0 0.0
    %3201 = vmatprep.subr.mxu0 0.0
    %3202 = vmatpush1.msra.mxu0 0.0
    %3203 = vmatprep.subr.mxu0 0.0
    %3204 = vmatpush1.msra.mxu0 0.0
    %3205 = vmatprep.subr.mxu0 0.0
    %3206 = vmatpush1.msra.mxu0 0.0
    %3207 = vmatprep.subr.mxu0 0.0
    %3208 = vmatpush1.msra.mxu0 0.0
    %3209 = vmatprep.subr.mxu0 0.0
    %3210 = vmatpush1.msra.mxu0 0.0
    %3211 = vmatprep.subr.mxu0 0.0
    %3212 = vmatpush1.msra.mxu0 0.0
    %3213 = vmatprep.subr.mxu0 0.0
    %3214 = vmatpush1.msra.mxu0 0.0
    %3215 = vmatprep.subr.mxu0 0.0
    %3216 = vmatpush1.msra.mxu0 0.0
    %3217 = vmatprep.subr.mxu0 0.0
    %3218 = vmatpush1.msra.mxu0 0.0
    %3219 = vmatprep.subr.mxu0 0.0
    %3220 = vmatpush1.msra.mxu0 0.0
    %3221 = vmatprep.subr.mxu0 0.0
    %3222 = vmatpush1.msra.mxu0 0.0
    %3223 = vmatprep.subr.mxu0 0.0
    %3224 = vmatpush1.msra.mxu0 0.0
    %3225 = vmatprep.subr.mxu0 0.0
    %3226 = vmatpush1.msra.mxu0 0.0
    %3227 = vmatprep.subr.mxu0 0.0
    %3228 = vmatpush1.msra.mxu0 %v3192
    %3229 = vmatprep.subr.mxu0 0.0
    %3230 = vmatpush2.msra.mxu0 0.0
    %3231 = vmatprep.subr.mxu0 0.0
    %3232 = vmatpush2.msra.mxu0 0.0
    %3233 = vmatprep.subr.mxu0 0.0
    %3234 = vmatpush2.msra.mxu0 0.0
    %3235 = vmatprep.subr.mxu0 0.0
    %3236 = vmatpush2.msra.mxu0 0.0
    %3237 = vmatprep.subr.mxu0 0.0
    %3238 = vmatpush2.msra.mxu0 0.0
    %3239 = vmatprep.subr.mxu0 0.0
    %3240 = vmatpush2.msra.mxu0 0.0
    %3241 = vmatprep.subr.mxu0 0.0
    %3242 = vmatpush2.msra.mxu0 0.0
    %3243 = vmatprep.subr.mxu0 0.0
    %3244 = vmatpush2.msra.mxu0 0.0
    %3245 = vmatprep.subr.mxu0 0.0
    %3246 = vmatpush2.msra.mxu0 0.0
    %3247 = vmatprep.subr.mxu0 0.0
    %3248 = vmatpush2.msra.mxu0 0.0
    %3249 = vmatprep.subr.mxu0 0.0
    %3250 = vmatpush2.msra.mxu0 0.0
    %3251 = vmatprep.subr.mxu0 0.0
    %3252 = vmatpush2.msra.mxu0 0.0
    %3253 = vmatprep.subr.mxu0 0.0
    %3254 = vmatpush2.msra.mxu0 0.0
    %3255 = vmatprep.subr.mxu0 0.0
    %3256 = vmatpush2.msra.mxu0 0.0
    %3257 = vmatprep.subr.mxu0 0.0
    %3258 = vmatpush2.msra.mxu0 0.0
    %3259 = vmatprep.subr.mxu0 0.0
    %3260 = vmatpush2.msra.mxu0 0.0
    %3261 = vmatprep.mubr.f32.mxu0 0.0
    %3262 = vmatmul.mubr.f32.gmra.mxu0 %v3195
    %v3263 = vpop.f32.mrf.mxu0
    %v3264 = vadd.f32 0.0, %v3263
    %v3265 = vpop.f32.mrf.mxu0
    %3266 = vdwg.mxu0
    %3267 = vrot.lane.b32.xlu0 %v2104, 64
    %v3268 = vpop.permute.xlu0 %3267
    %v3271 = vsel %vm229, %v2809, 0
    %3273 = vmatprep.subr.mxu0 0.0
    %3274 = vmatpush1.msra.mxu0 0.0
    %3275 = vmatprep.subr.mxu0 0.0
    %3276 = vmatpush1.msra.mxu0 0.0
    %3277 = vmatprep.subr.mxu0 0.0
    %3278 = vmatpush1.msra.mxu0 0.0
    %3279 = vmatprep.subr.mxu0 0.0
    %3280 = vmatpush1.msra.mxu0 0.0
    %3281 = vmatprep.subr.mxu0 0.0
    %3282 = vmatpush1.msra.mxu0 0.0
    %3283 = vmatprep.subr.mxu0 0.0
    %3284 = vmatpush1.msra.mxu0 0.0
    %3285 = vmatprep.subr.mxu0 0.0
    %3286 = vmatpush1.msra.mxu0 0.0
    %3287 = vmatprep.subr.mxu0 0.0
    %3288 = vmatpush1.msra.mxu0 0.0
    %3289 = vmatprep.subr.mxu0 0.0
    %3290 = vmatpush1.msra.mxu0 0.0
    %3291 = vmatprep.subr.mxu0 0.0
    %3292 = vmatpush1.msra.mxu0 0.0
    %3293 = vmatprep.subr.mxu0 0.0
    %3294 = vmatpush1.msra.mxu0 0.0
    %3295 = vmatprep.subr.mxu0 0.0
    %3296 = vmatpush1.msra.mxu0 0.0
    %3297 = vmatprep.subr.mxu0 0.0
    %3298 = vmatpush1.msra.mxu0 0.0
    %3299 = vmatprep.subr.mxu0 0.0
    %3300 = vmatpush1.msra.mxu0 0.0
    %3301 = vmatprep.subr.mxu0 0.0
    %3302 = vmatpush1.msra.mxu0 0.0
    %3303 = vmatprep.subr.mxu0 0.0
    %3304 = vmatpush1.msra.mxu0 %v3268
    %3305 = vmatprep.subr.mxu0 0.0
    %3306 = vmatpush2.msra.mxu0 0.0
    %3307 = vmatprep.subr.mxu0 0.0
    %3308 = vmatpush2.msra.mxu0 0.0
    %3309 = vmatprep.subr.mxu0 0.0
    %3310 = vmatpush2.msra.mxu0 0.0
    %3311 = vmatprep.subr.mxu0 0.0
    %3312 = vmatpush2.msra.mxu0 0.0
    %3313 = vmatprep.subr.mxu0 0.0
    %3314 = vmatpush2.msra.mxu0 0.0
    %3315 = vmatprep.subr.mxu0 0.0
    %3316 = vmatpush2.msra.mxu0 0.0
    %3317 = vmatprep.subr.mxu0 0.0
    %3318 = vmatpush2.msra.mxu0 0.0
    %3319 = vmatprep.subr.mxu0 0.0
    %3320 = vmatpush2.msra.mxu0 0.0
    %3321 = vmatprep.subr.mxu0 0.0
    %3322 = vmatpush2.msra.mxu0 0.0
    %3323 = vmatprep.subr.mxu0 0.0
    %3324 = vmatpush2.msra.mxu0 0.0
    %3325 = vmatprep.subr.mxu0 0.0
    %3326 = vmatpush2.msra.mxu0 0.0
    %3327 = vmatprep.subr.mxu0 0.0
    %3328 = vmatpush2.msra.mxu0 0.0
    %3329 = vmatprep.subr.mxu0 0.0
    %3330 = vmatpush2.msra.mxu0 0.0
    %3331 = vmatprep.subr.mxu0 0.0
    %3332 = vmatpush2.msra.mxu0 0.0
    %3333 = vmatprep.subr.mxu0 0.0
    %3334 = vmatpush2.msra.mxu0 0.0
    %3335 = vmatprep.subr.mxu0 0.0
    %3336 = vmatpush2.msra.mxu0 0.0
    %3337 = vmatprep.mubr.f32.mxu0 0.0
    %3338 = vmatmul.mubr.f32.gmra.mxu0 %v3271
    %v3339 = vpop.f32.mrf.mxu0
    %v3340 = vadd.f32 0.0, %v3339
    %v3341 = vpop.f32.mrf.mxu0
    %3342 = vdwg.mxu0
    %3343 = vrot.lane.b32.xlu0 %v2106, 64
    %v3344 = vpop.permute.xlu0 %3343
    %v3347 = vsel %vm229, %v2810, 0
    %3349 = vmatprep.subr.mxu0 0.0
    %3350 = vmatpush1.msra.mxu0 0.0
    %3351 = vmatprep.subr.mxu0 0.0
    %3352 = vmatpush1.msra.mxu0 0.0
    %3353 = vmatprep.subr.mxu0 0.0
    %3354 = vmatpush1.msra.mxu0 0.0
    %3355 = vmatprep.subr.mxu0 0.0
    %3356 = vmatpush1.msra.mxu0 0.0
    %3357 = vmatprep.subr.mxu0 0.0
    %3358 = vmatpush1.msra.mxu0 0.0
    %3359 = vmatprep.subr.mxu0 0.0
    %3360 = vmatpush1.msra.mxu0 0.0
    %3361 = vmatprep.subr.mxu0 0.0
    %3362 = vmatpush1.msra.mxu0 0.0
    %3363 = vmatprep.subr.mxu0 0.0
    %3364 = vmatpush1.msra.mxu0 0.0
    %3365 = vmatprep.subr.mxu0 0.0
    %3366 = vmatpush1.msra.mxu0 0.0
    %3367 = vmatprep.subr.mxu0 0.0
    %3368 = vmatpush1.msra.mxu0 0.0
    %3369 = vmatprep.subr.mxu0 0.0
    %3370 = vmatpush1.msra.mxu0 0.0
    %3371 = vmatprep.subr.mxu0 0.0
    %3372 = vmatpush1.msra.mxu0 0.0
    %3373 = vmatprep.subr.mxu0 0.0
    %3374 = vmatpush1.msra.mxu0 0.0
    %3375 = vmatprep.subr.mxu0 0.0
    %3376 = vmatpush1.msra.mxu0 0.0
    %3377 = vmatprep.subr.mxu0 0.0
    %3378 = vmatpush1.msra.mxu0 0.0
    %3379 = vmatprep.subr.mxu0 0.0
    %3380 = vmatpush1.msra.mxu0 %v3344
    %3381 = vmatprep.subr.mxu0 0.0
    %3382 = vmatpush2.msra.mxu0 0.0
    %3383 = vmatprep.subr.mxu0 0.0
    %3384 = vmatpush2.msra.mxu0 0.0
    %3385 = vmatprep.subr.mxu0 0.0
    %3386 = vmatpush2.msra.mxu0 0.0
    %3387 = vmatprep.subr.mxu0 0.0
    %3388 = vmatpush2.msra.mxu0 0.0
    %3389 = vmatprep.subr.mxu0 0.0
    %3390 = vmatpush2.msra.mxu0 0.0
    %3391 = vmatprep.subr.mxu0 0.0
    %3392 = vmatpush2.msra.mxu0 0.0
    %3393 = vmatprep.subr.mxu0 0.0
    %3394 = vmatpush2.msra.mxu0 0.0
    %3395 = vmatprep.subr.mxu0 0.0
    %3396 = vmatpush2.msra.mxu0 0.0
    %3397 = vmatprep.subr.mxu0 0.0
    %3398 = vmatpush2.msra.mxu0 0.0
    %3399 = vmatprep.subr.mxu0 0.0
    %3400 = vmatpush2.msra.mxu0 0.0
    %3401 = vmatprep.subr.mxu0 0.0
    %3402 = vmatpush2.msra.mxu0 0.0
    %3403 = vmatprep.subr.mxu0 0.0
    %3404 = vmatpush2.msra.mxu0 0.0
    %3405 = vmatprep.subr.mxu0 0.0
    %3406 = vmatpush2.msra.mxu0 0.0
    %3407 = vmatprep.subr.mxu0 0.0
    %3408 = vmatpush2.msra.mxu0 0.0
    %3409 = vmatprep.subr.mxu0 0.0
    %3410 = vmatpush2.msra.mxu0 0.0
    %3411 = vmatprep.subr.mxu0 0.0
    %3412 = vmatpush2.msra.mxu0 0.0
    %3413 = vmatprep.mubr.f32.mxu0 0.0
    %3414 = vmatmul.mubr.f32.gmra.mxu0 %v3347
    %v3415 = vpop.f32.mrf.mxu0
    %v3416 = vadd.f32 0.0, %v3415
    %v3417 = vpop.f32.mrf.mxu0
    %3418 = vdwg.mxu0
    %3420 = vrot.lane.b32.xlu0 %v2960, 8
    %v3421 = vpop.permute.xlu0 %3420
    %3424 = vrot.lane.b32.xlu0 %v3036, 16
    %v3425 = vpop.permute.xlu0 %3424
    %3428 = vrot.lane.b32.xlu0 %v3112, 24
    %v3429 = vpop.permute.xlu0 %3428
    %v3431 = vsel %vm229, %v2884, %v3421
    %v3432 = vsel %vm1553, %v3431, %v3425
    %v3433 = vsel %vm1555, %v3432, %v3429
    %3435 = vrot.lane.b32.xlu0 %v3264, 8
    %v3436 = vpop.permute.xlu0 %3435
    %3439 = vrot.lane.b32.xlu0 %v3340, 16
    %v3440 = vpop.permute.xlu0 %3439
    %3443 = vrot.lane.b32.xlu0 %v3416, 24
    %v3444 = vpop.permute.xlu0 %3443
    %v3446 = vsel %vm229, %v3188, %v3436
    %v3447 = vsel %vm1553, %v3446, %v3440
    %v3448 = vsel %vm1555, %v3447, %v3444
    %s3449 = scalar_lea.vmem %s4, 32
    %v3450 = vld [vmem:[%s3449] sm:$0xff]
    %v3451 = vld [vmem:[%s3449 + $0x8] sm:$0xff]
    %v3452 = vld [vmem:[%s3449 + $0x10] sm:$0xff]
    %v3453 = vld [vmem:[%s3449 + $0x18] sm:$0xff]
    %s3454 = scalar_lea.vmem %s5, 1
    %v3455 = vld [vmem:[%s3454] sm:$0x1]
    %v3457 = vlaneseq
    %v3458 = vshrl.u32 %v3457, 7
    %v3459 = vsub.s32 0, %v3458
    %v3460 = vrot.slane %v3455, %v3459
    %v3463 = vsel %vm80, %v3433, 0
    %v3466 = vsel %vm80, %v3448, 0
    %3468 = vmatprep.subr.mxu0 0.0
    %3469 = vmatpush1.msra.mxu0 0.0
    %3470 = vmatprep.subr.mxu0 0.0
    %3471 = vmatpush1.msra.mxu0 0.0
    %3472 = vmatprep.subr.mxu0 0.0
    %3473 = vmatpush1.msra.mxu0 0.0
    %3474 = vmatprep.subr.mxu0 0.0
    %3475 = vmatpush1.msra.mxu0 0.0
    %3476 = vmatprep.subr.mxu0 0.0
    %3477 = vmatpush1.msra.mxu0 0.0
    %3478 = vmatprep.subr.mxu0 0.0
    %3479 = vmatpush1.msra.mxu0 0.0
    %3480 = vmatprep.subr.mxu0 0.0
    %3481 = vmatpush1.msra.mxu0 0.0
    %3482 = vmatprep.subr.mxu0 0.0
    %3483 = vmatpush1.msra.mxu0 0.0
    %3484 = vmatprep.subr.mxu0 0.0
    %3485 = vmatpush1.msra.mxu0 0.0
    %3486 = vmatprep.subr.mxu0 0.0
    %3487 = vmatpush1.msra.mxu0 0.0
    %3488 = vmatprep.subr.mxu0 0.0
    %3489 = vmatpush1.msra.mxu0 0.0
    %3490 = vmatprep.subr.mxu0 0.0
    %3491 = vmatpush1.msra.mxu0 0.0
    %3492 = vmatprep.subr.mxu0 0.0
    %3493 = vmatpush1.msra.mxu0 %v3453
    %3494 = vmatprep.subr.mxu0 0.0
    %3495 = vmatpush1.msra.mxu0 %v3452
    %3496 = vmatprep.subr.mxu0 0.0
    %3497 = vmatpush1.msra.mxu0 %v3451
    %3498 = vmatprep.subr.mxu0 0.0
    %3499 = vmatpush1.msra.mxu0 %v3450
    %3500 = vmatprep.subr.mxu0 0.0
    %3501 = vmatpush2.msra.mxu0 0.0
    %3502 = vmatprep.subr.mxu0 0.0
    %3503 = vmatpush2.msra.mxu0 0.0
    %3504 = vmatprep.subr.mxu0 0.0
    %3505 = vmatpush2.msra.mxu0 0.0
    %3506 = vmatprep.subr.mxu0 0.0
    %3507 = vmatpush2.msra.mxu0 0.0
    %3508 = vmatprep.subr.mxu0 0.0
    %3509 = vmatpush2.msra.mxu0 0.0
    %3510 = vmatprep.subr.mxu0 0.0
    %3511 = vmatpush2.msra.mxu0 0.0
    %3512 = vmatprep.subr.mxu0 0.0
    %3513 = vmatpush2.msra.mxu0 0.0
    %3514 = vmatprep.subr.mxu0 0.0
    %3515 = vmatpush2.msra.mxu0 0.0
    %3516 = vmatprep.subr.mxu0 0.0
    %3517 = vmatpush2.msra.mxu0 0.0
    %3518 = vmatprep.subr.mxu0 0.0
    %3519 = vmatpush2.msra.mxu0 0.0
    %3520 = vmatprep.subr.mxu0 0.0
    %3521 = vmatpush2.msra.mxu0 0.0
    %3522 = vmatprep.subr.mxu0 0.0
    %3523 = vmatpush2.msra.mxu0 0.0
    %3524 = vmatprep.subr.mxu0 0.0
    %3525 = vmatpush2.msra.mxu0 0.0
    %3526 = vmatprep.subr.mxu0 0.0
    %3527 = vmatpush2.msra.mxu0 0.0
    %3528 = vmatprep.subr.mxu0 0.0
    %3529 = vmatpush2.msra.mxu0 0.0
    %3530 = vmatprep.subr.mxu0 0.0
    %3531 = vmatpush2.msra.mxu0 0.0
    %3532 = vmatprep.mubr.f32.mxu0 0.0
    %3533 = vmatmul.mubr.f32.gmra.mxu0 %v3463
    %v3534 = vpop.f32.mrf.mxu0
    %v3535 = vadd.f32 %v3460, %v3534
    %v3536 = vpop.f32.mrf.mxu0
    %3537 = vmatprep.mubr.f32.mxu0 0.0
    %3538 = vmatmul.mubr.f32.gmra.mxu0 %v3466
    %v3539 = vpop.f32.mrf.mxu0
    %v3540 = vadd.f32 %v3460, %v3539
    %v3541 = vpop.f32.mrf.mxu0
    %3542 = vdwg.mxu0
    %v3543 = vadd.f32 %v3535, %v1955
    %v3544 = vadd.f32 %v3540, %v1956
    %s3545 = scalar_lea.vmem %s6, 1
    %v3546 = vld [vmem:[%s3545] sm:$0x1]
    %s3547 = scalar_lea.vmem %s7, 1
    %v3548 = vld [vmem:[%s3547] sm:$0x1]
    %v3549 = vsel %vm80, %v3543, 0.0
    %3550 = vadd.xlane.f32.xlu0 %v3549
    %v3551 = vpop.xlane.xlu0 %3550
    %v3552 = vsel %vm80, %v3544, 0.0
    %3553 = vadd.xlane.f32.xlu0 %v3552
    %v3554 = vpop.xlane.xlu0 %3553
    %v3555 = vmul.f32 %v3551, %v87
    %v3556 = vmul.f32 %v3554, %v87
    %v3557 = vmul.f32 %v3543, %v3543
    %v3558 = vmul.f32 %v3544, %v3544
    %v3559 = vsel %vm80, %v3557, 0.0
    %3560 = vadd.xlane.f32.xlu0 %v3559
    %v3561 = vpop.xlane.xlu0 %3560
    %v3562 = vsel %vm80, %v3558, 0.0
    %3563 = vadd.xlane.f32.xlu0 %v3562
    %v3564 = vpop.xlane.xlu0 %3563
    %v3565 = vmul.f32 %v3561, %v87
    %v3566 = vmul.f32 %v3564, %v87
    %v3567 = vmul.f32 %v3555, %v3555
    %v3568 = vmul.f32 %v3556, %v3556
    %v3569 = vsub.f32 %v3565, %v3567
    %v3570 = vsub.f32 %v3566, %v3568
    %v3571 = vsub.f32 %v3543, %v3555
    %v3572 = vsub.f32 %v3544, %v3556
    %v3573 = vadd.f32 %v3569, 1e-05
    %v3574 = vadd.f32 %v3570, 1e-05
    %v3575 = vrsqrt.pop %v3573
    %v3576 = vrsqrt.pop %v3574
    %v3577 = vmul.f32 %v3571, %v3575
    %v3578 = vmul.f32 %v3572, %v3576
    %v3580 = vlaneseq
    %v3581 = vshrl.u32 %v3580, 7
    %v3582 = vsub.s32 0, %v3581
    %v3583 = vrot.slane %v3546, %v3582
    %v3585 = vmul.f32 %v3577, %v3583
    %v3586 = vmul.f32 %v3578, %v3583
    %v3588 = vlaneseq
    %v3589 = vshrl.u32 %v3588, 7
    %v3590 = vsub.s32 0, %v3589
    %v3591 = vrot.slane %v3548, %v3590
    %v3593 = vadd.f32 %v3585, %v3591
    %v3594 = vadd.f32 %v3586, %v3591
    %s3595 = scalar_lea.vmem %s8, 32
    %v3596 = vld [vmem:[%s3595] sm:$0xff]
    %v3597 = vld [vmem:[%s3595 + $0x8] sm:$0xff]
    %v3598 = vld [vmem:[%s3595 + $0x10] sm:$0xff]
    %v3599 = vld [vmem:[%s3595 + $0x18] sm:$0xff]
    %s3600 = scalar_lea.vmem %s9, 1
    %v3601 = vld [vmem:[%s3600] sm:$0x1]
    %v3603 = vlaneseq
    %v3604 = vshrl.u32 %v3603, 7
    %v3605 = vsub.s32 0, %v3604
    %v3606 = vrot.slane %v3601, %v3605
    %v3609 = vsel %vm80, %v3593, 0
    %v3612 = vsel %vm80, %v3594, 0
    %3614 = vmatprep.subr.mxu0 0.0
    %3615 = vmatpush1.msra.mxu0 0.0
    %3616 = vmatprep.subr.mxu0 0.0
    %3617 = vmatpush1.msra.mxu0 0.0
    %3618 = vmatprep.subr.mxu0 0.0
    %3619 = vmatpush1.msra.mxu0 0.0
    %3620 = vmatprep.subr.mxu0 0.0
    %3621 = vmatpush1.msra.mxu0 0.0
    %3622 = vmatprep.subr.mxu0 0.0
    %3623 = vmatpush1.msra.mxu0 0.0
    %3624 = vmatprep.subr.mxu0 0.0
    %3625 = vmatpush1.msra.mxu0 0.0
    %3626 = vmatprep.subr.mxu0 0.0
    %3627 = vmatpush1.msra.mxu0 0.0
    %3628 = vmatprep.subr.mxu0 0.0
    %3629 = vmatpush1.msra.mxu0 0.0
    %3630 = vmatprep.subr.mxu0 0.0
    %3631 = vmatpush1.msra.mxu0 0.0
    %3632 = vmatprep.subr.mxu0 0.0
    %3633 = vmatpush1.msra.mxu0 0.0
    %3634 = vmatprep.subr.mxu0 0.0
    %3635 = vmatpush1.msra.mxu0 0.0
    %3636 = vmatprep.subr.mxu0 0.0
    %3637 = vmatpush1.msra.mxu0 0.0
    %3638 = vmatprep.subr.mxu0 0.0
    %3639 = vmatpush1.msra.mxu0 %v3599
    %3640 = vmatprep.subr.mxu0 0.0
    %3641 = vmatpush1.msra.mxu0 %v3598
    %3642 = vmatprep.subr.mxu0 0.0
    %3643 = vmatpush1.msra.mxu0 %v3597
    %3644 = vmatprep.subr.mxu0 0.0
    %3645 = vmatpush1.msra.mxu0 %v3596
    %3646 = vmatprep.subr.mxu0 0.0
    %3647 = vmatpush2.msra.mxu0 0.0
    %3648 = vmatprep.subr.mxu0 0.0
    %3649 = vmatpush2.msra.mxu0 0.0
    %3650 = vmatprep.subr.mxu0 0.0
    %3651 = vmatpush2.msra.mxu0 0.0
    %3652 = vmatprep.subr.mxu0 0.0
    %3653 = vmatpush2.msra.mxu0 0.0
    %3654 = vmatprep.subr.mxu0 0.0
    %3655 = vmatpush2.msra.mxu0 0.0
    %3656 = vmatprep.subr.mxu0 0.0
    %3657 = vmatpush2.msra.mxu0 0.0
    %3658 = vmatprep.subr.mxu0 0.0
    %3659 = vmatpush2.msra.mxu0 0.0
    %3660 = vmatprep.subr.mxu0 0.0
    %3661 = vmatpush2.msra.mxu0 0.0
    %3662 = vmatprep.subr.mxu0 0.0
    %3663 = vmatpush2.msra.mxu0 0.0
    %3664 = vmatprep.subr.mxu0 0.0
    %3665 = vmatpush2.msra.mxu0 0.0
    %3666 = vmatprep.subr.mxu0 0.0
    %3667 = vmatpush2.msra.mxu0 0.0
    %3668 = vmatprep.subr.mxu0 0.0
    %3669 = vmatpush2.msra.mxu0 0.0
    %3670 = vmatprep.subr.mxu0 0.0
    %3671 = vmatpush2.msra.mxu0 0.0
    %3672 = vmatprep.subr.mxu0 0.0
    %3673 = vmatpush2.msra.mxu0 0.0
    %3674 = vmatprep.subr.mxu0 0.0
    %3675 = vmatpush2.msra.mxu0 0.0
    %3676 = vmatprep.subr.mxu0 0.0
    %3677 = vmatpush2.msra.mxu0 0.0
    %3678 = vmatprep.mubr.f32.mxu0 0.0
    %3679 = vmatmul.mubr.f32.gmra.mxu0 %v3609
    %v3680 = vpop.f32.mrf.mxu0
    %v3681 = vadd.f32 %v3606, %v3680
    %v3682 = vpop.f32.mrf.mxu0
    %3683 = vmatprep.mubr.f32.mxu0 0.0
    %3684 = vmatmul.mubr.f32.gmra.mxu0 %v3612
    %v3685 = vpop.f32.mrf.mxu0
    %v3686 = vadd.f32 %v3606, %v3685
    %v3687 = vpop.f32.mrf.mxu0
    %3688 = vdwg.mxu0
    %v3689 = vmul.f32 %v3681, 0.5
    %v3690 = vmul.f32 %v3686, 0.5
    %v3691 = vmul.f32 %v3681, 0.70710677
    %v3692 = vmul.f32 %v3686, 0.70710677
    %vm3693 = vcmp.ge.f32.partialorder %v3691, 0.0
    %vm3694 = vcmp.ge.f32.partialorder %v3692, 0.0
    %v3695 = vsel %vm3693, 1.0, -1.0
    %v3696 = vsel %vm3694, 1.0, -1.0
    %v3697 = vand.u32 2147483647, %v3691
    %v3698 = vand.u32 2147483647, %v3692
    %v3699 = vmul.f32 %v3697, 0.3275911
    %v3700 = vmul.f32 %v3698, 0.3275911
    %v3701 = vadd.f32 %v3699, 1.0
    %v3702 = vadd.f32 %v3700, 1.0
    %v3703 = vrcp.pop %v3701
    %v3704 = vrcp.pop %v3702
    %v3705 = vmul.f32 %v3703, 1.0614054
    %v3706 = vmul.f32 %v3704, 1.0614054
    %v3707 = vadd.f32 %v3705, -1.4531521
    %v3708 = vadd.f32 %v3706, -1.4531521
    %v3709 = vmul.f32 %v3707, %v3703
    %v3710 = vmul.f32 %v3708, %v3704
    %v3711 = vadd.f32 %v3709, 1.4214138
    %v3712 = vadd.f32 %v3710, 1.4214138
    %v3713 = vmul.f32 %v3711, %v3703
    %v3714 = vmul.f32 %v3712, %v3704
    %v3715 = vadd.f32 %v3713, -0.28449672
    %v3716 = vadd.f32 %v3714, -0.28449672
    %v3717 = vmul.f32 %v3715, %v3703
    %v3718 = vmul.f32 %v3716, %v3704
    %v3719 = vadd.f32 %v3717, 0.2548296
    %v3720 = vadd.f32 %v3718, 0.2548296
    %v3721 = vmul.f32 %v3719, %v3703
    %v3722 = vmul.f32 %v3720, %v3704
    %v3723 = vsub.f32 0.0, %v3697
    %v3724 = vsub.f32 0.0, %v3698
    %v3725 = vmul.f32 %v3723, %v3697
    %v3726 = vmul.f32 %v3724, %v3698
    %v3727 = vmul.f32 %v3725, 1.442695
    %v3728 = vpow.pop %v3727
    %v3729 = vmul.f32 %v3726, 1.442695
    %v3730 = vpow.pop %v3729
    %v3731 = vmul.f32 %v3721, %v3728
    %v3732 = vmul.f32 %v3722, %v3730
    %v3733 = vsub.f32 1.0, %v3731
    %v3734 = vsub.f32 1.0, %v3732
    %v3735 = vmul.f32 %v3695, %v3733
    %v3736 = vmul.f32 %v3696, %v3734
    %v3737 = vadd.f32 %v3735, 1.0
    %v3738 = vadd.f32 %v3736, 1.0
    %v3739 = vmul.f32 %v3689, %v3737
    %v3740 = vmul.f32 %v3690, %v3738
    %s3741 = scalar_lea.vmem %s10, 64
    %v3742 = vld [vmem:[%s3741] sm:$0xff]
    %v3743 = vld [vmem:[%s3741 + $0x8] sm:$0xff]
    %v3744 = vld [vmem:[%s3741 + $0x10] sm:$0xff]
    %v3745 = vld [vmem:[%s3741 + $0x18] sm:$0xff]
    %v3746 = vld [vmem:[%s3741 + $0x20] sm:$0xff]
    %v3747 = vld [vmem:[%s3741 + $0x28] sm:$0xff]
    %v3748 = vld [vmem:[%s3741 + $0x30] sm:$0xff]
    %v3749 = vld [vmem:[%s3741 + $0x38] sm:$0xff]
    %s3750 = scalar_lea.vmem %s11, 1
    %v3751 = vld [vmem:[%s3750] sm:$0x1]
    %v3753 = vlaneseq
    %v3754 = vshrl.u32 %v3753, 7
    %v3755 = vsub.s32 0, %v3754
    %v3756 = vrot.slane %v3751, %v3755
    %v3759 = vsel %vm1873, %v3739, 0
    %v3762 = vsel %vm1873, %v3740, 0
    %3764 = vmatprep.subr.mxu0 0.0
    %3765 = vmatpush1.msra.mxu0 0.0
    %3766 = vmatprep.subr.mxu0 0.0
    %3767 = vmatpush1.msra.mxu0 0.0
    %3768 = vmatprep.subr.mxu0 0.0
    %3769 = vmatpush1.msra.mxu0 0.0
    %3770 = vmatprep.subr.mxu0 0.0
    %3771 = vmatpush1.msra.mxu0 0.0
    %3772 = vmatprep.subr.mxu0 0.0
    %3773 = vmatpush1.msra.mxu0 0.0
    %3774 = vmatprep.subr.mxu0 0.0
    %3775 = vmatpush1.msra.mxu0 0.0
    %3776 = vmatprep.subr.mxu0 0.0
    %3777 = vmatpush1.msra.mxu0 0.0
    %3778 = vmatprep.subr.mxu0 0.0
    %3779 = vmatpush1.msra.mxu0 0.0
    %3780 = vmatprep.subr.mxu0 0.0
    %3781 = vmatpush1.msra.mxu0 %v3749
    %3782 = vmatprep.subr.mxu0 0.0
    %3783 = vmatpush1.msra.mxu0 %v3748
    %3784 = vmatprep.subr.mxu0 0.0
    %3785 = vmatpush1.msra.mxu0 %v3747
    %3786 = vmatprep.subr.mxu0 0.0
    %3787 = vmatpush1.msra.mxu0 %v3746
    %3788 = vmatprep.subr.mxu0 0.0
    %3789 = vmatpush1.msra.mxu0 %v3745
    %3790 = vmatprep.subr.mxu0 0.0
    %3791 = vmatpush1.msra.mxu0 %v3744
    %3792 = vmatprep.subr.mxu0 0.0
    %3793 = vmatpush1.msra.mxu0 %v3743
    %3794 = vmatprep.subr.mxu0 0.0
    %3795 = vmatpush1.msra.mxu0 %v3742
    %3796 = vmatprep.subr.mxu0 0.0
    %3797 = vmatpush2.msra.mxu0 0.0
    %3798 = vmatprep.subr.mxu0 0.0
    %3799 = vmatpush2.msra.mxu0 0.0
    %3800 = vmatprep.subr.mxu0 0.0
    %3801 = vmatpush2.msra.mxu0 0.0
    %3802 = vmatprep.subr.mxu0 0.0
    %3803 = vmatpush2.msra.mxu0 0.0
    %3804 = vmatprep.subr.mxu0 0.0
    %3805 = vmatpush2.msra.mxu0 0.0
    %3806 = vmatprep.subr.mxu0 0.0
    %3807 = vmatpush2.msra.mxu0 0.0
    %3808 = vmatprep.subr.mxu0 0.0
    %3809 = vmatpush2.msra.mxu0 0.0
    %3810 = vmatprep.subr.mxu0 0.0
    %3811 = vmatpush2.msra.mxu0 0.0
    %3812 = vmatprep.subr.mxu0 0.0
    %3813 = vmatpush2.msra.mxu0 0.0
    %3814 = vmatprep.subr.mxu0 0.0
    %3815 = vmatpush2.msra.mxu0 0.0
    %3816 = vmatprep.subr.mxu0 0.0
    %3817 = vmatpush2.msra.mxu0 0.0
    %3818 = vmatprep.subr.mxu0 0.0
    %3819 = vmatpush2.msra.mxu0 0.0
    %3820 = vmatprep.subr.mxu0 0.0
    %3821 = vmatpush2.msra.mxu0 0.0
    %3822 = vmatprep.subr.mxu0 0.0
    %3823 = vmatpush2.msra.mxu0 0.0
    %3824 = vmatprep.subr.mxu0 0.0
    %3825 = vmatpush2.msra.mxu0 0.0
    %3826 = vmatprep.subr.mxu0 0.0
    %3827 = vmatpush2.msra.mxu0 0.0
    %3828 = vmatprep.mubr.f32.mxu0 0.0
    %3829 = vmatmul.mubr.f32.gmra.mxu0 %v3759
    %v3830 = vpop.f32.mrf.mxu0
    %v3831 = vadd.f32 %v3756, %v3830
    %v3832 = vpop.f32.mrf.mxu0
    %3833 = vmatprep.mubr.f32.mxu0 0.0
    %3834 = vmatmul.mubr.f32.gmra.mxu0 %v3762
    %v3835 = vpop.f32.mrf.mxu0
    %v3836 = vadd.f32 %v3756, %v3835
    %v3837 = vpop.f32.mrf.mxu0
    %3838 = vdwg.mxu0
    %v3839 = vadd.f32 %v3831, %v3543
    %v3840 = vadd.f32 %v3836, %v3544
    %v3841 = vld [vmem:[%s12] sm:$0x1]
    %v3842 = vld [vmem:[%s13] sm:$0x1]
    %v3843 = vsel %vm80, %v3839, 0.0
    %3844 = vadd.xlane.f32.xlu0 %v3843
    %v3845 = vpop.xlane.xlu0 %3844
    %v3846 = vsel %vm80, %v3840, 0.0
    %3847 = vadd.xlane.f32.xlu0 %v3846
    %v3848 = vpop.xlane.xlu0 %3847
    %v3849 = vmul.f32 %v3845, %v87
    %v3850 = vmul.f32 %v3848, %v87
    %v3851 = vmul.f32 %v3839, %v3839
    %v3852 = vmul.f32 %v3840, %v3840
    %v3853 = vsel %vm80, %v3851, 0.0
    %3854 = vadd.xlane.f32.xlu0 %v3853
    %v3855 = vpop.xlane.xlu0 %3854
    %v3856 = vsel %vm80, %v3852, 0.0
    %3857 = vadd.xlane.f32.xlu0 %v3856
    %v3858 = vpop.xlane.xlu0 %3857
    %v3859 = vmul.f32 %v3855, %v87
    %v3860 = vmul.f32 %v3858, %v87
    %v3861 = vmul.f32 %v3849, %v3849
    %v3862 = vmul.f32 %v3850, %v3850
    %v3863 = vsub.f32 %v3859, %v3861
    %v3864 = vsub.f32 %v3860, %v3862
    %v3865 = vsub.f32 %v3839, %v3849
    %v3866 = vsub.f32 %v3840, %v3850
    %v3867 = vadd.f32 %v3863, 1e-05
    %v3868 = vadd.f32 %v3864, 1e-05
    %v3869 = vrsqrt.pop %v3867
    %v3870 = vrsqrt.pop %v3868
    %v3871 = vmul.f32 %v3865, %v3869
    %v3872 = vmul.f32 %v3866, %v3870
    %v3874 = vlaneseq
    %v3875 = vshrl.u32 %v3874, 7
    %v3876 = vsub.s32 0, %v3875
    %v3877 = vrot.slane %v3841, %v3876
    %v3879 = vmul.f32 %v3871, %v3877
    %v3880 = vmul.f32 %v3872, %v3877
    %v3882 = vlaneseq
    %v3883 = vshrl.u32 %v3882, 7
    %v3884 = vsub.s32 0, %v3883
    %v3885 = vrot.slane %v3842, %v3884
    %v3887 = vadd.f32 %v3879, %v3885
    %v3888 = vadd.f32 %v3880, %v3885
    %3889 = vst.msk [vmem:[#allocation7] sm:$0xff] %vm80, %v3887
    %3890 = vst.msk [vmem:[#allocation7 + $0x8] sm:$0xff] %vm80, %v3888
    // Predicated region
    $region66: #{tpu_custom_call.1} parent=1 // pred_check
      _
    $region67: #{tpu_custom_call.1} parent=1 // pred_check_branch
      %3892 = sbr.rel (0) target = $region69
    $region68: #{tpu_custom_call.1} parent=1 // pred_region
      %s3894 = ssub.s32 256, 256
      %3895 = vsyncadd [#allocation4], %s3894
      %s3896 = sshll.u32 [#allocation7], 4
      %s3897 = int_to_ptr.vmem [resolvable:$true] %s3896
      %3902 = dma.vmem_to_hbm [thread:$0]  %s3897, 256, %s14, [#allocation4], 128, 128, 8
    $region69: #{tpu_custom_call.1} parent=1 // pred_fallthru
      _
    // Predicated region
    $region70: #{tpu_custom_call.1} parent=1 // pred_check
      _
    $region71: #{tpu_custom_call.1} parent=1 // pred_check_branch
      %3904 = sbr.rel (0) target = $region73
    $region72: #{tpu_custom_call.1} parent=1 // pred_region
      %3905 = dma.done [#allocation4], 256
    $region73: #{tpu_custom_call.1} parent=1 // pred_fallthru
      _
    %3906 = vsyncpa [#allocation3], 1
    %3907 = vsyncpa [#allocation6], 1
    %3908 = vsyncpa [#allocation4], 1

</llo_original>
